<compile_context>
chip_gen: v6e
topology: v6e:2x2x1
jax: 0.10.0
libtpu: 0.0.40
codegen_flags: <defaults>
</compile_context>

<pallas_src>
import functools
import numpy as np
import jax
import jax.numpy as jnp
from jax.experimental import pallas as pl
from jax.experimental.pallas import tpu as pltpu

# ----------------------- config consistent with the module --------------------
TASK = "long_term_forecast"
B = 2
SEQ_LEN = 16
LABEL_LEN = 8
PRED_LEN = 8
ENC_IN = 4
DEC_IN = 4
C_OUT = 4
D_MODEL = 64
N_HEADS = 8                 # FourierBlock hard-codes 8 head groups in its weights
E_LAYERS = 2
D_LAYERS = 1
D_FF = 128
MOVING_AVG = 5              # odd kernel -> output length preserved
MODES = 32
FREQ_FEATS = 4              # embed='timeF', freq='h' -> 4 time features
HEAD_DIM = D_MODEL // N_HEADS
DEC_LEN = LABEL_LEN + PRED_LEN
HEAD_GROUPS = 2             # grid axis for the fused Fourier operator (v7x megacore)


def _f32(x):
    return x.astype(jnp.float32)


# ----------------------------- Pallas matmul kernels ---------------------------
def _mm_kernel(x_ref, w_ref, o_ref):
    o_ref[...] = jnp.dot(x_ref[...], w_ref[...], preferred_element_type=jnp.float32)


def _mm_bias_kernel(x_ref, w_ref, b_ref, o_ref):
    o_ref[...] = (jnp.dot(x_ref[...], w_ref[...], preferred_element_type=jnp.float32)
                  + b_ref[...])


def _mm_add_kernel(x_ref, w_ref, r_ref, o_ref):
    o_ref[...] = (jnp.dot(x_ref[...], w_ref[...], preferred_element_type=jnp.float32)
                  + r_ref[...])


def _mm_bias_add_kernel(x_ref, w_ref, b_ref, r_ref, o_ref):
    o_ref[...] = (jnp.dot(x_ref[...], w_ref[...], preferred_element_type=jnp.float32)
                  + b_ref[...] + r_ref[...])


def pallas_matmul(x, w):
    M, N = x.shape[0], w.shape[1]
    return pl.pallas_call(
        _mm_kernel, out_shape=jax.ShapeDtypeStruct((M, N), jnp.float32),
    )(_f32(x), _f32(w))


def pallas_matmul_bias(x, w, b):
    M, N = x.shape[0], w.shape[1]
    return pl.pallas_call(
        _mm_bias_kernel, out_shape=jax.ShapeDtypeStruct((M, N), jnp.float32),
    )(_f32(x), _f32(w), _f32(b).reshape(1, N))


def pallas_matmul_add(x, w, r):
    M, N = x.shape[0], w.shape[1]
    return pl.pallas_call(
        _mm_add_kernel, out_shape=jax.ShapeDtypeStruct((M, N), jnp.float32),
    )(_f32(x), _f32(w), _f32(r))


def pallas_matmul_bias_add(x, w, b, r):
    M, N = x.shape[0], w.shape[1]
    return pl.pallas_call(
        _mm_bias_add_kernel, out_shape=jax.ShapeDtypeStruct((M, N), jnp.float32),
    )(_f32(x), _f32(w), _f32(b).reshape(1, N), _f32(r))


# ----------------------------- LayerNorm (my_Layernorm) ------------------------
def _my_layernorm_kernel(x_ref, w_ref, b_ref, o_ref):
    x = x_ref[...]
    mu = jnp.mean(x, axis=-1, keepdims=True)
    xc = x - mu
    var = jnp.mean(xc * xc, axis=-1, keepdims=True)
    xh = xc * jax.lax.rsqrt(var + 1e-5) * w_ref[...] + b_ref[...]
    # my_Layernorm: subtract the per-sequence mean (fused, no extra HBM round-trip)
    o_ref[...] = xh - jnp.mean(xh, axis=1, keepdims=True)


def my_layernorm(x, w, b):
    Bx, L, D = x.shape
    return pl.pallas_call(
        _my_layernorm_kernel,
        out_shape=jax.ShapeDtypeStruct((Bx, L, D), jnp.float32),
    )(_f32(x), _f32(w).reshape(1, 1, D), _f32(b).reshape(1, 1, D))


# ----------------------------- series decomposition ----------------------------
def _series_decomp_kernel(x_ref, res_ref, trend_ref, *, ksize):
    L = res_ref.shape[1]
    x = x_ref[...]
    acc = x[:, 0:L, :]
    for k in range(1, ksize):                # static loop over kernel window
        acc = acc + x[:, k:k + L, :]
    trend = acc * (1.0 / ksize)
    pad = (ksize - 1) // 2
    trend_ref[...] = trend
    res_ref[...] = x[:, pad:pad + L, :] - trend


def series_decomp(x, ksize=MOVING_AVG):
    """Autoformer series_decomp: replicate-pad ends, moving mean, residual."""
    Bx, L, D = x.shape
    pad = (ksize - 1) // 2
    front = jnp.repeat(x[:, :1, :], pad, axis=1)
    end = jnp.repeat(x[:, -1:, :], pad, axis=1)
    xpad = _f32(jnp.concatenate([front, x, end], axis=1))
    res, trend = pl.pallas_call(
        functools.partial(_series_decomp_kernel, ksize=ksize),
        out_shape=(jax.ShapeDtypeStruct((Bx, L, D), jnp.float32),
                   jax.ShapeDtypeStruct((Bx, L, D), jnp.float32)),
    )(xpad)
    return res, trend


# --------------------- fused FourierBlock operator (per head) ------------------
def _num_modes(seq_len_cfg):
    # get_frequency_modes: modes = min(MODES, seq_len//2); with MODES >= seq_len//2
    # the (sorted) random selection keeps every frequency -> index == range.
    return min(MODES, seq_len_cfg // 2)


def build_fourier_operator(w_re, w_im, L):
    """Fold FourierBlock (rfft -> keep first nm modes -> per-mode ExE complex mixing
    -> zero-pad -> irfft) into one real (E*L, E*L) operator per head, built by
    pushing an identity basis through numpy's rfft/irfft (same semantics as torch)."""
    wr = np.asarray(w_re, np.float64)
    wi = np.asarray(w_im, np.float64)
    H, E, O, nm = wr.shape
    w = wr + 1j * wi
    basis = np.eye(E * L).reshape(E * L, E, L)
    xf = np.fft.rfft(basis, axis=-1)[..., :nm]                  # (EL, E, nm)
    of = np.einsum("nem,heom->nhom", xf, w)                     # (EL, H, O, nm)
    full = np.zeros((E * L, H, O, L // 2 + 1), np.complex128)
    full[..., :nm] = of
    out_t = np.fft.irfft(full, n=L, axis=-1)                    # (EL, H, O, L)
    op = np.transpose(out_t, (1, 0, 2, 3)).reshape(H, E * L, O * L)
    return jnp.asarray(op, jnp.float32)


def _fourier_op_kernel(x_ref, w_ref, o_ref):
    # x_ref: (1, HG, B, E*L), w_ref: (1, HG, E*L, E*L) -> batched 128x128 matmul
    o_ref[0] = jnp.einsum("hbk,hkn->hbn", x_ref[0], w_ref[0],
                          preferred_element_type=jnp.float32)


def apply_fourier_operator(xh, op):
    """xh: (H, B, E*L); op: (H, E*L, E*L) -> (H, B, E*L)."""
    H, Bx, EL = xh.shape
    G = HEAD_GROUPS
    HG = H // G
    out = pl.pallas_call(
        _fourier_op_kernel,
        out_shape=jax.ShapeDtypeStruct((G, HG, Bx, EL), jnp.float32),
        grid=(G,),
        in_specs=[pl.BlockSpec((1, HG, Bx, EL), lambda g: (g, 0, 0, 0)),
                  pl.BlockSpec((1, HG, EL, EL), lambda g: (g, 0, 0, 0))],
        out_specs=pl.BlockSpec((1, HG, Bx, EL), lambda g: (g, 0, 0, 0)),
        compiler_params=pltpu.CompilerParams(dimension_semantics=("parallel",)),
    )(_f32(xh).reshape(G, HG, Bx, EL), _f32(op).reshape(G, HG, EL, EL))
    return out.reshape(H, Bx, EL)


# --------------------- reduced DFT matrices for cross attention ----------------
@functools.lru_cache(maxsize=None)
def _rfft_modes_matrix(L, nm):
    t = np.arange(L)[:, None].astype(np.float64)
    m = np.arange(nm)[None, :].astype(np.float64)
    ang = 2.0 * np.pi * t * m / L
    return jnp.asarray(np.concatenate([np.cos(ang), -np.sin(ang)], axis=1),
                       jnp.float32)                              # (L, 2*nm)


@functools.lru_cache(maxsize=None)
def _irfft_modes_matrix(L, nm, scale):
    w = np.full((nm, 1), 2.0)
    w[0, 0] = 1.0
    m = np.arange(nm)[:, None].astype(np.float64)
    t = np.arange(L)[None, :].astype(np.float64)
    ang = 2.0 * np.pi * m * t / L
    A = scale * w * np.cos(ang) / L
    Bm = -scale * w * np.sin(ang) / L
    return jnp.asarray(np.concatenate([A, Bm], axis=0), jnp.float32)   # (2*nm, L)


# --------------------------- complex helpers (glue) -----------------------------
def cplx_einsum(spec, ar, ai, br, bi):
    rr = jnp.einsum(spec, ar, br)
    ii = jnp.einsum(spec, ai, bi)
    ri = jnp.einsum(spec, ar, bi)
    ir = jnp.einsum(spec, ai, br)
    return rr - ii, ri + ir


def cplx_tanh(zr, zi):
    """Numerically stable complex tanh: tanh(x+iy) = (sinh2x + i*sin2y)/(cosh2x + cos2y),
    with numerator/denominator divided by cosh(2x) so nothing overflows float32."""
    e = jnp.exp(-2.0 * jnp.abs(zr))
    sech2x = 2.0 * e / (1.0 + e * e)          # 1/cosh(2x), always finite
    tanh2x = jnp.tanh(2.0 * zr)
    den = 1.0 + jnp.cos(2.0 * zi) * sech2x
    return tanh2x / den, jnp.sin(2.0 * zi) * sech2x / den


# ------------------------------- embeddings -------------------------------------
def positional_embedding(L, d_model):
    pe = np.zeros((L, d_model), np.float32)
    pos = np.arange(L)[:, None].astype(np.float32)
    div = np.exp(np.arange(0, d_model, 2).astype(np.float32)
                 * -(np.log(10000.0) / d_model))
    pe[:, 0::2] = np.sin(pos * div)
    pe[:, 1::2] = np.cos(pos * div)
    return jnp.asarray(pe)                                        # (L, D)


def data_embedding(x, x_mark, emb_w):
    """TokenEmbedding (circular conv k=3) + TimeFeatureEmbedding + positional,
    fused into a single lane-dense matmul: [unfold(x) | x_mark] @ [W_tok; W_time] + PE.
    Dropout p=0 -> identity."""
    Bx, L, C = x.shape
    xpad = jnp.concatenate([x[:, -1:, :], x, x[:, :1, :]], axis=1)      # circular pad
    win = jnp.stack([xpad[:, k:k + L, :] for k in range(3)], axis=2)    # (B,L,3,C)
    feats = jnp.concatenate([win.reshape(Bx, L, 3 * C), x_mark], axis=-1)
    pos = jnp.broadcast_to(positional_embedding(L, D_MODEL)[None], (Bx, L, D_MODEL))
    out = pallas_matmul_add(feats.reshape(Bx * L, feats.shape[-1]), emb_w,
                            pos.reshape(Bx * L, D_MODEL))
    return out.reshape(Bx, L, D_MODEL)


def circular_conv1d_k3(x, w_unf):
    """Conv1d(Cin, Cout, k=3, padding=1, padding_mode='circular', bias=False) on [B,L,C]."""
    Bx, L, C = x.shape
    xpad = jnp.concatenate([x[:, -1:, :], x, x[:, :1, :]], axis=1)
    win = jnp.stack([xpad[:, k:k + L, :] for k in range(3)], axis=2)
    out = pallas_matmul(win.reshape(Bx * L, 3 * C), w_unf)
    return out.reshape(Bx, L, -1)


# --------------------------- attention sublayers ---------------------------------
def fourier_self_attention(x, wq, bq, wo, bo, fb_op):
    """AutoCorrelationLayer(FourierBlock) + residual add.
    K/V projections are dead code in FourierBlock (only Q is used) -> skipped."""
    Bx, L, D = x.shape
    x2d = x.reshape(Bx * L, D)
    q = pallas_matmul_bias(x2d, wq, bq)                              # (B*L, D)
    q = q.reshape(Bx, L, N_HEADS, HEAD_DIM).transpose(0, 2, 3, 1)    # (B,H,E,L)
    xh = q.transpose(1, 0, 2, 3).reshape(N_HEADS, Bx, HEAD_DIM * L)  # (H,B,E*L)
    out = apply_fourier_operator(xh, fb_op)                          # (H,B,E*L)
    out = out.reshape(N_HEADS, Bx, HEAD_DIM, L).transpose(1, 0, 2, 3)  # (B,H,E,L)
    attn = out.reshape(Bx, L, D)          # PyTorch `.view(B, L, -1)` quirk (kept)
    return pallas_matmul_bias_add(attn.reshape(Bx * L, D), wo, bo,
                                  x2d).reshape(Bx, L, D)


def fourier_cross_attention(x, cross, p, w_re, w_im, seq_len_q, seq_len_kv):
    """AutoCorrelationLayer(FourierCrossAttention, activation='tanh') + residual.
    The V projection is dead code (the reference uses K's spectrum as values)."""
    Bx, Lq, D = x.shape
    Lk = cross.shape[1]
    x2d = x.reshape(Bx * Lq, D)
    c2d = cross.reshape(Bx * Lk, D)
    q = pallas_matmul_bias(x2d, p["wq"], p["bq"]).reshape(Bx, Lq, N_HEADS, HEAD_DIM)
    k = pallas_matmul_bias(c2d, p["wk"], p["bk"]).reshape(Bx, Lk, N_HEADS, HEAD_DIM)
    xq = q.transpose(0, 2, 3, 1)                                     # (B,H,E,Lq)
    xk = k.transpose(0, 2, 3, 1)                                     # (B,H,E,Lk)
    nq = _num_modes(seq_len_q)
    nk = _num_modes(seq_len_kv)
    if Lq == Lk and nq == nk:        # one fused reduced-DFT matmul for both spectra
        rows = jnp.concatenate([xq.reshape(-1, Lq), xk.reshape(-1, Lk)], axis=0)
        y = pallas_matmul(rows, _rfft_modes_matrix(Lq, nq))
        half = Bx * N_HEADS * HEAD_DIM
        yq, yk = y[:half], y[half:]
    else:
        yq = pallas_matmul(xq.reshape(-1, Lq), _rfft_modes_matrix(Lq, nq))
        yk = pallas_matmul(xk.reshape(-1, Lk), _rfft_modes_matrix(Lk, nk))
    qr = yq[:, :nq].reshape(Bx, N_HEADS, HEAD_DIM, nq)
    qi = yq[:, nq:].reshape(Bx, N_HEADS, HEAD_DIM, nq)
    kr = yk[:, :nk].reshape(Bx, N_HEADS, HEAD_DIM, nk)
    ki = yk[:, nk:].reshape(Bx, N_HEADS, HEAD_DIM, nk)
    # tiny per-(b,h) complex attention in frequency domain -> plain JAX glue
    sr, si = cplx_einsum("bhex,bhey->bhxy", qr, qi, kr, ki)
    tr, ti = cplx_tanh(sr, si)                                       # stable complex tanh
    vr, vi = cplx_einsum("bhxy,bhey->bhex", tr, ti, kr, ki)
    or_, oi_ = cplx_einsum("bhex,heox->bhox", vr, vi, w_re, w_im)
    # irfft of kept modes only; zero-pad of dropped modes + 1/(in_ch*out_ch) scale folded in
    rows = jnp.concatenate([or_.reshape(-1, nq), oi_.reshape(-1, nq)], axis=1)
    out = pallas_matmul(rows, _irfft_modes_matrix(Lq, nq, 1.0 / (D_MODEL * D_MODEL)))
    out = out.reshape(Bx, N_HEADS, HEAD_DIM, Lq)
    attn = out.reshape(Bx, Lq, D)         # PyTorch `.view(B, L, -1)` quirk (kept)
    return pallas_matmul_bias_add(attn.reshape(Bx * Lq, D), p["wo"], p["bo"],
                                  x2d).reshape(Bx, Lq, D)


def ffn(x, w1, w2):
    """Conv1d(k=1) -> GELU -> Conv1d(k=1), second matmul fused with residual add."""
    Bx, L, D = x.shape
    x2d = x.reshape(Bx * L, D)
    h = pallas_matmul(x2d, w1)                        # lane-dense N = d_ff = 128
    h = jax.nn.gelu(h, approximate=False)             # exact (erf) GELU as XLA glue
    return pallas_matmul_add(h, w2, x2d).reshape(Bx, L, D)


# ----------------------------- encoder / decoder ---------------------------------
def encoder_layer(x, p):
    x = fourier_self_attention(x, p["wq"], p["bq"], p["wo"], p["bo"], p["fb_op"])
    x, _ = series_decomp(x)
    y = ffn(x, p["w1"], p["w2"])
    res, _ = series_decomp(y)
    return res


def encoder(x, params):
    for p in params["layers"]:
        x = encoder_layer(x, p)
    return my_layernorm(x, params["norm_w"], params["norm_b"])


def decoder_layer(x, cross, p):
    sp = p["self"]
    x = fourier_self_attention(x, sp["wq"], sp["bq"], sp["wo"], sp["bo"],
                               p["self_fb_op"])
    x, trend1 = series_decomp(x)
    x = fourier_cross_attention(x, cross, p["cross"], p["cross_fb_wr"],
                                p["cross_fb_wi"],
                                SEQ_LEN // 2 + PRED_LEN, SEQ_LEN)
    x, trend2 = series_decomp(x)
    y = ffn(x, p["w1"], p["w2"])
    x, trend3 = series_decomp(y)
    residual_trend = trend1 + trend2 + trend3
    residual_trend = circular_conv1d_k3(residual_trend, p["trend_conv_w"])
    return x, residual_trend


def decoder(x, cross, trend, params):
    for p in params["layers"]:
        x, rt = decoder_layer(x, cross, p)
        trend = trend + rt
    x = my_layernorm(x, params["norm_w"], params["norm_b"])
    Bx, L, D = x.shape
    x = pallas_matmul_bias(x.reshape(Bx * L, D), params["proj_w"],
                           params["proj_b"]).reshape(Bx, L, -1)
    return x, trend


# --------------------------------- forecast --------------------------------------
def fedformer_forecast(x_enc, x_mark_enc, x_dec, x_mark_dec, params):
    del x_dec  # not used by FEDformer.forecast
    mean = jnp.repeat(jnp.mean(x_enc, axis=1, keepdims=True), PRED_LEN, axis=1)
    seasonal_init, trend_init = series_decomp(x_enc)
    trend_init = jnp.concatenate([trend_init[:, -LABEL_LEN:, :], mean], axis=1)
    seasonal_init = jnp.pad(seasonal_init[:, -LABEL_LEN:, :],
                            ((0, 0), (0, PRED_LEN), (0, 0)))
    enc_out = data_embedding(x_enc, x_mark_enc, params["enc_emb_w"])
    dec_out = data_embedding(seasonal_init, x_mark_dec, params["dec_emb_w"])
    enc_out = encoder(enc_out, params["encoder"])
    seasonal_part, trend_part = decoder(dec_out, enc_out, trend_init,
                                        params["decoder"])
    # TODO(synk): static1/2/4/6/7 branches (StaticEmbedding / CombineOutputs /
    # auxutils/M5_static.npy) are not on the active forward path here
    # (configs.static is none of those values), so they are skipped.
    dec_out_full = trend_part + seasonal_part
    return dec_out_full[:, -PRED_LEN:, :]


# ------------------------------- parameter init ----------------------------------
def init_params(key):
    keys = iter(jax.random.split(key, 256))

    def nxt():
        return next(keys)

    def dense(din, dout, bias=True):
        w = jax.random.normal(nxt(), (din, dout), jnp.float32) / np.sqrt(din)
        b = (jax.random.normal(nxt(), (dout,), jnp.float32) * 0.02) if bias else None
        return w, b

    def conv3(cin, cout):
        return (jax.random.normal(nxt(), (3 * cin, cout), jnp.float32)
                / np.sqrt(3 * cin))

    def fourier_w(nm):
        s = 1.0 / (D_MODEL * D_MODEL)
        wr = s * jax.random.uniform(nxt(), (N_HEADS, HEAD_DIM, HEAD_DIM, nm))
        wi = s * jax.random.uniform(nxt(), (N_HEADS, HEAD_DIM, HEAD_DIM, nm))
        return wr.astype(jnp.float32), wi.astype(jnp.float32)

    def attn_params(need_k=False):
        d = {}
        d["wq"], d["bq"] = dense(D_MODEL, D_MODEL)
        if need_k:
            d["wk"], d["bk"] = dense(D_MODEL, D_MODEL)
        d["wo"], d["bo"] = dense(D_MODEL, D_MODEL)
        return d

    params = {
        # TokenEmbedding conv rows (3*Cin) and TimeFeatureEmbedding rows (FREQ)
        # concatenated so DataEmbedding is a single matmul.
        "enc_emb_w": jnp.concatenate(
            [conv3(ENC_IN, D_MODEL), dense(FREQ_FEATS, D_MODEL, bias=False)[0]],
            axis=0),
        "dec_emb_w": jnp.concatenate(
            [conv3(DEC_IN, D_MODEL), dense(FREQ_FEATS, D_MODEL, bias=False)[0]],
            axis=0),
    }

    enc_layers = []
    nm_enc = _num_modes(SEQ_LEN)
    for _ in range(E_LAYERS):
        p = attn_params()
        wr, wi = fourier_w(nm_enc)
        p["fb_op"] = build_fourier_operator(wr, wi, SEQ_LEN)
        p["w1"] = dense(D_MODEL, D_FF, bias=False)[0]
        p["w2"] = dense(D_FF, D_MODEL, bias=False)[0]
        enc_layers.append(p)
    params["encoder"] = dict(layers=enc_layers,
                             norm_w=jnp.ones((D_MODEL,), jnp.float32),
                             norm_b=jnp.zeros((D_MODEL,), jnp.float32))

    dec_layers = []
    nm_dec = _num_modes(SEQ_LEN // 2 + PRED_LEN)
    for _ in range(D_LAYERS):
        p = {"self": attn_params(), "cross": attn_params(need_k=True)}
        wr, wi = fourier_w(nm_dec)
        # operator built for the runtime decoder length (== label_len + pred_len)
        p["self_fb_op"] = build_fourier_operator(wr, wi, DEC_LEN)
        p["cross_fb_wr"], p["cross_fb_wi"] = fourier_w(nm_dec)
        p["w1"] = dense(D_MODEL, D_FF, bias=False)[0]
        p["w2"] = dense(D_FF, D_MODEL, bias=False)[0]
        p["trend_conv_w"] = conv3(D_MODEL, C_OUT)
        dec_layers.append(p)
    proj_w, proj_b = dense(D_MODEL, C_OUT, bias=True)
    params["decoder"] = dict(layers=dec_layers,
                             norm_w=jnp.ones((D_MODEL,), jnp.float32),
                             norm_b=jnp.zeros((D_MODEL,), jnp.float32),
                             proj_w=proj_w, proj_b=proj_b)
    return params


# ------------------------------------ main ----------------------------------------
if __name__ == "__main__":
    key = jax.random.PRNGKey(0)
    k_par, k1, k2, k3, k4 = jax.random.split(key, 5)
    params = init_params(k_par)

    x_enc = jax.random.normal(k1, (B, SEQ_LEN, ENC_IN), jnp.float32)
    x_mark_enc = jax.random.normal(k2, (B, SEQ_LEN, FREQ_FEATS), jnp.float32)
    x_dec = jax.random.normal(k3, (B, DEC_LEN, DEC_IN), jnp.float32)
    x_mark_dec = jax.random.normal(k4, (B, DEC_LEN, FREQ_FEATS), jnp.float32)

    fwd = jax.jit(fedformer_forecast)
    out = jax.block_until_ready(fwd(x_enc, x_mark_enc, x_dec, x_mark_dec, params))

    assert out.shape == (B, PRED_LEN, C_OUT), out.shape
    assert bool(jnp.all(jnp.isfinite(out))), "non-finite output"
    print("KERNEL_OK")
</pallas_src>

<mosaic_0001>
module attributes {stable_mosaic.version = 11 : i64} {
  func.func @_mm_add_kernel(%arg0: memref<32x16xf32, #tpu.memory_space<vmem>>, %arg1: memref<16x64xf32, #tpu.memory_space<vmem>>, %arg2: memref<32x64xf32, #tpu.memory_space<vmem>>, %arg3: memref<32x64xf32, #tpu.memory_space<vmem>>) attributes {dimension_semantics = [], scalar_prefetch = 0 : i64, scratch_operands = 0 : i64, tpu.core_type = #tpu.core_type<tc>} {
    %c0 = arith.constant 0 : index
    %c0_0 = arith.constant 0 : index
    %0 = vector.load %arg0[%c0, %c0_0] : memref<32x16xf32, #tpu.memory_space<vmem>>, vector<32x16xf32>
    %c0_1 = arith.constant 0 : index
    %c0_2 = arith.constant 0 : index
    %1 = vector.load %arg1[%c0_1, %c0_2] : memref<16x64xf32, #tpu.memory_space<vmem>>, vector<16x64xf32>
    %cst = arith.constant dense<0.000000e+00> : vector<32x64xf32>
    %2 = tpu.matmul %0, %1, %cst {dimension_numbers = #tpu.dot_dimension_numbers<[1], [0], [0], [1], [0, 0, 1, 1], [], []>} : vector<32x16xf32>, vector<16x64xf32>, vector<32x64xf32> -> vector<32x64xf32>
    %c0_3 = arith.constant 0 : index
    %c0_4 = arith.constant 0 : index
    %3 = vector.load %arg2[%c0_3, %c0_4] : memref<32x64xf32, #tpu.memory_space<vmem>>, vector<32x64xf32>
    %4 = arith.addf %2, %3 : vector<32x64xf32>
    %c0_5 = arith.constant 0 : index
    %c0_6 = arith.constant 0 : index
    %5 = vector.load %arg3[%c0_5, %c0_6] : memref<32x64xf32, #tpu.memory_space<vmem>>, vector<32x64xf32>
    tpu.vector_store %arg3[%c0_5, %c0_6], %4 {strides = array<i32>} : memref<32x64xf32, #tpu.memory_space<vmem>>, vector<32x64xf32>,
    return
  }
}

module attributes {stable_mosaic.version = 11 : i64} {
  func.func @_mm_bias_kernel(%arg0: memref<32x64xf32, #tpu.memory_space<vmem>>, %arg1: memref<64x64xf32, #tpu.memory_space<vmem>>, %arg2: memref<1x64xf32, #tpu.memory_space<vmem>>, %arg3: memref<32x64xf32, #tpu.memory_space<vmem>>) attributes {dimension_semantics = [], scalar_prefetch = 0 : i64, scratch_operands = 0 : i64, tpu.core_type = #tpu.core_type<tc>} {
    %c0 = arith.constant 0 : index
    %c0_0 = arith.constant 0 : index
    %0 = vector.load %arg0[%c0, %c0_0] : memref<32x64xf32, #tpu.memory_space<vmem>>, vector<32x64xf32>
    %c0_1 = arith.constant 0 : index
    %c0_2 = arith.constant 0 : index
    %1 = vector.load %arg1[%c0_1, %c0_2] : memref<64x64xf32, #tpu.memory_space<vmem>>, vector<64x64xf32>
    %cst = arith.constant dense<0.000000e+00> : vector<32x64xf32>
    %2 = tpu.matmul %0, %1, %cst {dimension_numbers = #tpu.dot_dimension_numbers<[1], [0], [0], [1], [0, 0, 1, 1], [], []>} : vector<32x64xf32>, vector<64x64xf32>, vector<32x64xf32> -> vector<32x64xf32>
    %c0_3 = arith.constant 0 : index
    %c0_4 = arith.constant 0 : index
    %3 = vector.load %arg2[%c0_3, %c0_4] : memref<1x64xf32, #tpu.memory_space<vmem>>, vector<1x64xf32>
    %4 = vector.broadcast %3 : vector<1x64xf32> to vector<32x64xf32>
    %5 = arith.addf %2, %4 : vector<32x64xf32>
    %c0_5 = arith.constant 0 : index
    %c0_6 = arith.constant 0 : index
    %6 = vector.load %arg3[%c0_5, %c0_6] : memref<32x64xf32, #tpu.memory_space<vmem>>, vector<32x64xf32>
    tpu.vector_store %arg3[%c0_5, %c0_6], %5 {strides = array<i32>} : memref<32x64xf32, #tpu.memory_space<vmem>>, vector<32x64xf32>,
    return
  }
}

module attributes {stable_mosaic.version = 11 : i64} {
  func.func @_fourier_op_kernel(%arg0: i32, %arg1: memref<1x4x2x128xf32, #tpu.memory_space<vmem>>, %arg2: memref<1x4x128x128xf32, #tpu.memory_space<vmem>>, %arg3: memref<1x4x2x128xf32, #tpu.memory_space<vmem>>) attributes {dimension_semantics = [#tpu.dimension_semantics<parallel>], iteration_bounds = array<i64: 2>, scalar_prefetch = 0 : i64, scratch_operands = 0 : i64, tpu.core_type = #tpu.core_type<tc>, window_params = [{transform_indices = @transform_0, window_bounds = array<i64: 1, 4, 2, 128>}, {transform_indices = @transform_1, window_bounds = array<i64: 1, 4, 128, 128>}, {transform_indices = @transform_2, window_bounds = array<i64: 1, 4, 2, 128>}]} {
    %c0 = arith.constant 0 : index
    %c0_0 = arith.constant 0 : index
    %c0_1 = arith.constant 0 : index
    %c0_2 = arith.constant 0 : index
    %0 = vector.load %arg1[%c0, %c0_0, %c0_1, %c0_2] : memref<1x4x2x128xf32, #tpu.memory_space<vmem>>, vector<1x4x2x128xf32>
    %1 = vector.shape_cast %0 : vector<1x4x2x128xf32> to vector<4x2x128xf32>
    %c0_3 = arith.constant 0 : index
    %c0_4 = arith.constant 0 : index
    %c0_5 = arith.constant 0 : index
    %c0_6 = arith.constant 0 : index
    %2 = vector.load %arg2[%c0_3, %c0_4, %c0_5, %c0_6] : memref<1x4x128x128xf32, #tpu.memory_space<vmem>>, vector<1x4x128x128xf32>
    %3 = vector.shape_cast %2 : vector<1x4x128x128xf32> to vector<4x128x128xf32>
    "tpu.trace_start"() <{level = 10 : i32, message = "hbk,hkn->hbn"}> : () -> ()
    %cst = arith.constant dense<0.000000e+00> : vector<4x2x128xf32>
    %4 = tpu.matmul %1, %3, %cst {dimension_numbers = #tpu.dot_dimension_numbers<[2], [1], [1], [2], [0, 0, 0, 1, 1, 2], [0], [0]>} : vector<4x2x128xf32>, vector<4x128x128xf32>, vector<4x2x128xf32> -> vector<4x2x128xf32>
    "tpu.trace_stop"() : () -> ()
    %c0_7 = arith.constant 0 : index
    %c0_8 = arith.constant 0 : index
    %c0_9 = arith.constant 0 : index
    %c0_10 = arith.constant 0 : index
    %5 = vector.load %arg3[%c0_7, %c0_8, %c0_9, %c0_10] : memref<1x4x2x128xf32, #tpu.memory_space<vmem>>, vector<1x4x2x128xf32>
    %6 = vector.shape_cast %5 : vector<1x4x2x128xf32> to vector<4x2x128xf32>
    %7 = vector.shape_cast %4 : vector<4x2x128xf32> to vector<1x4x2x128xf32>
    tpu.vector_store %arg3[%c0_7, %c0_8, %c0_9, %c0_10], %7 {strides = array<i32>} : memref<1x4x2x128xf32, #tpu.memory_space<vmem>>, vector<1x4x2x128xf32>,
    return
  }
  func.func @transform_0(%arg0: i32) -> (i32, i32, i32, i32) {
    %c0_i32 = arith.constant 0 : i32
    %c0_i32_0 = arith.constant 0 : i32
    %c0_i32_1 = arith.constant 0 : i32
    %c0_i32_2 = arith.constant 0 : i32
    return %arg0, %c0_i32, %c0_i32_0, %c0_i32_1 : i32, i32, i32, i32
  }
  func.func @transform_1(%arg0: i32) -> (i32, i32, i32, i32) {
    %c0_i32 = arith.constant 0 : i32
    %c0_i32_0 = arith.constant 0 : i32
    %c0_i32_1 = arith.constant 0 : i32
    %c0_i32_2 = arith.constant 0 : i32
    return %arg0, %c0_i32, %c0_i32_0, %c0_i32_1 : i32, i32, i32, i32
  }
  func.func @transform_2(%arg0: i32) -> (i32, i32, i32, i32) {
    %c0_i32 = arith.constant 0 : i32
    %c0_i32_0 = arith.constant 0 : i32
    %c0_i32_1 = arith.constant 0 : i32
    %c0_i32_2 = arith.constant 0 : i32
    return %arg0, %c0_i32, %c0_i32_0, %c0_i32_1 : i32, i32, i32, i32
  }
}

module attributes {stable_mosaic.version = 11 : i64} {
  func.func @_mm_bias_add_kernel(%arg0: memref<32x64xf32, #tpu.memory_space<vmem>>, %arg1: memref<64x64xf32, #tpu.memory_space<vmem>>, %arg2: memref<1x64xf32, #tpu.memory_space<vmem>>, %arg3: memref<32x64xf32, #tpu.memory_space<vmem>>, %arg4: memref<32x64xf32, #tpu.memory_space<vmem>>) attributes {dimension_semantics = [], scalar_prefetch = 0 : i64, scratch_operands = 0 : i64, tpu.core_type = #tpu.core_type<tc>} {
    %c0 = arith.constant 0 : index
    %c0_0 = arith.constant 0 : index
    %0 = vector.load %arg0[%c0, %c0_0] : memref<32x64xf32, #tpu.memory_space<vmem>>, vector<32x64xf32>
    %c0_1 = arith.constant 0 : index
    %c0_2 = arith.constant 0 : index
    %1 = vector.load %arg1[%c0_1, %c0_2] : memref<64x64xf32, #tpu.memory_space<vmem>>, vector<64x64xf32>
    %cst = arith.constant dense<0.000000e+00> : vector<32x64xf32>
    %2 = tpu.matmul %0, %1, %cst {dimension_numbers = #tpu.dot_dimension_numbers<[1], [0], [0], [1], [0, 0, 1, 1], [], []>} : vector<32x64xf32>, vector<64x64xf32>, vector<32x64xf32> -> vector<32x64xf32>
    %c0_3 = arith.constant 0 : index
    %c0_4 = arith.constant 0 : index
    %3 = vector.load %arg2[%c0_3, %c0_4] : memref<1x64xf32, #tpu.memory_space<vmem>>, vector<1x64xf32>
    %4 = vector.broadcast %3 : vector<1x64xf32> to vector<32x64xf32>
    %5 = arith.addf %2, %4 : vector<32x64xf32>
    %c0_5 = arith.constant 0 : index
    %c0_6 = arith.constant 0 : index
    %6 = vector.load %arg3[%c0_5, %c0_6] : memref<32x64xf32, #tpu.memory_space<vmem>>, vector<32x64xf32>
    %7 = arith.addf %5, %6 : vector<32x64xf32>
    %c0_7 = arith.constant 0 : index
    %c0_8 = arith.constant 0 : index
    %8 = vector.load %arg4[%c0_7, %c0_8] : memref<32x64xf32, #tpu.memory_space<vmem>>, vector<32x64xf32>
    tpu.vector_store %arg4[%c0_7, %c0_8], %7 {strides = array<i32>} : memref<32x64xf32, #tpu.memory_space<vmem>>, vector<32x64xf32>,
    return
  }
}

module attributes {stable_mosaic.version = 11 : i64} {
  func.func @_mm_kernel(%arg0: memref<32x64xf32, #tpu.memory_space<vmem>>, %arg1: memref<64x128xf32, #tpu.memory_space<vmem>>, %arg2: memref<32x128xf32, #tpu.memory_space<vmem>>) attributes {dimension_semantics = [], scalar_prefetch = 0 : i64, scratch_operands = 0 : i64, tpu.core_type = #tpu.core_type<tc>} {
    %c0 = arith.constant 0 : index
    %c0_0 = arith.constant 0 : index
    %0 = vector.load %arg0[%c0, %c0_0] : memref<32x64xf32, #tpu.memory_space<vmem>>, vector<32x64xf32>
    %c0_1 = arith.constant 0 : index
    %c0_2 = arith.constant 0 : index
    %1 = vector.load %arg1[%c0_1, %c0_2] : memref<64x128xf32, #tpu.memory_space<vmem>>, vector<64x128xf32>
    %cst = arith.constant dense<0.000000e+00> : vector<32x128xf32>
    %2 = tpu.matmul %0, %1, %cst {dimension_numbers = #tpu.dot_dimension_numbers<[1], [0], [0], [1], [0, 0, 1, 1], [], []>} : vector<32x64xf32>, vector<64x128xf32>, vector<32x128xf32> -> vector<32x128xf32>
    %c0_3 = arith.constant 0 : index
    %c0_4 = arith.constant 0 : index
    %3 = vector.load %arg2[%c0_3, %c0_4] : memref<32x128xf32, #tpu.memory_space<vmem>>, vector<32x128xf32>
    tpu.vector_store %arg2[%c0_3, %c0_4], %2 {strides = array<i32>} : memref<32x128xf32, #tpu.memory_space<vmem>>, vector<32x128xf32>,
    return
  }
}

module attributes {stable_mosaic.version = 11 : i64} {
  func.func @_series_decomp_kernel(%arg0: memref<2x20x64xf32, #tpu.memory_space<vmem>>, %arg1: memref<2x16x64xf32, #tpu.memory_space<vmem>>, %arg2: memref<2x16x64xf32, #tpu.memory_space<vmem>>) attributes {dimension_semantics = [], scalar_prefetch = 0 : i64, scratch_operands = 0 : i64, tpu.core_type = #tpu.core_type<tc>} {
    %c0 = arith.constant 0 : index
    %c0_0 = arith.constant 0 : index
    %c0_1 = arith.constant 0 : index
    %0 = vector.load %arg0[%c0, %c0_0, %c0_1] : memref<2x20x64xf32, #tpu.memory_space<vmem>>, vector<2x20x64xf32>
    %1 = vector.extract_strided_slice %0 {offsets = [0, 0, 0], sizes = [2, 16, 64], strides = [1, 1, 1]} : vector<2x20x64xf32> to vector<2x16x64xf32>
    %2 = vector.extract_strided_slice %0 {offsets = [0, 1, 0], sizes = [2, 16, 64], strides = [1, 1, 1]} : vector<2x20x64xf32> to vector<2x16x64xf32>
    %3 = arith.addf %1, %2 : vector<2x16x64xf32>
    %4 = vector.extract_strided_slice %0 {offsets = [0, 2, 0], sizes = [2, 16, 64], strides = [1, 1, 1]} : vector<2x20x64xf32> to vector<2x16x64xf32>
    %5 = arith.addf %3, %4 : vector<2x16x64xf32>
    %6 = vector.extract_strided_slice %0 {offsets = [0, 3, 0], sizes = [2, 16, 64], strides = [1, 1, 1]} : vector<2x20x64xf32> to vector<2x16x64xf32>
    %7 = arith.addf %5, %6 : vector<2x16x64xf32>
    %8 = vector.extract_strided_slice %0 {offsets = [0, 4, 0], sizes = [2, 16, 64], strides = [1, 1, 1]} : vector<2x20x64xf32> to vector<2x16x64xf32>
    %9 = arith.addf %7, %8 : vector<2x16x64xf32>
    %cst = arith.constant 2.000000e-01 : f32
    %10 = vector.broadcast %cst : f32 to vector<2x16x64xf32>
    %11 = arith.mulf %9, %10 : vector<2x16x64xf32>
    %c0_2 = arith.constant 0 : index
    %c0_3 = arith.constant 0 : index
    %c0_4 = arith.constant 0 : index
    %12 = vector.load %arg2[%c0_2, %c0_3, %c0_4] : memref<2x16x64xf32, #tpu.memory_space<vmem>>, vector<2x16x64xf32>
    tpu.vector_store %arg2[%c0_2, %c0_3, %c0_4], %11 {strides = array<i32>} : memref<2x16x64xf32, #tpu.memory_space<vmem>>, vector<2x16x64xf32>,
    %13 = vector.extract_strided_slice %0 {offsets = [0, 2, 0], sizes = [2, 16, 64], strides = [1, 1, 1]} : vector<2x20x64xf32> to vector<2x16x64xf32>
    %14 = arith.subf %13, %11 : vector<2x16x64xf32>
    %c0_5 = arith.constant 0 : index
    %c0_6 = arith.constant 0 : index
    %c0_7 = arith.constant 0 : index
    %15 = vector.load %arg1[%c0_5, %c0_6, %c0_7] : memref<2x16x64xf32, #tpu.memory_space<vmem>>, vector<2x16x64xf32>
    tpu.vector_store %arg1[%c0_5, %c0_6, %c0_7], %14 {strides = array<i32>} : memref<2x16x64xf32, #tpu.memory_space<vmem>>, vector<2x16x64xf32>,
    return
  }
}

module attributes {stable_mosaic.version = 11 : i64} {
  func.func @_mm_add_kernel(%arg0: memref<32x128xf32, #tpu.memory_space<vmem>>, %arg1: memref<128x64xf32, #tpu.memory_space<vmem>>, %arg2: memref<32x64xf32, #tpu.memory_space<vmem>>, %arg3: memref<32x64xf32, #tpu.memory_space<vmem>>) attributes {dimension_semantics = [], scalar_prefetch = 0 : i64, scratch_operands = 0 : i64, tpu.core_type = #tpu.core_type<tc>} {
    %c0 = arith.constant 0 : index
    %c0_0 = arith.constant 0 : index
    %0 = vector.load %arg0[%c0, %c0_0] : memref<32x128xf32, #tpu.memory_space<vmem>>, vector<32x128xf32>
    %c0_1 = arith.constant 0 : index
    %c0_2 = arith.constant 0 : index
    %1 = vector.load %arg1[%c0_1, %c0_2] : memref<128x64xf32, #tpu.memory_space<vmem>>, vector<128x64xf32>
    %cst = arith.constant dense<0.000000e+00> : vector<32x64xf32>
    %2 = tpu.matmul %0, %1, %cst {dimension_numbers = #tpu.dot_dimension_numbers<[1], [0], [0], [1], [0, 0, 1, 1], [], []>} : vector<32x128xf32>, vector<128x64xf32>, vector<32x64xf32> -> vector<32x64xf32>
    %c0_3 = arith.constant 0 : index
    %c0_4 = arith.constant 0 : index
    %3 = vector.load %arg2[%c0_3, %c0_4] : memref<32x64xf32, #tpu.memory_space<vmem>>, vector<32x64xf32>
    %4 = arith.addf %2, %3 : vector<32x64xf32>
    %c0_5 = arith.constant 0 : index
    %c0_6 = arith.constant 0 : index
    %5 = vector.load %arg3[%c0_5, %c0_6] : memref<32x64xf32, #tpu.memory_space<vmem>>, vector<32x64xf32>
    tpu.vector_store %arg3[%c0_5, %c0_6], %4 {strides = array<i32>} : memref<32x64xf32, #tpu.memory_space<vmem>>, vector<32x64xf32>,
    return
  }
}

module attributes {stable_mosaic.version = 11 : i64} {
  func.func @_my_layernorm_kernel(%arg0: memref<2x16x64xf32, #tpu.memory_space<vmem>>, %arg1: memref<1x1x64xf32, #tpu.memory_space<vmem>>, %arg2: memref<1x1x64xf32, #tpu.memory_space<vmem>>, %arg3: memref<2x16x64xf32, #tpu.memory_space<vmem>>) attributes {dimension_semantics = [], scalar_prefetch = 0 : i64, scratch_operands = 0 : i64, tpu.core_type = #tpu.core_type<tc>} {
    %c0 = arith.constant 0 : index
    %c0_0 = arith.constant 0 : index
    %c0_1 = arith.constant 0 : index
    %0 = vector.load %arg0[%c0, %c0_0, %c0_1] : memref<2x16x64xf32, #tpu.memory_space<vmem>>, vector<2x16x64xf32>
    %cst = arith.constant dense<0.000000e+00> : vector<2x16xf32>
    %1 = vector.multi_reduction <add>, %0, %cst [2] : vector<2x16x64xf32> to vector<2x16xf32>
    %2 = vector.shape_cast %1 : vector<2x16xf32> to vector<2x16x1xf32>
    %cst_2 = arith.constant 6.400000e+01 : f32
    %3 = vector.broadcast %cst_2 : f32 to vector<2x16x1xf32>
    %4 = arith.divf %2, %3 : vector<2x16x1xf32>
    %5 = vector.broadcast %4 : vector<2x16x1xf32> to vector<2x16x64xf32>
    %6 = arith.subf %0, %5 : vector<2x16x64xf32>
    %7 = arith.mulf %6, %6 : vector<2x16x64xf32>
    %cst_3 = arith.constant dense<0.000000e+00> : vector<2x16xf32>
    %8 = vector.multi_reduction <add>, %7, %cst_3 [2] : vector<2x16x64xf32> to vector<2x16xf32>
    %9 = vector.shape_cast %8 : vector<2x16xf32> to vector<2x16x1xf32>
    %cst_4 = arith.constant 6.400000e+01 : f32
    %10 = vector.broadcast %cst_4 : f32 to vector<2x16x1xf32>
    %11 = arith.divf %9, %10 : vector<2x16x1xf32>
    %cst_5 = arith.constant 9.99999974E-6 : f32
    %12 = vector.broadcast %cst_5 : f32 to vector<2x16x1xf32>
    %13 = arith.addf %11, %12 : vector<2x16x1xf32>
    %14 = math.rsqrt %13 : vector<2x16x1xf32>
    %15 = vector.broadcast %14 : vector<2x16x1xf32> to vector<2x16x64xf32>
    %16 = arith.mulf %6, %15 : vector<2x16x64xf32>
    %c0_6 = arith.constant 0 : index
    %c0_7 = arith.constant 0 : index
    %c0_8 = arith.constant 0 : index
    %17 = vector.load %arg1[%c0_6, %c0_7, %c0_8] : memref<1x1x64xf32, #tpu.memory_space<vmem>>, vector<1x1x64xf32>
    %18 = vector.broadcast %17 : vector<1x1x64xf32> to vector<2x16x64xf32>
    %19 = arith.mulf %16, %18 : vector<2x16x64xf32>
    %c0_9 = arith.constant 0 : index
    %c0_10 = arith.constant 0 : index
    %c0_11 = arith.constant 0 : index
    %20 = vector.load %arg2[%c0_9, %c0_10, %c0_11] : memref<1x1x64xf32, #tpu.memory_space<vmem>>, vector<1x1x64xf32>
    %21 = vector.broadcast %20 : vector<1x1x64xf32> to vector<2x16x64xf32>
    %22 = arith.addf %19, %21 : vector<2x16x64xf32>
    %cst_12 = arith.constant dense<0.000000e+00> : vector<2x64xf32>
    %23 = vector.multi_reduction <add>, %22, %cst_12 [1] : vector<2x16x64xf32> to vector<2x64xf32>
    %24 = vector.shape_cast %23 : vector<2x64xf32> to vector<2x1x64xf32>
    %cst_13 = arith.constant 1.600000e+01 : f32
    %25 = vector.broadcast %cst_13 : f32 to vector<2x1x64xf32>
    %26 = arith.divf %24, %25 : vector<2x1x64xf32>
    %27 = vector.broadcast %26 : vector<2x1x64xf32> to vector<2x16x64xf32>
    %28 = arith.subf %22, %27 : vector<2x16x64xf32>
    %c0_14 = arith.constant 0 : index
    %c0_15 = arith.constant 0 : index
    %c0_16 = arith.constant 0 : index
    %29 = vector.load %arg3[%c0_14, %c0_15, %c0_16] : memref<2x16x64xf32, #tpu.memory_space<vmem>>, vector<2x16x64xf32>
    tpu.vector_store %arg3[%c0_14, %c0_15, %c0_16], %28 {strides = array<i32>} : memref<2x16x64xf32, #tpu.memory_space<vmem>>, vector<2x16x64xf32>,
    return
  }
}

module attributes {stable_mosaic.version = 11 : i64} {
  func.func @_series_decomp_kernel(%arg0: memref<2x20x4xf32, #tpu.memory_space<vmem>>, %arg1: memref<2x16x4xf32, #tpu.memory_space<vmem>>, %arg2: memref<2x16x4xf32, #tpu.memory_space<vmem>>) attributes {dimension_semantics = [], scalar_prefetch = 0 : i64, scratch_operands = 0 : i64, tpu.core_type = #tpu.core_type<tc>} {
    %c0 = arith.constant 0 : index
    %c0_0 = arith.constant 0 : index
    %c0_1 = arith.constant 0 : index
    %0 = vector.load %arg0[%c0, %c0_0, %c0_1] : memref<2x20x4xf32, #tpu.memory_space<vmem>>, vector<2x20x4xf32>
    %1 = vector.extract_strided_slice %0 {offsets = [0, 0, 0], sizes = [2, 16, 4], strides = [1, 1, 1]} : vector<2x20x4xf32> to vector<2x16x4xf32>
    %2 = vector.extract_strided_slice %0 {offsets = [0, 1, 0], sizes = [2, 16, 4], strides = [1, 1, 1]} : vector<2x20x4xf32> to vector<2x16x4xf32>
    %3 = arith.addf %1, %2 : vector<2x16x4xf32>
    %4 = vector.extract_strided_slice %0 {offsets = [0, 2, 0], sizes = [2, 16, 4], strides = [1, 1, 1]} : vector<2x20x4xf32> to vector<2x16x4xf32>
    %5 = arith.addf %3, %4 : vector<2x16x4xf32>
    %6 = vector.extract_strided_slice %0 {offsets = [0, 3, 0], sizes = [2, 16, 4], strides = [1, 1, 1]} : vector<2x20x4xf32> to vector<2x16x4xf32>
    %7 = arith.addf %5, %6 : vector<2x16x4xf32>
    %8 = vector.extract_strided_slice %0 {offsets = [0, 4, 0], sizes = [2, 16, 4], strides = [1, 1, 1]} : vector<2x20x4xf32> to vector<2x16x4xf32>
    %9 = arith.addf %7, %8 : vector<2x16x4xf32>
    %cst = arith.constant 2.000000e-01 : f32
    %10 = vector.broadcast %cst : f32 to vector<2x16x4xf32>
    %11 = arith.mulf %9, %10 : vector<2x16x4xf32>
    %c0_2 = arith.constant 0 : index
    %c0_3 = arith.constant 0 : index
    %c0_4 = arith.constant 0 : index
    %12 = vector.load %arg2[%c0_2, %c0_3, %c0_4] : memref<2x16x4xf32, #tpu.memory_space<vmem>>, vector<2x16x4xf32>
    tpu.vector_store %arg2[%c0_2, %c0_3, %c0_4], %11 {strides = array<i32>} : memref<2x16x4xf32, #tpu.memory_space<vmem>>, vector<2x16x4xf32>,
    %13 = vector.extract_strided_slice %0 {offsets = [0, 2, 0], sizes = [2, 16, 4], strides = [1, 1, 1]} : vector<2x20x4xf32> to vector<2x16x4xf32>
    %14 = arith.subf %13, %11 : vector<2x16x4xf32>
    %c0_5 = arith.constant 0 : index
    %c0_6 = arith.constant 0 : index
    %c0_7 = arith.constant 0 : index
    %15 = vector.load %arg1[%c0_5, %c0_6, %c0_7] : memref<2x16x4xf32, #tpu.memory_space<vmem>>, vector<2x16x4xf32>
    tpu.vector_store %arg1[%c0_5, %c0_6, %c0_7], %14 {strides = array<i32>} : memref<2x16x4xf32, #tpu.memory_space<vmem>>, vector<2x16x4xf32>,
    return
  }
}

module attributes {stable_mosaic.version = 11 : i64} {
  func.func @_mm_kernel(%arg0: memref<256x16xf32, #tpu.memory_space<vmem>>, %arg1: memref<16x16xf32, #tpu.memory_space<vmem>>, %arg2: memref<256x16xf32, #tpu.memory_space<vmem>>) attributes {dimension_semantics = [], scalar_prefetch = 0 : i64, scratch_operands = 0 : i64, tpu.core_type = #tpu.core_type<tc>} {
    %c0 = arith.constant 0 : index
    %c0_0 = arith.constant 0 : index
    %0 = vector.load %arg0[%c0, %c0_0] : memref<256x16xf32, #tpu.memory_space<vmem>>, vector<256x16xf32>
    %c0_1 = arith.constant 0 : index
    %c0_2 = arith.constant 0 : index
    %1 = vector.load %arg1[%c0_1, %c0_2] : memref<16x16xf32, #tpu.memory_space<vmem>>, vector<16x16xf32>
    %cst = arith.constant dense<0.000000e+00> : vector<256x16xf32>
    %2 = tpu.matmul %0, %1, %cst {dimension_numbers = #tpu.dot_dimension_numbers<[1], [0], [0], [1], [0, 0, 1, 1], [], []>} : vector<256x16xf32>, vector<16x16xf32>, vector<256x16xf32> -> vector<256x16xf32>
    %c0_3 = arith.constant 0 : index
    %c0_4 = arith.constant 0 : index
    %3 = vector.load %arg2[%c0_3, %c0_4] : memref<256x16xf32, #tpu.memory_space<vmem>>, vector<256x16xf32>
    tpu.vector_store %arg2[%c0_3, %c0_4], %2 {strides = array<i32>} : memref<256x16xf32, #tpu.memory_space<vmem>>, vector<256x16xf32>,
    return
  }
}

module attributes {stable_mosaic.version = 11 : i64} {
  func.func @_series_decomp_kernel(%arg0: memref<2x20x64xf32, #tpu.memory_space<vmem>>, %arg1: memref<2x16x64xf32, #tpu.memory_space<vmem>>, %arg2: memref<2x16x64xf32, #tpu.memory_space<vmem>>) attributes {dimension_semantics = [], scalar_prefetch = 0 : i64, scratch_operands = 0 : i64, tpu.core_type = #tpu.core_type<tc>} {
    %c0 = arith.constant 0 : index
    %c0_0 = arith.constant 0 : index
    %c0_1 = arith.constant 0 : index
    %0 = vector.load %arg0[%c0, %c0_0, %c0_1] : memref<2x20x64xf32, #tpu.memory_space<vmem>>, vector<2x20x64xf32>
    %1 = vector.extract_strided_slice %0 {offsets = [0, 0, 0], sizes = [2, 16, 64], strides = [1, 1, 1]} : vector<2x20x64xf32> to vector<2x16x64xf32>
    %2 = vector.extract_strided_slice %0 {offsets = [0, 1, 0], sizes = [2, 16, 64], strides = [1, 1, 1]} : vector<2x20x64xf32> to vector<2x16x64xf32>
    %3 = arith.addf %1, %2 : vector<2x16x64xf32>
    %4 = vector.extract_strided_slice %0 {offsets = [0, 2, 0], sizes = [2, 16, 64], strides = [1, 1, 1]} : vector<2x20x64xf32> to vector<2x16x64xf32>
    %5 = arith.addf %3, %4 : vector<2x16x64xf32>
    %6 = vector.extract_strided_slice %0 {offsets = [0, 3, 0], sizes = [2, 16, 64], strides = [1, 1, 1]} : vector<2x20x64xf32> to vector<2x16x64xf32>
    %7 = arith.addf %5, %6 : vector<2x16x64xf32>
    %8 = vector.extract_strided_slice %0 {offsets = [0, 4, 0], sizes = [2, 16, 64], strides = [1, 1, 1]} : vector<2x20x64xf32> to vector<2x16x64xf32>
    %9 = arith.addf %7, %8 : vector<2x16x64xf32>
    %cst = arith.constant 2.000000e-01 : f32
    %10 = vector.broadcast %cst : f32 to vector<2x16x64xf32>
    %11 = arith.mulf %9, %10 : vector<2x16x64xf32>
    %c0_2 = arith.constant 0 : index
    %c0_3 = arith.constant 0 : index
    %c0_4 = arith.constant 0 : index
    %12 = vector.load %arg2[%c0_2, %c0_3, %c0_4] : memref<2x16x64xf32, #tpu.memory_space<vmem>>, vector<2x16x64xf32>
    tpu.vector_store %arg2[%c0_2, %c0_3, %c0_4], %11 {strides = array<i32>} : memref<2x16x64xf32, #tpu.memory_space<vmem>>, vector<2x16x64xf32>,
    %13 = vector.extract_strided_slice %0 {offsets = [0, 2, 0], sizes = [2, 16, 64], strides = [1, 1, 1]} : vector<2x20x64xf32> to vector<2x16x64xf32>
    %14 = arith.subf %13, %11 : vector<2x16x64xf32>
    %c0_5 = arith.constant 0 : index
    %c0_6 = arith.constant 0 : index
    %c0_7 = arith.constant 0 : index
    %15 = vector.load %arg1[%c0_5, %c0_6, %c0_7] : memref<2x16x64xf32, #tpu.memory_space<vmem>>, vector<2x16x64xf32>
    tpu.vector_store %arg1[%c0_5, %c0_6, %c0_7], %14 {strides = array<i32>} : memref<2x16x64xf32, #tpu.memory_space<vmem>>, vector<2x16x64xf32>,
    return
  }
}

module attributes {stable_mosaic.version = 11 : i64} {
  func.func @_mm_kernel(%arg0: memref<128x16xf32, #tpu.memory_space<vmem>>, %arg1: memref<16x16xf32, #tpu.memory_space<vmem>>, %arg2: memref<128x16xf32, #tpu.memory_space<vmem>>) attributes {dimension_semantics = [], scalar_prefetch = 0 : i64, scratch_operands = 0 : i64, tpu.core_type = #tpu.core_type<tc>} {
    %c0 = arith.constant 0 : index
    %c0_0 = arith.constant 0 : index
    %0 = vector.load %arg0[%c0, %c0_0] : memref<128x16xf32, #tpu.memory_space<vmem>>, vector<128x16xf32>
    %c0_1 = arith.constant 0 : index
    %c0_2 = arith.constant 0 : index
    %1 = vector.load %arg1[%c0_1, %c0_2] : memref<16x16xf32, #tpu.memory_space<vmem>>, vector<16x16xf32>
    %cst = arith.constant dense<0.000000e+00> : vector<128x16xf32>
    %2 = tpu.matmul %0, %1, %cst {dimension_numbers = #tpu.dot_dimension_numbers<[1], [0], [0], [1], [0, 0, 1, 1], [], []>} : vector<128x16xf32>, vector<16x16xf32>, vector<128x16xf32> -> vector<128x16xf32>
    %c0_3 = arith.constant 0 : index
    %c0_4 = arith.constant 0 : index
    %3 = vector.load %arg2[%c0_3, %c0_4] : memref<128x16xf32, #tpu.memory_space<vmem>>, vector<128x16xf32>
    tpu.vector_store %arg2[%c0_3, %c0_4], %2 {strides = array<i32>} : memref<128x16xf32, #tpu.memory_space<vmem>>, vector<128x16xf32>,
    return
  }
}

module attributes {stable_mosaic.version = 11 : i64} {
  func.func @_mm_kernel(%arg0: memref<32x192xf32, #tpu.memory_space<vmem>>, %arg1: memref<192x4xf32, #tpu.memory_space<vmem>>, %arg2: memref<32x4xf32, #tpu.memory_space<vmem>>) attributes {dimension_semantics = [], scalar_prefetch = 0 : i64, scratch_operands = 0 : i64, tpu.core_type = #tpu.core_type<tc>} {
    %c0 = arith.constant 0 : index
    %c0_0 = arith.constant 0 : index
    %0 = vector.load %arg0[%c0, %c0_0] : memref<32x192xf32, #tpu.memory_space<vmem>>, vector<32x192xf32>
    %c0_1 = arith.constant 0 : index
    %c0_2 = arith.constant 0 : index
    %1 = vector.load %arg1[%c0_1, %c0_2] : memref<192x4xf32, #tpu.memory_space<vmem>>, vector<192x4xf32>
    %cst = arith.constant dense<0.000000e+00> : vector<32x4xf32>
    %2 = tpu.matmul %0, %1, %cst {dimension_numbers = #tpu.dot_dimension_numbers<[1], [0], [0], [1], [0, 0, 1, 1], [], []>} : vector<32x192xf32>, vector<192x4xf32>, vector<32x4xf32> -> vector<32x4xf32>
    %c0_3 = arith.constant 0 : index
    %c0_4 = arith.constant 0 : index
    %3 = vector.load %arg2[%c0_3, %c0_4] : memref<32x4xf32, #tpu.memory_space<vmem>>, vector<32x4xf32>
    tpu.vector_store %arg2[%c0_3, %c0_4], %2 {strides = array<i32>} : memref<32x4xf32, #tpu.memory_space<vmem>>, vector<32x4xf32>,
    return
  }
}

module attributes {stable_mosaic.version = 11 : i64} {
  func.func @_mm_bias_kernel(%arg0: memref<32x64xf32, #tpu.memory_space<vmem>>, %arg1: memref<64x4xf32, #tpu.memory_space<vmem>>, %arg2: memref<1x4xf32, #tpu.memory_space<vmem>>, %arg3: memref<32x4xf32, #tpu.memory_space<vmem>>) attributes {dimension_semantics = [], scalar_prefetch = 0 : i64, scratch_operands = 0 : i64, tpu.core_type = #tpu.core_type<tc>} {
    %c0 = arith.constant 0 : index
    %c0_0 = arith.constant 0 : index
    %0 = vector.load %arg0[%c0, %c0_0] : memref<32x64xf32, #tpu.memory_space<vmem>>, vector<32x64xf32>
    %c0_1 = arith.constant 0 : index
    %c0_2 = arith.constant 0 : index
    %1 = vector.load %arg1[%c0_1, %c0_2] : memref<64x4xf32, #tpu.memory_space<vmem>>, vector<64x4xf32>
    %cst = arith.constant dense<0.000000e+00> : vector<32x4xf32>
    %2 = tpu.matmul %0, %1, %cst {dimension_numbers = #tpu.dot_dimension_numbers<[1], [0], [0], [1], [0, 0, 1, 1], [], []>} : vector<32x64xf32>, vector<64x4xf32>, vector<32x4xf32> -> vector<32x4xf32>
    %c0_3 = arith.constant 0 : index
    %c0_4 = arith.constant 0 : index
    %3 = vector.load %arg2[%c0_3, %c0_4] : memref<1x4xf32, #tpu.memory_space<vmem>>, vector<1x4xf32>
    %4 = vector.broadcast %3 : vector<1x4xf32> to vector<32x4xf32>
    %5 = arith.addf %2, %4 : vector<32x4xf32>
    %c0_5 = arith.constant 0 : index
    %c0_6 = arith.constant 0 : index
    %6 = vector.load %arg3[%c0_5, %c0_6] : memref<32x4xf32, #tpu.memory_space<vmem>>, vector<32x4xf32>
    tpu.vector_store %arg3[%c0_5, %c0_6], %5 {strides = array<i32>} : memref<32x4xf32, #tpu.memory_space<vmem>>, vector<32x4xf32>,
    return
  }
}

</mosaic_0001>

<llo_original>
// kernel: fedformer_forecast.37
$region0: #{fedformer_forecast.37}
  #allocation0 [shape = 'u32[]', space=smem, size = 0x4, offset = 0x4, fixed_abs, tag = 'smem constant byte address 0x4 - core index']
  #allocation1 [shape = 'u32[144,128]{1,0:T(1,128)}', space=vmem, size = 0x12000, scoped, tag = 'internal scratch']
  %s0 = inlined_call_operand.vmem [shape: f32[32,64], index: 0, kind: input, shape index: {}]
  %s1 = inlined_call_operand.vmem [shape: f32[64,64], index: 1, kind: input, shape index: {}]
  %s2 = inlined_call_operand.vmem [shape: f32[1,64], index: 2, kind: input, shape index: {}]
  %s3 = inlined_call_operand.vmem [shape: f32[32,64], index: 3, kind: output, shape index: {}]
  %s4 = sld [smem:[#allocation0]]
  $region22: #{fedformer_forecast.37} parent=0
    _
  %s6 = ssub.s32 1, %s4
  %s7 = scalar_select 0, %s6, %s4
  // Predicated region
  $region2: #{fedformer_forecast.37} parent=0 // pred_check
    _
  $region3: #{fedformer_forecast.37} parent=0 // pred_check_branch
    %9 = sbr.rel (0) target = $region5
  $region4: #{fedformer_forecast.37} parent=0 // pred_region
    _
  $region5: #{fedformer_forecast.37} parent=0 // pred_fallthru
    _
  // Predicated region
  $region6: #{fedformer_forecast.37} parent=0 // pred_check
    _
  $region7: #{fedformer_forecast.37} parent=0 // pred_check_branch
    %11 = sbr.rel (0) target = $region9
  $region8: #{fedformer_forecast.37} parent=0 // pred_region
    _
  $region9: #{fedformer_forecast.37} parent=0 // pred_fallthru
    _
  // Predicated region
  $region10: #{fedformer_forecast.37} parent=0 // pred_check
    _
  $region11: #{fedformer_forecast.37} parent=0 // pred_check_branch
    %13 = sbr.rel (0) target = $region13
  $region12: #{fedformer_forecast.37} parent=0 // pred_region
    _
  $region13: #{fedformer_forecast.37} parent=0 // pred_fallthru
    _
  %v14 = vld [vmem:[%s0] sm:$0xff]
  %v15 = vld [vmem:[%s0 + $0x8] sm:$0xff]
  %v16 = vld [vmem:[%s0 + $0x10] sm:$0xff]
  %v17 = vld [vmem:[%s0 + $0x18] sm:$0xff]
  %v18 = vld [vmem:[%s1] sm:$0xff]
  %v19 = vld [vmem:[%s1 + $0x8] sm:$0xff]
  %v20 = vld [vmem:[%s1 + $0x10] sm:$0xff]
  %v21 = vld [vmem:[%s1 + $0x18] sm:$0xff]
  %v22 = vld [vmem:[%s1 + $0x20] sm:$0xff]
  %v23 = vld [vmem:[%s1 + $0x28] sm:$0xff]
  %v24 = vld [vmem:[%s1 + $0x30] sm:$0xff]
  %v25 = vld [vmem:[%s1 + $0x38] sm:$0xff]
  %v26 = vld [vmem:[%s2] sm:$0x1]
  %v28 = vlaneseq
  %v29 = vshrl.u32 %v28, 7
  %v30 = vsub.s32 0, %v29
  %v31 = vrot.slane %v26, %v30
  %vm33 = vcmask 523264
  %v35 = vsel %vm33, %v14, 0
  %v38 = vsel %vm33, %v15, 0
  %v41 = vsel %vm33, %v16, 0
  %v44 = vsel %vm33, %v17, 0
  %46 = vmatprep.subr.mxu0 0.0
  %47 = vmatpush1.msra.mxu0 0.0
  %48 = vmatprep.subr.mxu0 0.0
  %49 = vmatpush1.msra.mxu0 0.0
  %50 = vmatprep.subr.mxu0 0.0
  %51 = vmatpush1.msra.mxu0 0.0
  %52 = vmatprep.subr.mxu0 0.0
  %53 = vmatpush1.msra.mxu0 0.0
  %54 = vmatprep.subr.mxu0 0.0
  %55 = vmatpush1.msra.mxu0 0.0
  %56 = vmatprep.subr.mxu0 0.0
  %57 = vmatpush1.msra.mxu0 0.0
  %58 = vmatprep.subr.mxu0 0.0
  %59 = vmatpush1.msra.mxu0 0.0
  %60 = vmatprep.subr.mxu0 0.0
  %61 = vmatpush1.msra.mxu0 0.0
  %62 = vmatprep.subr.mxu0 0.0
  %63 = vmatpush1.msra.mxu0 %v25
  %64 = vmatprep.subr.mxu0 0.0
  %65 = vmatpush1.msra.mxu0 %v24
  %66 = vmatprep.subr.mxu0 0.0
  %67 = vmatpush1.msra.mxu0 %v23
  %68 = vmatprep.subr.mxu0 0.0
  %69 = vmatpush1.msra.mxu0 %v22
  %70 = vmatprep.subr.mxu0 0.0
  %71 = vmatpush1.msra.mxu0 %v21
  %72 = vmatprep.subr.mxu0 0.0
  %73 = vmatpush1.msra.mxu0 %v20
  %74 = vmatprep.subr.mxu0 0.0
  %75 = vmatpush1.msra.mxu0 %v19
  %76 = vmatprep.subr.mxu0 0.0
  %77 = vmatpush1.msra.mxu0 %v18
  %78 = vmatprep.subr.mxu0 0.0
  %79 = vmatpush2.msra.mxu0 0.0
  %80 = vmatprep.subr.mxu0 0.0
  %81 = vmatpush2.msra.mxu0 0.0
  %82 = vmatprep.subr.mxu0 0.0
  %83 = vmatpush2.msra.mxu0 0.0
  %84 = vmatprep.subr.mxu0 0.0
  %85 = vmatpush2.msra.mxu0 0.0
  %86 = vmatprep.subr.mxu0 0.0
  %87 = vmatpush2.msra.mxu0 0.0
  %88 = vmatprep.subr.mxu0 0.0
  %89 = vmatpush2.msra.mxu0 0.0
  %90 = vmatprep.subr.mxu0 0.0
  %91 = vmatpush2.msra.mxu0 0.0
  %92 = vmatprep.subr.mxu0 0.0
  %93 = vmatpush2.msra.mxu0 0.0
  %94 = vmatprep.subr.mxu0 0.0
  %95 = vmatpush2.msra.mxu0 0.0
  %96 = vmatprep.subr.mxu0 0.0
  %97 = vmatpush2.msra.mxu0 0.0
  %98 = vmatprep.subr.mxu0 0.0
  %99 = vmatpush2.msra.mxu0 0.0
  %100 = vmatprep.subr.mxu0 0.0
  %101 = vmatpush2.msra.mxu0 0.0
  %102 = vmatprep.subr.mxu0 0.0
  %103 = vmatpush2.msra.mxu0 0.0
  %104 = vmatprep.subr.mxu0 0.0
  %105 = vmatpush2.msra.mxu0 0.0
  %106 = vmatprep.subr.mxu0 0.0
  %107 = vmatpush2.msra.mxu0 0.0
  %108 = vmatprep.subr.mxu0 0.0
  %109 = vmatpush2.msra.mxu0 0.0
  %110 = vmatprep.mubr.f32.mxu0 0.0
  %111 = vmatmul.mubr.f32.gmra.mxu0 %v35
  %v112 = vpop.f32.mrf.mxu0
  %v113 = vadd.f32 %v31, %v112
  %v114 = vpop.f32.mrf.mxu0
  %115 = vmatprep.mubr.f32.mxu0 0.0
  %116 = vmatmul.mubr.f32.gmra.mxu0 %v38
  %v117 = vpop.f32.mrf.mxu0
  %v118 = vadd.f32 %v31, %v117
  %v119 = vpop.f32.mrf.mxu0
  %120 = vmatprep.mubr.f32.mxu0 0.0
  %121 = vmatmul.mubr.f32.gmra.mxu0 %v41
  %v122 = vpop.f32.mrf.mxu0
  %v123 = vadd.f32 %v31, %v122
  %v124 = vpop.f32.mrf.mxu0
  %125 = vmatprep.mubr.f32.mxu0 0.0
  %126 = vmatmul.mubr.f32.gmra.mxu0 %v44
  %v127 = vpop.f32.mrf.mxu0
  %v128 = vadd.f32 %v31, %v127
  %v129 = vpop.f32.mrf.mxu0
  %130 = vdwg.mxu0
  %131 = vst.msk [vmem:[%s3] sm:$0xff] %vm33, %v113
  %132 = vst.msk [vmem:[%s3 + $0x8] sm:$0xff] %vm33, %v118
  %133 = vst.msk [vmem:[%s3 + $0x10] sm:$0xff] %vm33, %v123
  %134 = vst.msk [vmem:[%s3 + $0x18] sm:$0xff] %vm33, %v128
  // Predicated region
  $region14: #{fedformer_forecast.37} parent=0 // pred_check
    _
  $region15: #{fedformer_forecast.37} parent=0 // pred_check_branch
    %136 = sbr.rel (0) target = $region17
  $region16: #{fedformer_forecast.37} parent=0 // pred_region
    _
  $region17: #{fedformer_forecast.37} parent=0 // pred_fallthru
    _
  // Predicated region
  $region18: #{fedformer_forecast.37} parent=0 // pred_check
    _
  $region19: #{fedformer_forecast.37} parent=0 // pred_check_branch
    %138 = sbr.rel (0) target = $region21
  $region20: #{fedformer_forecast.37} parent=0 // pred_region
    _
  $region21: #{fedformer_forecast.37} parent=0 // pred_fallthru
    _

// kernel: fedformer_forecast.35
$region0: #{fedformer_forecast.35}
  #allocation0 [shape = 'u32[]', space=smem, size = 0x4, offset = 0x4, fixed_abs, tag = 'smem constant byte address 0x4 - core index']
  #allocation1 [shape = 'u32[144,128]{1,0:T(1,128)}', space=vmem, size = 0x12000, scoped, tag = 'internal scratch']
  %s0 = inlined_call_operand.vmem [shape: f32[32,16], index: 0, kind: input, shape index: {}]
  %s1 = inlined_call_operand.vmem [shape: f32[16,64], index: 1, kind: input, shape index: {}]
  %s2 = inlined_call_operand.vmem [shape: f32[32,64], index: 2, kind: input, shape index: {}]
  %s3 = inlined_call_operand.vmem [shape: f32[32,64], index: 3, kind: output, shape index: {}]
  %s4 = sld [smem:[#allocation0]]
  $region22: #{fedformer_forecast.35} parent=0
    _
  %s6 = ssub.s32 1, %s4
  %s7 = scalar_select 0, %s6, %s4
  // Predicated region
  $region2: #{fedformer_forecast.35} parent=0 // pred_check
    _
  $region3: #{fedformer_forecast.35} parent=0 // pred_check_branch
    %9 = sbr.rel (0) target = $region5
  $region4: #{fedformer_forecast.35} parent=0 // pred_region
    _
  $region5: #{fedformer_forecast.35} parent=0 // pred_fallthru
    _
  // Predicated region
  $region6: #{fedformer_forecast.35} parent=0 // pred_check
    _
  $region7: #{fedformer_forecast.35} parent=0 // pred_check_branch
    %11 = sbr.rel (0) target = $region9
  $region8: #{fedformer_forecast.35} parent=0 // pred_region
    _
  $region9: #{fedformer_forecast.35} parent=0 // pred_fallthru
    _
  // Predicated region
  $region10: #{fedformer_forecast.35} parent=0 // pred_check
    _
  $region11: #{fedformer_forecast.35} parent=0 // pred_check_branch
    %13 = sbr.rel (0) target = $region13
  $region12: #{fedformer_forecast.35} parent=0 // pred_region
    _
  $region13: #{fedformer_forecast.35} parent=0 // pred_fallthru
    _
  %v14 = vld [vmem:[%s0] sm:$0xff]
  %v15 = vld [vmem:[%s0 + $0x8] sm:$0xff]
  %v16 = vld [vmem:[%s0 + $0x10] sm:$0xff]
  %v17 = vld [vmem:[%s0 + $0x18] sm:$0xff]
  %v18 = vld [vmem:[%s1] sm:$0xff]
  %v19 = vld [vmem:[%s1 + $0x8] sm:$0xff]
  %v20 = vld [vmem:[%s2] sm:$0xff]
  %v21 = vld [vmem:[%s2 + $0x8] sm:$0xff]
  %v22 = vld [vmem:[%s2 + $0x10] sm:$0xff]
  %v23 = vld [vmem:[%s2 + $0x18] sm:$0xff]
  %vm24 = vcmask 130048
  %v26 = vsel %vm24, %v14, 0
  %v29 = vsel %vm24, %v15, 0
  %v32 = vsel %vm24, %v16, 0
  %v35 = vsel %vm24, %v17, 0
  %37 = vmatprep.subr.mxu0 0.0
  %38 = vmatpush1.msra.mxu0 0.0
  %39 = vmatprep.subr.mxu0 0.0
  %40 = vmatpush1.msra.mxu0 0.0
  %41 = vmatprep.subr.mxu0 0.0
  %42 = vmatpush1.msra.mxu0 0.0
  %43 = vmatprep.subr.mxu0 0.0
  %44 = vmatpush1.msra.mxu0 0.0
  %45 = vmatprep.subr.mxu0 0.0
  %46 = vmatpush1.msra.mxu0 0.0
  %47 = vmatprep.subr.mxu0 0.0
  %48 = vmatpush1.msra.mxu0 0.0
  %49 = vmatprep.subr.mxu0 0.0
  %50 = vmatpush1.msra.mxu0 0.0
  %51 = vmatprep.subr.mxu0 0.0
  %52 = vmatpush1.msra.mxu0 0.0
  %53 = vmatprep.subr.mxu0 0.0
  %54 = vmatpush1.msra.mxu0 0.0
  %55 = vmatprep.subr.mxu0 0.0
  %56 = vmatpush1.msra.mxu0 0.0
  %57 = vmatprep.subr.mxu0 0.0
  %58 = vmatpush1.msra.mxu0 0.0
  %59 = vmatprep.subr.mxu0 0.0
  %60 = vmatpush1.msra.mxu0 0.0
  %61 = vmatprep.subr.mxu0 0.0
  %62 = vmatpush1.msra.mxu0 0.0
  %63 = vmatprep.subr.mxu0 0.0
  %64 = vmatpush1.msra.mxu0 0.0
  %65 = vmatprep.subr.mxu0 0.0
  %66 = vmatpush1.msra.mxu0 %v19
  %67 = vmatprep.subr.mxu0 0.0
  %68 = vmatpush1.msra.mxu0 %v18
  %69 = vmatprep.subr.mxu0 0.0
  %70 = vmatpush2.msra.mxu0 0.0
  %71 = vmatprep.subr.mxu0 0.0
  %72 = vmatpush2.msra.mxu0 0.0
  %73 = vmatprep.subr.mxu0 0.0
  %74 = vmatpush2.msra.mxu0 0.0
  %75 = vmatprep.subr.mxu0 0.0
  %76 = vmatpush2.msra.mxu0 0.0
  %77 = vmatprep.subr.mxu0 0.0
  %78 = vmatpush2.msra.mxu0 0.0
  %79 = vmatprep.subr.mxu0 0.0
  %80 = vmatpush2.msra.mxu0 0.0
  %81 = vmatprep.subr.mxu0 0.0
  %82 = vmatpush2.msra.mxu0 0.0
  %83 = vmatprep.subr.mxu0 0.0
  %84 = vmatpush2.msra.mxu0 0.0
  %85 = vmatprep.subr.mxu0 0.0
  %86 = vmatpush2.msra.mxu0 0.0
  %87 = vmatprep.subr.mxu0 0.0
  %88 = vmatpush2.msra.mxu0 0.0
  %89 = vmatprep.subr.mxu0 0.0
  %90 = vmatpush2.msra.mxu0 0.0
  %91 = vmatprep.subr.mxu0 0.0
  %92 = vmatpush2.msra.mxu0 0.0
  %93 = vmatprep.subr.mxu0 0.0
  %94 = vmatpush2.msra.mxu0 0.0
  %95 = vmatprep.subr.mxu0 0.0
  %96 = vmatpush2.msra.mxu0 0.0
  %97 = vmatprep.subr.mxu0 0.0
  %98 = vmatpush2.msra.mxu0 0.0
  %99 = vmatprep.subr.mxu0 0.0
  %100 = vmatpush2.msra.mxu0 0.0
  %101 = vmatprep.mubr.f32.mxu0 0.0
  %102 = vmatmul.mubr.f32.gmra.mxu0 %v26
  %v103 = vpop.f32.mrf.mxu0
  %v104 = vadd.f32 %v20, %v103
  %v105 = vpop.f32.mrf.mxu0
  %106 = vmatprep.mubr.f32.mxu0 0.0
  %107 = vmatmul.mubr.f32.gmra.mxu0 %v29
  %v108 = vpop.f32.mrf.mxu0
  %v109 = vadd.f32 %v21, %v108
  %v110 = vpop.f32.mrf.mxu0
  %111 = vmatprep.mubr.f32.mxu0 0.0
  %112 = vmatmul.mubr.f32.gmra.mxu0 %v32
  %v113 = vpop.f32.mrf.mxu0
  %v114 = vadd.f32 %v22, %v113
  %v115 = vpop.f32.mrf.mxu0
  %116 = vmatprep.mubr.f32.mxu0 0.0
  %117 = vmatmul.mubr.f32.gmra.mxu0 %v35
  %v118 = vpop.f32.mrf.mxu0
  %v119 = vadd.f32 %v23, %v118
  %v120 = vpop.f32.mrf.mxu0
  %121 = vdwg.mxu0
  %vm122 = vcmask 523264
  %123 = vst.msk [vmem:[%s3] sm:$0xff] %vm122, %v104
  %124 = vst.msk [vmem:[%s3 + $0x8] sm:$0xff] %vm122, %v109
  %125 = vst.msk [vmem:[%s3 + $0x10] sm:$0xff] %vm122, %v114
  %126 = vst.msk [vmem:[%s3 + $0x18] sm:$0xff] %vm122, %v119
  // Predicated region
  $region14: #{fedformer_forecast.35} parent=0 // pred_check
    _
  $region15: #{fedformer_forecast.35} parent=0 // pred_check_branch
    %128 = sbr.rel (0) target = $region17
  $region16: #{fedformer_forecast.35} parent=0 // pred_region
    _
  $region17: #{fedformer_forecast.35} parent=0 // pred_fallthru
    _
  // Predicated region
  $region18: #{fedformer_forecast.35} parent=0 // pred_check
    _
  $region19: #{fedformer_forecast.35} parent=0 // pred_check_branch
    %130 = sbr.rel (0) target = $region21
  $region20: #{fedformer_forecast.35} parent=0 // pred_region
    _
  $region21: #{fedformer_forecast.35} parent=0 // pred_fallthru
    _

// kernel: fedformer_forecast.38
$region0: #{fedformer_forecast.38}
  #allocation0 [shape = 'u32[]', space=smem, size = 0x4, offset = 0x4, fixed_abs, tag = 'smem constant byte address 0x4 - core index']
  #allocation1 [shape = 'u32[144,128]{1,0:T(1,128)}', space=vmem, size = 0x12000, scoped, tag = 'internal scratch']
  %s0 = inlined_call_operand.vmem [shape: f32[2,4,2,128], index: 0, kind: input, shape index: {}]
  %s1 = inlined_call_operand.vmem [shape: f32[2,4,128,128], index: 1, kind: input, shape index: {}]
  %s2 = inlined_call_operand.vmem [shape: f32[2,4,2,128], index: 2, kind: output, shape index: {}]
  %s3 = sld [smem:[#allocation0]]
  $region41: #{fedformer_forecast.38} parent=0
    _
  %s5 = ssub.s32 1, %s3
  %s6 = scalar_select 0, %s5, %s3
  loop: start=0, step=1, limit=4
  $region2: #{fedformer_forecast.38} parent=0 // loop_pre_header
    _
  $region3: #{fedformer_forecast.38} parent=0 // loop_header
    %s8 = sphi 0, %s12
    %p9 = scmp.ge.s32.totalorder %s8, 4
    %s18 = sphi 0, %s20
    %s21 = sphi 0, %s18
    %s22 = sphi 0, %s21
    %s38 = sphi 0, %s22
    %s44 = sphi 0, %s46
    %s47 = sphi 0, %s44
    %s48 = sphi 0, %s47
    %s64 = sphi 0, %s48
    %s70 = sphi 0, %s72
    %s73 = sphi 0, %s70
    %s74 = sphi 0, %s73
    %s90 = sphi 0, %s74
  $region4: #{fedformer_forecast.38} parent=0 // loop_header_branch
    %11 = sbr.rel (%p9) target = $region8
  $region5: #{fedformer_forecast.38} parent=0 // loop_body
    %s13 = ssub.s32 %s8, 1
    %s14 = ssub.s32 %s8, 2
    %s15 = sadd.s32 %s8, 1
    %s16 = ssub.s32 %s8, %s15
    %p17 = scmp.eq.s32.totalorder %s16, 0
    %s19 = sadd.s32 %s18, 1
    %s20 = scalar_select %p17, %s18, %s19
    %p23 = pneg %p17
    %p24 = scmp.eq.s32.totalorder %s8, 1
    %p25 = por %p23, %p24
    %p26 = scmp.ne.s32.totalorder %s18, %s21
    %p27 = scmp.eq.s32.totalorder %s8, 0
    %p28 = por %p26, %p27
    %p29 = scmp.ne.s32.totalorder %s18, %s21
    %p30 = scmp.eq.s32.totalorder %s13, 1
    %p31 = por %p29, %p30
    %p32 = scmp.ne.s32.totalorder %s21, %s22
    %p33 = scmp.eq.s32.totalorder %s13, 0
    %p34 = por %p32, %p33
    %p35 = scmp.ne.s32.totalorder %s21, %s22
    %p36 = scmp.eq.s32.totalorder %s14, 1
    %p37 = por %p35, %p36
    %p39 = scmp.ne.s32.totalorder %s22, %s38
    %p40 = scmp.eq.s32.totalorder %s14, 0
    %p41 = por %p39, %p40
    %s42 = ssub.s32 %s8, %s15
    %p43 = scmp.eq.s32.totalorder %s42, 0
    %s45 = sadd.s32 %s44, 1
    %s46 = scalar_select %p43, %s44, %s45
    %p49 = pneg %p43
    %p50 = scmp.eq.s32.totalorder %s8, 1
    %p51 = por %p49, %p50
    %p52 = scmp.ne.s32.totalorder %s44, %s47
    %p53 = scmp.eq.s32.totalorder %s8, 0
    %p54 = por %p52, %p53
    %p55 = scmp.ne.s32.totalorder %s44, %s47
    %p56 = scmp.eq.s32.totalorder %s13, 1
    %p57 = por %p55, %p56
    %p58 = scmp.ne.s32.totalorder %s47, %s48
    %p59 = scmp.eq.s32.totalorder %s13, 0
    %p60 = por %p58, %p59
    %p61 = scmp.ne.s32.totalorder %s47, %s48
    %p62 = scmp.eq.s32.totalorder %s14, 1
    %p63 = por %p61, %p62
    %p65 = scmp.ne.s32.totalorder %s48, %s64
    %p66 = scmp.eq.s32.totalorder %s14, 0
    %p67 = por %p65, %p66
    %s68 = ssub.s32 %s8, %s15
    %p69 = scmp.eq.s32.totalorder %s68, 0
    %s71 = sadd.s32 %s70, 1
    %s72 = scalar_select %p69, %s70, %s71
    %p75 = pneg %p69
    %p76 = scmp.eq.s32.totalorder %s8, 1
    %p77 = por %p75, %p76
    %p78 = scmp.ne.s32.totalorder %s70, %s73
    %p79 = scmp.eq.s32.totalorder %s8, 0
    %p80 = por %p78, %p79
    %p81 = scmp.ne.s32.totalorder %s70, %s73
    %p82 = scmp.eq.s32.totalorder %s13, 1
    %p83 = por %p81, %p82
    %p84 = scmp.ne.s32.totalorder %s73, %s74
    %p85 = scmp.eq.s32.totalorder %s13, 0
    %p86 = por %p84, %p85
    %p87 = scmp.ne.s32.totalorder %s73, %s74
    %p88 = scmp.eq.s32.totalorder %s14, 1
    %p89 = por %p87, %p88
    %p91 = scmp.ne.s32.totalorder %s74, %s90
    %p92 = scmp.eq.s32.totalorder %s14, 0
    %p93 = por %p91, %p92
    %p94 = scmp.le.s32.totalorder 1, %s8
    %p95 = scmp.lt.s32.totalorder %s8, 3
    %p96 = pnand %p94, %p95
    %p97 = pneg %p96
    // Predicated region
    $region9: #{fedformer_forecast.38} parent=5 // pred_check
      _
    $region10: #{fedformer_forecast.38} parent=5 // pred_check_branch
      %99 = sbr.rel (%p96) target = $region12
    $region11: #{fedformer_forecast.38} parent=5 // pred_region
      %s100 = ssub.s32 %s8, 1
    $region12: #{fedformer_forecast.38} parent=5 // pred_fallthru
      _
    %p101 = scmp.lt.s32.totalorder %s8, 2
    // Predicated region
    $region13: #{fedformer_forecast.38} parent=5 // pred_check
      %p102 = pneg %p101
    $region14: #{fedformer_forecast.38} parent=5 // pred_check_branch
      %104 = sbr.rel (%p102) target = $region16
    $region15: #{fedformer_forecast.38} parent=5 // pred_region
      // Predicated region
      $region17: #{fedformer_forecast.38} parent=15 // pred_check
        %p105 = pneg %p28
      $region18: #{fedformer_forecast.38} parent=15 // pred_check_branch
        %107 = sbr.rel (%p105) target = $region20
      $region19: #{fedformer_forecast.38} parent=15 // pred_region
        %p108 = scmp.lt.s32.totalorder %s8, 1
        %s109 = scalar_select %p108, %s8, 1
        %s110 = smul.addr %s109, 4
        %s111 = smul.addr %s110, 2
        %s112 = scalar_lea.vmem %s0, %s111
      $region20: #{fedformer_forecast.38} parent=15 // pred_fallthru
        _
      // Predicated region
      $region21: #{fedformer_forecast.38} parent=15 // pred_check
        %p113 = pneg %p54
      $region22: #{fedformer_forecast.38} parent=15 // pred_check_branch
        %115 = sbr.rel (%p113) target = $region24
      $region23: #{fedformer_forecast.38} parent=15 // pred_region
        %p116 = scmp.lt.s32.totalorder %s8, 1
        %s117 = scalar_select %p116, %s8, 1
        %s118 = smul.addr %s117, 64
        %s119 = smul.addr %s118, 8
        %s120 = scalar_lea.vmem %s1, %s119
      $region24: #{fedformer_forecast.38} parent=15 // pred_fallthru
        _
    $region16: #{fedformer_forecast.38} parent=5 // pred_fallthru
      _
    %p121 = scmp.le.s32.totalorder 1, %s8
    %p122 = scmp.lt.s32.totalorder %s8, 3
    %p123 = pnand %p121, %p122
    %p124 = pneg %p123
    // Predicated region
    $region25: #{fedformer_forecast.38} parent=5 // pred_check
      _
    $region26: #{fedformer_forecast.38} parent=5 // pred_check_branch
      %126 = sbr.rel (%p123) target = $region28
    $region27: #{fedformer_forecast.38} parent=5 // pred_region
      %s127 = ssub.s32 %s8, 1
      %p128 = scmp.lt.s32.totalorder %s13, 1
      %s129 = scalar_select %p128, %s13, 1
      %s130 = smul.addr %s129, 4
      %s131 = smul.addr %s130, 2
      %s132 = scalar_lea.vmem %s0, %s131
      %p133 = pneg %p34
      %p134 = pneg %p31
      %p135 = scmp.lt.s32.totalorder %s13, 1
      %s136 = scalar_select %p135, %s13, 1
      %s137 = smul.addr %s136, 64
      %s138 = smul.addr %s137, 8
      %s139 = scalar_lea.vmem %s1, %s138
      %p140 = pneg %p60
      %p141 = pneg %p57
      %p142 = pneg %p86
      %p143 = pneg %p83
      %p144 = scmp.lt.s32.totalorder %s13, 1
      %s145 = scalar_select %p144, %s13, 1
      %s146 = smul.addr %s145, 4
      %s147 = smul.addr %s146, 2
      %s148 = scalar_lea.vmem %s2, %s147
      %p149 = scmp.lt.s32.totalorder %s13, 1
      %s150 = scalar_select %p149, %s13, 1
      %s151 = smul.addr %s150, 4
      %s152 = smul.addr %s151, 2
      %s153 = scalar_lea.vmem %s0, %s152
      %p154 = scmp.lt.s32.totalorder %s13, 1
      %s155 = scalar_select %p154, %s13, 1
      %s156 = smul.addr %s155, 64
      %s157 = smul.addr %s156, 8
      %s158 = scalar_lea.vmem %s1, %s157
      %p159 = scmp.lt.s32.totalorder %s13, 1
      %s160 = scalar_select %p159, %s13, 1
      %s161 = smul.addr %s160, 4
      %s162 = smul.addr %s161, 2
      %s163 = scalar_lea.vmem %s2, %s162
      %v164 = vld [vmem:[%s153] sm:$0x3]
      %v165 = vld [vmem:[%s153 + $0x2] sm:$0x3]
      %v166 = vld [vmem:[%s153 + $0x4] sm:$0x3]
      %v167 = vld [vmem:[%s153 + $0x6] sm:$0x3]
      %v168 = vld [vmem:[%s158] sm:$0xff]
      %v169 = vld [vmem:[%s158 + $0x8] sm:$0xff]
      %v170 = vld [vmem:[%s158 + $0x10] sm:$0xff]
      %v171 = vld [vmem:[%s158 + $0x18] sm:$0xff]
      %v172 = vld [vmem:[%s158 + $0x20] sm:$0xff]
      %v173 = vld [vmem:[%s158 + $0x28] sm:$0xff]
      %v174 = vld [vmem:[%s158 + $0x30] sm:$0xff]
      %v175 = vld [vmem:[%s158 + $0x38] sm:$0xff]
      %v176 = vld [vmem:[%s158 + $0x40] sm:$0xff]
      %v177 = vld [vmem:[%s158 + $0x48] sm:$0xff]
      %v178 = vld [vmem:[%s158 + $0x50] sm:$0xff]
      %v179 = vld [vmem:[%s158 + $0x58] sm:$0xff]
      %v180 = vld [vmem:[%s158 + $0x60] sm:$0xff]
      %v181 = vld [vmem:[%s158 + $0x68] sm:$0xff]
      %v182 = vld [vmem:[%s158 + $0x70] sm:$0xff]
      %v183 = vld [vmem:[%s158 + $0x78] sm:$0xff]
      %v184 = vld [vmem:[%s158 + $0x80] sm:$0xff]
      %v185 = vld [vmem:[%s158 + $0x88] sm:$0xff]
      %v186 = vld [vmem:[%s158 + $0x90] sm:$0xff]
      %v187 = vld [vmem:[%s158 + $0x98] sm:$0xff]
      %v188 = vld [vmem:[%s158 + $0xa0] sm:$0xff]
      %v189 = vld [vmem:[%s158 + $0xa8] sm:$0xff]
      %v190 = vld [vmem:[%s158 + $0xb0] sm:$0xff]
      %v191 = vld [vmem:[%s158 + $0xb8] sm:$0xff]
      %v192 = vld [vmem:[%s158 + $0xc0] sm:$0xff]
      %v193 = vld [vmem:[%s158 + $0xc8] sm:$0xff]
      %v194 = vld [vmem:[%s158 + $0xd0] sm:$0xff]
      %v195 = vld [vmem:[%s158 + $0xd8] sm:$0xff]
      %v196 = vld [vmem:[%s158 + $0xe0] sm:$0xff]
      %v197 = vld [vmem:[%s158 + $0xe8] sm:$0xff]
      %v198 = vld [vmem:[%s158 + $0xf0] sm:$0xff]
      %v199 = vld [vmem:[%s158 + $0xf8] sm:$0xff]
      %v200 = vld [vmem:[%s158 + $0x100] sm:$0xff]
      %v201 = vld [vmem:[%s158 + $0x108] sm:$0xff]
      %v202 = vld [vmem:[%s158 + $0x110] sm:$0xff]
      %v203 = vld [vmem:[%s158 + $0x118] sm:$0xff]
      %v204 = vld [vmem:[%s158 + $0x120] sm:$0xff]
      %v205 = vld [vmem:[%s158 + $0x128] sm:$0xff]
      %v206 = vld [vmem:[%s158 + $0x130] sm:$0xff]
      %v207 = vld [vmem:[%s158 + $0x138] sm:$0xff]
      %v208 = vld [vmem:[%s158 + $0x140] sm:$0xff]
      %v209 = vld [vmem:[%s158 + $0x148] sm:$0xff]
      %v210 = vld [vmem:[%s158 + $0x150] sm:$0xff]
      %v211 = vld [vmem:[%s158 + $0x158] sm:$0xff]
      %v212 = vld [vmem:[%s158 + $0x160] sm:$0xff]
      %v213 = vld [vmem:[%s158 + $0x168] sm:$0xff]
      %v214 = vld [vmem:[%s158 + $0x170] sm:$0xff]
      %v215 = vld [vmem:[%s158 + $0x178] sm:$0xff]
      %v216 = vld [vmem:[%s158 + $0x180] sm:$0xff]
      %v217 = vld [vmem:[%s158 + $0x188] sm:$0xff]
      %v218 = vld [vmem:[%s158 + $0x190] sm:$0xff]
      %v219 = vld [vmem:[%s158 + $0x198] sm:$0xff]
      %v220 = vld [vmem:[%s158 + $0x1a0] sm:$0xff]
      %v221 = vld [vmem:[%s158 + $0x1a8] sm:$0xff]
      %v222 = vld [vmem:[%s158 + $0x1b0] sm:$0xff]
      %v223 = vld [vmem:[%s158 + $0x1b8] sm:$0xff]
      %v224 = vld [vmem:[%s158 + $0x1c0] sm:$0xff]
      %v225 = vld [vmem:[%s158 + $0x1c8] sm:$0xff]
      %v226 = vld [vmem:[%s158 + $0x1d0] sm:$0xff]
      %v227 = vld [vmem:[%s158 + $0x1d8] sm:$0xff]
      %v228 = vld [vmem:[%s158 + $0x1e0] sm:$0xff]
      %v229 = vld [vmem:[%s158 + $0x1e8] sm:$0xff]
      %v230 = vld [vmem:[%s158 + $0x1f0] sm:$0xff]
      %v231 = vld [vmem:[%s158 + $0x1f8] sm:$0xff]
      %232 = vmatprep.subr.mxu0 0.0
      %233 = vmatpush1.msra.mxu0 %v183
      %234 = vmatprep.subr.mxu0 0.0
      %235 = vmatpush1.msra.mxu0 %v182
      %236 = vmatprep.subr.mxu0 0.0
      %237 = vmatpush1.msra.mxu0 %v181
      %238 = vmatprep.subr.mxu0 0.0
      %239 = vmatpush1.msra.mxu0 %v180
      %240 = vmatprep.subr.mxu0 0.0
      %241 = vmatpush1.msra.mxu0 %v179
      %242 = vmatprep.subr.mxu0 0.0
      %243 = vmatpush1.msra.mxu0 %v178
      %244 = vmatprep.subr.mxu0 0.0
      %245 = vmatpush1.msra.mxu0 %v177
      %246 = vmatprep.subr.mxu0 0.0
      %247 = vmatpush1.msra.mxu0 %v176
      %248 = vmatprep.subr.mxu0 0.0
      %249 = vmatpush1.msra.mxu0 %v175
      %250 = vmatprep.subr.mxu0 0.0
      %251 = vmatpush1.msra.mxu0 %v174
      %252 = vmatprep.subr.mxu0 0.0
      %253 = vmatpush1.msra.mxu0 %v173
      %254 = vmatprep.subr.mxu0 0.0
      %255 = vmatpush1.msra.mxu0 %v172
      %256 = vmatprep.subr.mxu0 0.0
      %257 = vmatpush1.msra.mxu0 %v171
      %258 = vmatprep.subr.mxu0 0.0
      %259 = vmatpush1.msra.mxu0 %v170
      %260 = vmatprep.subr.mxu0 0.0
      %261 = vmatpush1.msra.mxu0 %v169
      %262 = vmatprep.subr.mxu0 0.0
      %263 = vmatpush1.msra.mxu0 %v168
      %264 = vmatprep.subr.mxu0 0.0
      %265 = vmatpush2.msra.mxu0 0.0
      %266 = vmatprep.subr.mxu0 0.0
      %267 = vmatpush2.msra.mxu0 0.0
      %268 = vmatprep.subr.mxu0 0.0
      %269 = vmatpush2.msra.mxu0 0.0
      %270 = vmatprep.subr.mxu0 0.0
      %271 = vmatpush2.msra.mxu0 0.0
      %272 = vmatprep.subr.mxu0 0.0
      %273 = vmatpush2.msra.mxu0 0.0
      %274 = vmatprep.subr.mxu0 0.0
      %275 = vmatpush2.msra.mxu0 0.0
      %276 = vmatprep.subr.mxu0 0.0
      %277 = vmatpush2.msra.mxu0 0.0
      %278 = vmatprep.subr.mxu0 0.0
      %279 = vmatpush2.msra.mxu0 0.0
      %280 = vmatprep.subr.mxu0 0.0
      %281 = vmatpush2.msra.mxu0 0.0
      %282 = vmatprep.subr.mxu0 0.0
      %283 = vmatpush2.msra.mxu0 0.0
      %284 = vmatprep.subr.mxu0 0.0
      %285 = vmatpush2.msra.mxu0 0.0
      %286 = vmatprep.subr.mxu0 0.0
      %287 = vmatpush2.msra.mxu0 0.0
      %288 = vmatprep.subr.mxu0 0.0
      %289 = vmatpush2.msra.mxu0 0.0
      %290 = vmatprep.subr.mxu0 0.0
      %291 = vmatpush2.msra.mxu0 0.0
      %292 = vmatprep.subr.mxu0 0.0
      %293 = vmatpush2.msra.mxu0 0.0
      %294 = vmatprep.subr.mxu0 0.0
      %295 = vmatpush2.msra.mxu0 0.0
      %296 = vmatprep.mubr.f32.mxu0 0.0
      %297 = vmatmul.mubr.f32.gmra.mxu0 %v164
      %v298 = vpop.f32.mrf.mxu0
      %v299 = vadd.f32 0.0, %v298
      %v300 = vpop.f32.mrf.mxu0
      %301 = vdwg.mxu0
      %302 = vmatprep.subr.mxu0 0.0
      %303 = vmatpush1.msra.mxu0 %v199
      %304 = vmatprep.subr.mxu0 0.0
      %305 = vmatpush1.msra.mxu0 %v198
      %306 = vmatprep.subr.mxu0 0.0
      %307 = vmatpush1.msra.mxu0 %v197
      %308 = vmatprep.subr.mxu0 0.0
      %309 = vmatpush1.msra.mxu0 %v196
      %310 = vmatprep.subr.mxu0 0.0
      %311 = vmatpush1.msra.mxu0 %v195
      %312 = vmatprep.subr.mxu0 0.0
      %313 = vmatpush1.msra.mxu0 %v194
      %314 = vmatprep.subr.mxu0 0.0
      %315 = vmatpush1.msra.mxu0 %v193
      %316 = vmatprep.subr.mxu0 0.0
      %317 = vmatpush1.msra.mxu0 %v192
      %318 = vmatprep.subr.mxu0 0.0
      %319 = vmatpush1.msra.mxu0 %v191
      %320 = vmatprep.subr.mxu0 0.0
      %321 = vmatpush1.msra.mxu0 %v190
      %322 = vmatprep.subr.mxu0 0.0
      %323 = vmatpush1.msra.mxu0 %v189
      %324 = vmatprep.subr.mxu0 0.0
      %325 = vmatpush1.msra.mxu0 %v188
      %326 = vmatprep.subr.mxu0 0.0
      %327 = vmatpush1.msra.mxu0 %v187
      %328 = vmatprep.subr.mxu0 0.0
      %329 = vmatpush1.msra.mxu0 %v186
      %330 = vmatprep.subr.mxu0 0.0
      %331 = vmatpush1.msra.mxu0 %v185
      %332 = vmatprep.subr.mxu0 0.0
      %333 = vmatpush1.msra.mxu0 %v184
      %334 = vmatprep.subr.mxu0 0.0
      %335 = vmatpush2.msra.mxu0 0.0
      %336 = vmatprep.subr.mxu0 0.0
      %337 = vmatpush2.msra.mxu0 0.0
      %338 = vmatprep.subr.mxu0 0.0
      %339 = vmatpush2.msra.mxu0 0.0
      %340 = vmatprep.subr.mxu0 0.0
      %341 = vmatpush2.msra.mxu0 0.0
      %342 = vmatprep.subr.mxu0 0.0
      %343 = vmatpush2.msra.mxu0 0.0
      %344 = vmatprep.subr.mxu0 0.0
      %345 = vmatpush2.msra.mxu0 0.0
      %346 = vmatprep.subr.mxu0 0.0
      %347 = vmatpush2.msra.mxu0 0.0
      %348 = vmatprep.subr.mxu0 0.0
      %349 = vmatpush2.msra.mxu0 0.0
      %350 = vmatprep.subr.mxu0 0.0
      %351 = vmatpush2.msra.mxu0 0.0
      %352 = vmatprep.subr.mxu0 0.0
      %353 = vmatpush2.msra.mxu0 0.0
      %354 = vmatprep.subr.mxu0 0.0
      %355 = vmatpush2.msra.mxu0 0.0
      %356 = vmatprep.subr.mxu0 0.0
      %357 = vmatpush2.msra.mxu0 0.0
      %358 = vmatprep.subr.mxu0 0.0
      %359 = vmatpush2.msra.mxu0 0.0
      %360 = vmatprep.subr.mxu0 0.0
      %361 = vmatpush2.msra.mxu0 0.0
      %362 = vmatprep.subr.mxu0 0.0
      %363 = vmatpush2.msra.mxu0 0.0
      %364 = vmatprep.subr.mxu0 0.0
      %365 = vmatpush2.msra.mxu0 0.0
      %366 = vmatprep.mubr.f32.mxu0 0.0
      %367 = vmatmul.mubr.f32.gmra.mxu0 %v165
      %v368 = vpop.f32.mrf.mxu0
      %v369 = vadd.f32 0.0, %v368
      %v370 = vpop.f32.mrf.mxu0
      %371 = vdwg.mxu0
      %372 = vmatprep.subr.mxu0 0.0
      %373 = vmatpush1.msra.mxu0 %v215
      %374 = vmatprep.subr.mxu0 0.0
      %375 = vmatpush1.msra.mxu0 %v214
      %376 = vmatprep.subr.mxu0 0.0
      %377 = vmatpush1.msra.mxu0 %v213
      %378 = vmatprep.subr.mxu0 0.0
      %379 = vmatpush1.msra.mxu0 %v212
      %380 = vmatprep.subr.mxu0 0.0
      %381 = vmatpush1.msra.mxu0 %v211
      %382 = vmatprep.subr.mxu0 0.0
      %383 = vmatpush1.msra.mxu0 %v210
      %384 = vmatprep.subr.mxu0 0.0
      %385 = vmatpush1.msra.mxu0 %v209
      %386 = vmatprep.subr.mxu0 0.0
      %387 = vmatpush1.msra.mxu0 %v208
      %388 = vmatprep.subr.mxu0 0.0
      %389 = vmatpush1.msra.mxu0 %v207
      %390 = vmatprep.subr.mxu0 0.0
      %391 = vmatpush1.msra.mxu0 %v206
      %392 = vmatprep.subr.mxu0 0.0
      %393 = vmatpush1.msra.mxu0 %v205
      %394 = vmatprep.subr.mxu0 0.0
      %395 = vmatpush1.msra.mxu0 %v204
      %396 = vmatprep.subr.mxu0 0.0
      %397 = vmatpush1.msra.mxu0 %v203
      %398 = vmatprep.subr.mxu0 0.0
      %399 = vmatpush1.msra.mxu0 %v202
      %400 = vmatprep.subr.mxu0 0.0
      %401 = vmatpush1.msra.mxu0 %v201
      %402 = vmatprep.subr.mxu0 0.0
      %403 = vmatpush1.msra.mxu0 %v200
      %404 = vmatprep.subr.mxu0 0.0
      %405 = vmatpush2.msra.mxu0 0.0
      %406 = vmatprep.subr.mxu0 0.0
      %407 = vmatpush2.msra.mxu0 0.0
      %408 = vmatprep.subr.mxu0 0.0
      %409 = vmatpush2.msra.mxu0 0.0
      %410 = vmatprep.subr.mxu0 0.0
      %411 = vmatpush2.msra.mxu0 0.0
      %412 = vmatprep.subr.mxu0 0.0
      %413 = vmatpush2.msra.mxu0 0.0
      %414 = vmatprep.subr.mxu0 0.0
      %415 = vmatpush2.msra.mxu0 0.0
      %416 = vmatprep.subr.mxu0 0.0
      %417 = vmatpush2.msra.mxu0 0.0
      %418 = vmatprep.subr.mxu0 0.0
      %419 = vmatpush2.msra.mxu0 0.0
      %420 = vmatprep.subr.mxu0 0.0
      %421 = vmatpush2.msra.mxu0 0.0
      %422 = vmatprep.subr.mxu0 0.0
      %423 = vmatpush2.msra.mxu0 0.0
      %424 = vmatprep.subr.mxu0 0.0
      %425 = vmatpush2.msra.mxu0 0.0
      %426 = vmatprep.subr.mxu0 0.0
      %427 = vmatpush2.msra.mxu0 0.0
      %428 = vmatprep.subr.mxu0 0.0
      %429 = vmatpush2.msra.mxu0 0.0
      %430 = vmatprep.subr.mxu0 0.0
      %431 = vmatpush2.msra.mxu0 0.0
      %432 = vmatprep.subr.mxu0 0.0
      %433 = vmatpush2.msra.mxu0 0.0
      %434 = vmatprep.subr.mxu0 0.0
      %435 = vmatpush2.msra.mxu0 0.0
      %436 = vmatprep.mubr.f32.mxu0 0.0
      %437 = vmatmul.mubr.f32.gmra.mxu0 %v166
      %v438 = vpop.f32.mrf.mxu0
      %v439 = vadd.f32 0.0, %v438
      %v440 = vpop.f32.mrf.mxu0
      %441 = vdwg.mxu0
      %442 = vmatprep.subr.mxu0 0.0
      %443 = vmatpush1.msra.mxu0 %v231
      %444 = vmatprep.subr.mxu0 0.0
      %445 = vmatpush1.msra.mxu0 %v230
      %446 = vmatprep.subr.mxu0 0.0
      %447 = vmatpush1.msra.mxu0 %v229
      %448 = vmatprep.subr.mxu0 0.0
      %449 = vmatpush1.msra.mxu0 %v228
      %450 = vmatprep.subr.mxu0 0.0
      %451 = vmatpush1.msra.mxu0 %v227
      %452 = vmatprep.subr.mxu0 0.0
      %453 = vmatpush1.msra.mxu0 %v226
      %454 = vmatprep.subr.mxu0 0.0
      %455 = vmatpush1.msra.mxu0 %v225
      %456 = vmatprep.subr.mxu0 0.0
      %457 = vmatpush1.msra.mxu0 %v224
      %458 = vmatprep.subr.mxu0 0.0
      %459 = vmatpush1.msra.mxu0 %v223
      %460 = vmatprep.subr.mxu0 0.0
      %461 = vmatpush1.msra.mxu0 %v222
      %462 = vmatprep.subr.mxu0 0.0
      %463 = vmatpush1.msra.mxu0 %v221
      %464 = vmatprep.subr.mxu0 0.0
      %465 = vmatpush1.msra.mxu0 %v220
      %466 = vmatprep.subr.mxu0 0.0
      %467 = vmatpush1.msra.mxu0 %v219
      %468 = vmatprep.subr.mxu0 0.0
      %469 = vmatpush1.msra.mxu0 %v218
      %470 = vmatprep.subr.mxu0 0.0
      %471 = vmatpush1.msra.mxu0 %v217
      %472 = vmatprep.subr.mxu0 0.0
      %473 = vmatpush1.msra.mxu0 %v216
      %474 = vmatprep.subr.mxu0 0.0
      %475 = vmatpush2.msra.mxu0 0.0
      %476 = vmatprep.subr.mxu0 0.0
      %477 = vmatpush2.msra.mxu0 0.0
      %478 = vmatprep.subr.mxu0 0.0
      %479 = vmatpush2.msra.mxu0 0.0
      %480 = vmatprep.subr.mxu0 0.0
      %481 = vmatpush2.msra.mxu0 0.0
      %482 = vmatprep.subr.mxu0 0.0
      %483 = vmatpush2.msra.mxu0 0.0
      %484 = vmatprep.subr.mxu0 0.0
      %485 = vmatpush2.msra.mxu0 0.0
      %486 = vmatprep.subr.mxu0 0.0
      %487 = vmatpush2.msra.mxu0 0.0
      %488 = vmatprep.subr.mxu0 0.0
      %489 = vmatpush2.msra.mxu0 0.0
      %490 = vmatprep.subr.mxu0 0.0
      %491 = vmatpush2.msra.mxu0 0.0
      %492 = vmatprep.subr.mxu0 0.0
      %493 = vmatpush2.msra.mxu0 0.0
      %494 = vmatprep.subr.mxu0 0.0
      %495 = vmatpush2.msra.mxu0 0.0
      %496 = vmatprep.subr.mxu0 0.0
      %497 = vmatpush2.msra.mxu0 0.0
      %498 = vmatprep.subr.mxu0 0.0
      %499 = vmatpush2.msra.mxu0 0.0
      %500 = vmatprep.subr.mxu0 0.0
      %501 = vmatpush2.msra.mxu0 0.0
      %502 = vmatprep.subr.mxu0 0.0
      %503 = vmatpush2.msra.mxu0 0.0
      %504 = vmatprep.subr.mxu0 0.0
      %505 = vmatpush2.msra.mxu0 0.0
      %506 = vmatprep.mubr.f32.mxu0 0.0
      %507 = vmatmul.mubr.f32.gmra.mxu0 %v167
      %v508 = vpop.f32.mrf.mxu0
      %v509 = vadd.f32 0.0, %v508
      %v510 = vpop.f32.mrf.mxu0
      %511 = vdwg.mxu0
      %512 = vst [vmem:[%s163] sm:$0x3] %v299
      %513 = vst [vmem:[%s163 + $0x2] sm:$0x3] %v369
      %514 = vst [vmem:[%s163 + $0x4] sm:$0x3] %v439
      %515 = vst [vmem:[%s163 + $0x6] sm:$0x3] %v509
      %p516 = scmp.lt.s32.totalorder %s13, 1
      %s517 = scalar_select %p516, %s13, 1
      %s518 = smul.addr %s517, 4
      %s519 = smul.addr %s518, 2
      %s520 = scalar_lea.vmem %s2, %s519
      // Predicated region
      $region29: #{fedformer_forecast.38} parent=27 // pred_check
        %p521 = pneg %p83
      $region30: #{fedformer_forecast.38} parent=27 // pred_check_branch
        %523 = sbr.rel (%p521) target = $region32
      $region31: #{fedformer_forecast.38} parent=27 // pred_region
        _
      $region32: #{fedformer_forecast.38} parent=27 // pred_fallthru
        _
    $region28: #{fedformer_forecast.38} parent=5 // pred_fallthru
      _
    %p524 = scmp.le.s32.totalorder 2, %s8
    // Predicated region
    $region33: #{fedformer_forecast.38} parent=5 // pred_check
      %p525 = pneg %p524
    $region34: #{fedformer_forecast.38} parent=5 // pred_check_branch
      %527 = sbr.rel (%p525) target = $region36
    $region35: #{fedformer_forecast.38} parent=5 // pred_region
      %s528 = ssub.s32 %s8, 2
      // Predicated region
      $region37: #{fedformer_forecast.38} parent=35 // pred_check
        %p529 = pneg %p89
      $region38: #{fedformer_forecast.38} parent=35 // pred_check_branch
        %531 = sbr.rel (%p529) target = $region40
      $region39: #{fedformer_forecast.38} parent=35 // pred_region
        %p532 = scmp.lt.s32.totalorder %s14, 1
        %s533 = scalar_select %p532, %s14, 1
        %s534 = smul.addr %s533, 4
        %s535 = smul.addr %s534, 2
        %s536 = scalar_lea.vmem %s2, %s535
      $region40: #{fedformer_forecast.38} parent=35 // pred_fallthru
        _
    $region36: #{fedformer_forecast.38} parent=5 // pred_fallthru
      _
  $region6: #{fedformer_forecast.38} parent=0 // loop_footer
    %s12 = sadd.s32 1, %s8
  $region7: #{fedformer_forecast.38} parent=0 // loop_footer_branch
    %7 = sbr.rel target = $region3
  $region8: #{fedformer_forecast.38} parent=0 // loop_exit
    _

// kernel: fedformer_forecast.39
$region0: #{fedformer_forecast.39}
  #allocation0 [shape = 'u32[]', space=smem, size = 0x4, offset = 0x4, fixed_abs, tag = 'smem constant byte address 0x4 - core index']
  #allocation1 [shape = 'u32[144,128]{1,0:T(1,128)}', space=vmem, size = 0x12000, scoped, tag = 'internal scratch']
  %s0 = inlined_call_operand.vmem [shape: f32[32,64], index: 0, kind: input, shape index: {}]
  %s1 = inlined_call_operand.vmem [shape: f32[64,64], index: 1, kind: input, shape index: {}]
  %s2 = inlined_call_operand.vmem [shape: f32[1,64], index: 2, kind: input, shape index: {}]
  %s3 = inlined_call_operand.vmem [shape: f32[32,64], index: 3, kind: input, shape index: {}]
  %s4 = inlined_call_operand.vmem [shape: f32[32,64], index: 4, kind: output, shape index: {}]
  %s5 = sld [smem:[#allocation0]]
  $region26: #{fedformer_forecast.39} parent=0
    _
  %s7 = ssub.s32 1, %s5
  %s8 = scalar_select 0, %s7, %s5
  // Predicated region
  $region2: #{fedformer_forecast.39} parent=0 // pred_check
    _
  $region3: #{fedformer_forecast.39} parent=0 // pred_check_branch
    %10 = sbr.rel (0) target = $region5
  $region4: #{fedformer_forecast.39} parent=0 // pred_region
    _
  $region5: #{fedformer_forecast.39} parent=0 // pred_fallthru
    _
  // Predicated region
  $region6: #{fedformer_forecast.39} parent=0 // pred_check
    _
  $region7: #{fedformer_forecast.39} parent=0 // pred_check_branch
    %12 = sbr.rel (0) target = $region9
  $region8: #{fedformer_forecast.39} parent=0 // pred_region
    _
  $region9: #{fedformer_forecast.39} parent=0 // pred_fallthru
    _
  // Predicated region
  $region10: #{fedformer_forecast.39} parent=0 // pred_check
    _
  $region11: #{fedformer_forecast.39} parent=0 // pred_check_branch
    %14 = sbr.rel (0) target = $region13
  $region12: #{fedformer_forecast.39} parent=0 // pred_region
    _
  $region13: #{fedformer_forecast.39} parent=0 // pred_fallthru
    _
  // Predicated region
  $region14: #{fedformer_forecast.39} parent=0 // pred_check
    _
  $region15: #{fedformer_forecast.39} parent=0 // pred_check_branch
    %16 = sbr.rel (0) target = $region17
  $region16: #{fedformer_forecast.39} parent=0 // pred_region
    _
  $region17: #{fedformer_forecast.39} parent=0 // pred_fallthru
    _
  %v17 = vld [vmem:[%s0] sm:$0xff]
  %v18 = vld [vmem:[%s0 + $0x8] sm:$0xff]
  %v19 = vld [vmem:[%s0 + $0x10] sm:$0xff]
  %v20 = vld [vmem:[%s0 + $0x18] sm:$0xff]
  %v21 = vld [vmem:[%s1] sm:$0xff]
  %v22 = vld [vmem:[%s1 + $0x8] sm:$0xff]
  %v23 = vld [vmem:[%s1 + $0x10] sm:$0xff]
  %v24 = vld [vmem:[%s1 + $0x18] sm:$0xff]
  %v25 = vld [vmem:[%s1 + $0x20] sm:$0xff]
  %v26 = vld [vmem:[%s1 + $0x28] sm:$0xff]
  %v27 = vld [vmem:[%s1 + $0x30] sm:$0xff]
  %v28 = vld [vmem:[%s1 + $0x38] sm:$0xff]
  %v29 = vld [vmem:[%s2] sm:$0x1]
  %v31 = vlaneseq
  %v32 = vshrl.u32 %v31, 7
  %v33 = vsub.s32 0, %v32
  %v34 = vrot.slane %v29, %v33
  %vm36 = vcmask 523264
  %v38 = vsel %vm36, %v17, 0
  %v41 = vsel %vm36, %v18, 0
  %v44 = vsel %vm36, %v19, 0
  %v47 = vsel %vm36, %v20, 0
  %49 = vmatprep.subr.mxu0 0.0
  %50 = vmatpush1.msra.mxu0 0.0
  %51 = vmatprep.subr.mxu0 0.0
  %52 = vmatpush1.msra.mxu0 0.0
  %53 = vmatprep.subr.mxu0 0.0
  %54 = vmatpush1.msra.mxu0 0.0
  %55 = vmatprep.subr.mxu0 0.0
  %56 = vmatpush1.msra.mxu0 0.0
  %57 = vmatprep.subr.mxu0 0.0
  %58 = vmatpush1.msra.mxu0 0.0
  %59 = vmatprep.subr.mxu0 0.0
  %60 = vmatpush1.msra.mxu0 0.0
  %61 = vmatprep.subr.mxu0 0.0
  %62 = vmatpush1.msra.mxu0 0.0
  %63 = vmatprep.subr.mxu0 0.0
  %64 = vmatpush1.msra.mxu0 0.0
  %65 = vmatprep.subr.mxu0 0.0
  %66 = vmatpush1.msra.mxu0 %v28
  %67 = vmatprep.subr.mxu0 0.0
  %68 = vmatpush1.msra.mxu0 %v27
  %69 = vmatprep.subr.mxu0 0.0
  %70 = vmatpush1.msra.mxu0 %v26
  %71 = vmatprep.subr.mxu0 0.0
  %72 = vmatpush1.msra.mxu0 %v25
  %73 = vmatprep.subr.mxu0 0.0
  %74 = vmatpush1.msra.mxu0 %v24
  %75 = vmatprep.subr.mxu0 0.0
  %76 = vmatpush1.msra.mxu0 %v23
  %77 = vmatprep.subr.mxu0 0.0
  %78 = vmatpush1.msra.mxu0 %v22
  %79 = vmatprep.subr.mxu0 0.0
  %80 = vmatpush1.msra.mxu0 %v21
  %81 = vmatprep.subr.mxu0 0.0
  %82 = vmatpush2.msra.mxu0 0.0
  %83 = vmatprep.subr.mxu0 0.0
  %84 = vmatpush2.msra.mxu0 0.0
  %85 = vmatprep.subr.mxu0 0.0
  %86 = vmatpush2.msra.mxu0 0.0
  %87 = vmatprep.subr.mxu0 0.0
  %88 = vmatpush2.msra.mxu0 0.0
  %89 = vmatprep.subr.mxu0 0.0
  %90 = vmatpush2.msra.mxu0 0.0
  %91 = vmatprep.subr.mxu0 0.0
  %92 = vmatpush2.msra.mxu0 0.0
  %93 = vmatprep.subr.mxu0 0.0
  %94 = vmatpush2.msra.mxu0 0.0
  %95 = vmatprep.subr.mxu0 0.0
  %96 = vmatpush2.msra.mxu0 0.0
  %97 = vmatprep.subr.mxu0 0.0
  %98 = vmatpush2.msra.mxu0 0.0
  %99 = vmatprep.subr.mxu0 0.0
  %100 = vmatpush2.msra.mxu0 0.0
  %101 = vmatprep.subr.mxu0 0.0
  %102 = vmatpush2.msra.mxu0 0.0
  %103 = vmatprep.subr.mxu0 0.0
  %104 = vmatpush2.msra.mxu0 0.0
  %105 = vmatprep.subr.mxu0 0.0
  %106 = vmatpush2.msra.mxu0 0.0
  %107 = vmatprep.subr.mxu0 0.0
  %108 = vmatpush2.msra.mxu0 0.0
  %109 = vmatprep.subr.mxu0 0.0
  %110 = vmatpush2.msra.mxu0 0.0
  %111 = vmatprep.subr.mxu0 0.0
  %112 = vmatpush2.msra.mxu0 0.0
  %113 = vmatprep.mubr.f32.mxu0 0.0
  %114 = vmatmul.mubr.f32.gmra.mxu0 %v38
  %v115 = vpop.f32.mrf.mxu0
  %v116 = vadd.f32 %v34, %v115
  %v117 = vpop.f32.mrf.mxu0
  %118 = vmatprep.mubr.f32.mxu0 0.0
  %119 = vmatmul.mubr.f32.gmra.mxu0 %v41
  %v120 = vpop.f32.mrf.mxu0
  %v121 = vadd.f32 %v34, %v120
  %v122 = vpop.f32.mrf.mxu0
  %123 = vmatprep.mubr.f32.mxu0 0.0
  %124 = vmatmul.mubr.f32.gmra.mxu0 %v44
  %v125 = vpop.f32.mrf.mxu0
  %v126 = vadd.f32 %v34, %v125
  %v127 = vpop.f32.mrf.mxu0
  %128 = vmatprep.mubr.f32.mxu0 0.0
  %129 = vmatmul.mubr.f32.gmra.mxu0 %v47
  %v130 = vpop.f32.mrf.mxu0
  %v131 = vadd.f32 %v34, %v130
  %v132 = vpop.f32.mrf.mxu0
  %133 = vdwg.mxu0
  %v134 = vld [vmem:[%s3] sm:$0xff]
  %v135 = vld [vmem:[%s3 + $0x8] sm:$0xff]
  %v136 = vld [vmem:[%s3 + $0x10] sm:$0xff]
  %v137 = vld [vmem:[%s3 + $0x18] sm:$0xff]
  %v138 = vadd.f32 %v116, %v134
  %v139 = vadd.f32 %v121, %v135
  %v140 = vadd.f32 %v126, %v136
  %v141 = vadd.f32 %v131, %v137
  %142 = vst.msk [vmem:[%s4] sm:$0xff] %vm36, %v138
  %143 = vst.msk [vmem:[%s4 + $0x8] sm:$0xff] %vm36, %v139
  %144 = vst.msk [vmem:[%s4 + $0x10] sm:$0xff] %vm36, %v140
  %145 = vst.msk [vmem:[%s4 + $0x18] sm:$0xff] %vm36, %v141
  // Predicated region
  $region18: #{fedformer_forecast.39} parent=0 // pred_check
    _
  $region19: #{fedformer_forecast.39} parent=0 // pred_check_branch
    %147 = sbr.rel (0) target = $region21
  $region20: #{fedformer_forecast.39} parent=0 // pred_region
    _
  $region21: #{fedformer_forecast.39} parent=0 // pred_fallthru
    _
  // Predicated region
  $region22: #{fedformer_forecast.39} parent=0 // pred_check
    _
  $region23: #{fedformer_forecast.39} parent=0 // pred_check_branch
    %149 = sbr.rel (0) target = $region25
  $region24: #{fedformer_forecast.39} parent=0 // pred_region
    _
  $region25: #{fedformer_forecast.39} parent=0 // pred_fallthru
    _

// kernel: fedformer_forecast.41
$region0: #{fedformer_forecast.41}
  #allocation0 [shape = 'u32[]', space=smem, size = 0x4, offset = 0x4, fixed_abs, tag = 'smem constant byte address 0x4 - core index']
  #allocation1 [shape = 'u32[144,128]{1,0:T(1,128)}', space=vmem, size = 0x12000, scoped, tag = 'internal scratch']
  %s0 = inlined_call_operand.vmem [shape: f32[32,64], index: 0, kind: input, shape index: {}]
  %s1 = inlined_call_operand.vmem [shape: f32[64,128], index: 1, kind: input, shape index: {}]
  %s2 = inlined_call_operand.vmem [shape: f32[32,128], index: 2, kind: output, shape index: {}]
  %s3 = sld [smem:[#allocation0]]
  $region18: #{fedformer_forecast.41} parent=0
    _
  %s5 = ssub.s32 1, %s3
  %s6 = scalar_select 0, %s5, %s3
  // Predicated region
  $region2: #{fedformer_forecast.41} parent=0 // pred_check
    _
  $region3: #{fedformer_forecast.41} parent=0 // pred_check_branch
    %8 = sbr.rel (0) target = $region5
  $region4: #{fedformer_forecast.41} parent=0 // pred_region
    _
  $region5: #{fedformer_forecast.41} parent=0 // pred_fallthru
    _
  // Predicated region
  $region6: #{fedformer_forecast.41} parent=0 // pred_check
    _
  $region7: #{fedformer_forecast.41} parent=0 // pred_check_branch
    %10 = sbr.rel (0) target = $region9
  $region8: #{fedformer_forecast.41} parent=0 // pred_region
    _
  $region9: #{fedformer_forecast.41} parent=0 // pred_fallthru
    _
  %v11 = vld [vmem:[%s0] sm:$0xff]
  %v12 = vld [vmem:[%s0 + $0x8] sm:$0xff]
  %v13 = vld [vmem:[%s0 + $0x10] sm:$0xff]
  %v14 = vld [vmem:[%s0 + $0x18] sm:$0xff]
  %v15 = vld [vmem:[%s1] sm:$0xff]
  %v16 = vld [vmem:[%s1 + $0x8] sm:$0xff]
  %v17 = vld [vmem:[%s1 + $0x10] sm:$0xff]
  %v18 = vld [vmem:[%s1 + $0x18] sm:$0xff]
  %v19 = vld [vmem:[%s1 + $0x20] sm:$0xff]
  %v20 = vld [vmem:[%s1 + $0x28] sm:$0xff]
  %v21 = vld [vmem:[%s1 + $0x30] sm:$0xff]
  %v22 = vld [vmem:[%s1 + $0x38] sm:$0xff]
  %vm23 = vcmask 523264
  %v25 = vsel %vm23, %v11, 0
  %v28 = vsel %vm23, %v12, 0
  %v31 = vsel %vm23, %v13, 0
  %v34 = vsel %vm23, %v14, 0
  %36 = vmatprep.subr.mxu0 0.0
  %37 = vmatpush1.msra.mxu0 0.0
  %38 = vmatprep.subr.mxu0 0.0
  %39 = vmatpush1.msra.mxu0 0.0
  %40 = vmatprep.subr.mxu0 0.0
  %41 = vmatpush1.msra.mxu0 0.0
  %42 = vmatprep.subr.mxu0 0.0
  %43 = vmatpush1.msra.mxu0 0.0
  %44 = vmatprep.subr.mxu0 0.0
  %45 = vmatpush1.msra.mxu0 0.0
  %46 = vmatprep.subr.mxu0 0.0
  %47 = vmatpush1.msra.mxu0 0.0
  %48 = vmatprep.subr.mxu0 0.0
  %49 = vmatpush1.msra.mxu0 0.0
  %50 = vmatprep.subr.mxu0 0.0
  %51 = vmatpush1.msra.mxu0 0.0
  %52 = vmatprep.subr.mxu0 0.0
  %53 = vmatpush1.msra.mxu0 %v22
  %54 = vmatprep.subr.mxu0 0.0
  %55 = vmatpush1.msra.mxu0 %v21
  %56 = vmatprep.subr.mxu0 0.0
  %57 = vmatpush1.msra.mxu0 %v20
  %58 = vmatprep.subr.mxu0 0.0
  %59 = vmatpush1.msra.mxu0 %v19
  %60 = vmatprep.subr.mxu0 0.0
  %61 = vmatpush1.msra.mxu0 %v18
  %62 = vmatprep.subr.mxu0 0.0
  %63 = vmatpush1.msra.mxu0 %v17
  %64 = vmatprep.subr.mxu0 0.0
  %65 = vmatpush1.msra.mxu0 %v16
  %66 = vmatprep.subr.mxu0 0.0
  %67 = vmatpush1.msra.mxu0 %v15
  %68 = vmatprep.subr.mxu0 0.0
  %69 = vmatpush2.msra.mxu0 0.0
  %70 = vmatprep.subr.mxu0 0.0
  %71 = vmatpush2.msra.mxu0 0.0
  %72 = vmatprep.subr.mxu0 0.0
  %73 = vmatpush2.msra.mxu0 0.0
  %74 = vmatprep.subr.mxu0 0.0
  %75 = vmatpush2.msra.mxu0 0.0
  %76 = vmatprep.subr.mxu0 0.0
  %77 = vmatpush2.msra.mxu0 0.0
  %78 = vmatprep.subr.mxu0 0.0
  %79 = vmatpush2.msra.mxu0 0.0
  %80 = vmatprep.subr.mxu0 0.0
  %81 = vmatpush2.msra.mxu0 0.0
  %82 = vmatprep.subr.mxu0 0.0
  %83 = vmatpush2.msra.mxu0 0.0
  %84 = vmatprep.subr.mxu0 0.0
  %85 = vmatpush2.msra.mxu0 0.0
  %86 = vmatprep.subr.mxu0 0.0
  %87 = vmatpush2.msra.mxu0 0.0
  %88 = vmatprep.subr.mxu0 0.0
  %89 = vmatpush2.msra.mxu0 0.0
  %90 = vmatprep.subr.mxu0 0.0
  %91 = vmatpush2.msra.mxu0 0.0
  %92 = vmatprep.subr.mxu0 0.0
  %93 = vmatpush2.msra.mxu0 0.0
  %94 = vmatprep.subr.mxu0 0.0
  %95 = vmatpush2.msra.mxu0 0.0
  %96 = vmatprep.subr.mxu0 0.0
  %97 = vmatpush2.msra.mxu0 0.0
  %98 = vmatprep.subr.mxu0 0.0
  %99 = vmatpush2.msra.mxu0 0.0
  %100 = vmatprep.mubr.f32.mxu0 0.0
  %101 = vmatmul.mubr.f32.gmra.mxu0 %v25
  %v102 = vpop.f32.mrf.mxu0
  %v103 = vadd.f32 0.0, %v102
  %v104 = vpop.f32.mrf.mxu0
  %105 = vmatprep.mubr.f32.mxu0 0.0
  %106 = vmatmul.mubr.f32.gmra.mxu0 %v28
  %v107 = vpop.f32.mrf.mxu0
  %v108 = vadd.f32 0.0, %v107
  %v109 = vpop.f32.mrf.mxu0
  %110 = vmatprep.mubr.f32.mxu0 0.0
  %111 = vmatmul.mubr.f32.gmra.mxu0 %v31
  %v112 = vpop.f32.mrf.mxu0
  %v113 = vadd.f32 0.0, %v112
  %v114 = vpop.f32.mrf.mxu0
  %115 = vmatprep.mubr.f32.mxu0 0.0
  %116 = vmatmul.mubr.f32.gmra.mxu0 %v34
  %v117 = vpop.f32.mrf.mxu0
  %v118 = vadd.f32 0.0, %v117
  %v119 = vpop.f32.mrf.mxu0
  %120 = vdwg.mxu0
  %121 = vst [vmem:[%s2] sm:$0xff] %v103
  %122 = vst [vmem:[%s2 + $0x8] sm:$0xff] %v108
  %123 = vst [vmem:[%s2 + $0x10] sm:$0xff] %v113
  %124 = vst [vmem:[%s2 + $0x18] sm:$0xff] %v118
  // Predicated region
  $region10: #{fedformer_forecast.41} parent=0 // pred_check
    _
  $region11: #{fedformer_forecast.41} parent=0 // pred_check_branch
    %126 = sbr.rel (0) target = $region13
  $region12: #{fedformer_forecast.41} parent=0 // pred_region
    _
  $region13: #{fedformer_forecast.41} parent=0 // pred_fallthru
    _
  // Predicated region
  $region14: #{fedformer_forecast.41} parent=0 // pred_check
    _
  $region15: #{fedformer_forecast.41} parent=0 // pred_check_branch
    %128 = sbr.rel (0) target = $region17
  $region16: #{fedformer_forecast.41} parent=0 // pred_region
    _
  $region17: #{fedformer_forecast.41} parent=0 // pred_fallthru
    _

// kernel: fedformer_forecast.40
$region0: #{fedformer_forecast.40}
  #allocation0 [shape = 'u32[]', space=smem, size = 0x4, offset = 0x4, fixed_abs, tag = 'smem constant byte address 0x4 - core index']
  #allocation1 [shape = 'u32[144,128]{1,0:T(1,128)}', space=vmem, size = 0x12000, scoped, tag = 'internal scratch']
  %s0 = inlined_call_operand.vmem [shape: f32[2,20,64], index: 0, kind: input, shape index: {}]
  %s1 = inlined_call_operand.vmem [shape: f32[2,16,64], index: 1, kind: output, shape index: {0}]
  %s2 = inlined_call_operand.hbm [shape: f32[2,16,64], index: 2, kind: output, shape index: {1}]
  %3 = xla_tuple %s1, %s2
  %s4 = sld [smem:[#allocation0]]
  $region22: #{fedformer_forecast.40} parent=0
    _
  %s6 = ssub.s32 1, %s4
  %s7 = scalar_select 0, %s6, %s4
  $region1: #{fedformer_forecast.40} parent=0
    #allocation2 [shape = 'u8[16384]{0}', space=vmem, size = 0x4000, scoped, tag = 'output window, operand 1, single buffered']
    #allocation3 [shape = 's32[1]{0}', space=sflag, size = 0x4, scoped, tag = 'scoped memory for fedformer_forecast.40']
    %8 = vsyncpa [#allocation3], 0
    // Predicated region
    $region2: #{fedformer_forecast.40} parent=1 // pred_check
      _
    $region3: #{fedformer_forecast.40} parent=1 // pred_check_branch
      %10 = sbr.rel (0) target = $region5
    $region4: #{fedformer_forecast.40} parent=1 // pred_region
      _
    $region5: #{fedformer_forecast.40} parent=1 // pred_fallthru
      _
    %v11 = vld [vmem:[%s0] sm:$0xff]
    %v12 = vld [vmem:[%s0 + $0x8] sm:$0xff]
    %v13 = vld [vmem:[%s0 + $0x10] sm:$0xf]
    %v14 = vld [vmem:[%s0 + $0x18] sm:$0xff]
    %v15 = vld [vmem:[%s0 + $0x20] sm:$0xff]
    %v16 = vld [vmem:[%s0 + $0x28] sm:$0xf]
    %vm23 = vcmask 1046528
    %v24 = vrot.slane %v11, 1
    %v25 = vrot.slane %v12, 1
    %v26 = vsel %vm23, %v24, %v25
    %v27 = vrot.slane %v13, 1
    %v28 = vsel %vm23, %v25, %v27
    %v29 = vrot.slane %v14, 1
    %v30 = vrot.slane %v15, 1
    %v31 = vsel %vm23, %v29, %v30
    %v32 = vrot.slane %v16, 1
    %v33 = vsel %vm23, %v30, %v32
    %v38 = vadd.f32 %v11, %v26
    %v39 = vadd.f32 %v12, %v28
    %v40 = vadd.f32 %v14, %v31
    %v41 = vadd.f32 %v15, %v33
    %vm42 = vcmask 1045504
    %v43 = vrot.slane %v11, 2
    %v44 = vrot.slane %v12, 2
    %v45 = vsel %vm42, %v43, %v44
    %v46 = vrot.slane %v13, 2
    %v47 = vsel %vm42, %v44, %v46
    %v48 = vrot.slane %v14, 2
    %v49 = vrot.slane %v15, 2
    %v50 = vsel %vm42, %v48, %v49
    %v51 = vrot.slane %v16, 2
    %v52 = vsel %vm42, %v49, %v51
    %v57 = vadd.f32 %v38, %v45
    %v58 = vadd.f32 %v39, %v47
    %v59 = vadd.f32 %v40, %v50
    %v60 = vadd.f32 %v41, %v52
    %vm61 = vcmask 1044480
    %v62 = vrot.slane %v11, 3
    %v63 = vrot.slane %v12, 3
    %v64 = vsel %vm61, %v62, %v63
    %v65 = vrot.slane %v13, 3
    %v66 = vsel %vm61, %v63, %v65
    %v67 = vrot.slane %v14, 3
    %v68 = vrot.slane %v15, 3
    %v69 = vsel %vm61, %v67, %v68
    %v70 = vrot.slane %v16, 3
    %v71 = vsel %vm61, %v68, %v70
    %v76 = vadd.f32 %v57, %v64
    %v77 = vadd.f32 %v58, %v66
    %v78 = vadd.f32 %v59, %v69
    %v79 = vadd.f32 %v60, %v71
    %vm80 = vcmask 1043456
    %v81 = vrot.slane %v11, 4
    %v82 = vrot.slane %v12, 4
    %v83 = vsel %vm80, %v81, %v82
    %v84 = vrot.slane %v13, 4
    %v85 = vsel %vm80, %v82, %v84
    %v86 = vrot.slane %v14, 4
    %v87 = vrot.slane %v15, 4
    %v88 = vsel %vm80, %v86, %v87
    %v89 = vrot.slane %v16, 4
    %v90 = vsel %vm80, %v87, %v89
    %v95 = vadd.f32 %v76, %v83
    %v96 = vadd.f32 %v77, %v85
    %v97 = vadd.f32 %v78, %v88
    %v98 = vadd.f32 %v79, %v90
    %v99 = vmul.f32 %v95, 0.2
    %v100 = vmul.f32 %v96, 0.2
    %v101 = vmul.f32 %v97, 0.2
    %v102 = vmul.f32 %v98, 0.2
    %vm103 = vcmask 523264
    %104 = vst.msk [vmem:[#allocation2] sm:$0xff] %vm103, %v99
    %105 = vst.msk [vmem:[#allocation2 + $0x8] sm:$0xff] %vm103, %v100
    %106 = vst.msk [vmem:[#allocation2 + $0x10] sm:$0xff] %vm103, %v101
    %107 = vst.msk [vmem:[#allocation2 + $0x18] sm:$0xff] %vm103, %v102
    %vm112 = vcmask 1041408
    %v113 = vrot.slane %v99, 6
    %v114 = vrot.slane %v100, 6
    %v115 = vsel %vm112, %v113, %v114
    %v116 = vrot.slane %v101, 6
    %v117 = vrot.slane %v102, 6
    %v118 = vsel %vm112, %v116, %v117
    %v125 = vsub.f32 %v11, %v113
    %v126 = vsub.f32 %v12, %v115
    %v127 = vsub.f32 %v13, %v114
    %v128 = vsub.f32 %v14, %v116
    %v129 = vsub.f32 %v15, %v118
    %v130 = vsub.f32 %v16, %v117
    %vm131 = vcmask 523266
    %132 = vst.msk [vmem:[%s1 - $0x2] sm:$0xfc] %vm131, %v125
    %133 = vst.msk [vmem:[%s1 + $0x6] sm:$0xff] %vm103, %v126
    %vm134 = vcmask 517120
    %135 = vst.msk [vmem:[%s1 + $0xe] sm:$0x3] %vm134, %v127
    %136 = vst.msk [vmem:[%s1 + $0xe] sm:$0xfc] %vm131, %v128
    %137 = vst.msk [vmem:[%s1 + $0x16] sm:$0xff] %vm103, %v129
    %138 = vst.msk [vmem:[%s1 + $0x1e] sm:$0x3] %vm134, %v130
    // Predicated region
    $region6: #{fedformer_forecast.40} parent=1 // pred_check
      _
    $region7: #{fedformer_forecast.40} parent=1 // pred_check_branch
      %140 = sbr.rel (0) target = $region9
    $region8: #{fedformer_forecast.40} parent=1 // pred_region
      _
    $region9: #{fedformer_forecast.40} parent=1 // pred_fallthru
      _
    // Predicated region
    $region10: #{fedformer_forecast.40} parent=1 // pred_check
      _
    $region11: #{fedformer_forecast.40} parent=1 // pred_check_branch
      %142 = sbr.rel (0) target = $region13
    $region12: #{fedformer_forecast.40} parent=1 // pred_region
      %s144 = ssub.s32 512, 512
      %145 = vsyncadd [#allocation3], %s144
      %s146 = sshll.u32 [#allocation2], 4
      %s147 = int_to_ptr.vmem [resolvable:$true] %s146
      %152 = dma.vmem_to_hbm [thread:$0]  %s147, 512, %s2, [#allocation3], 128, 128, 8
    $region13: #{fedformer_forecast.40} parent=1 // pred_fallthru
      _
    // Predicated region
    $region14: #{fedformer_forecast.40} parent=1 // pred_check
      _
    $region15: #{fedformer_forecast.40} parent=1 // pred_check_branch
      %154 = sbr.rel (0) target = $region17
    $region16: #{fedformer_forecast.40} parent=1 // pred_region
      _
    $region17: #{fedformer_forecast.40} parent=1 // pred_fallthru
      _
    // Predicated region
    $region18: #{fedformer_forecast.40} parent=1 // pred_check
      _
    $region19: #{fedformer_forecast.40} parent=1 // pred_check_branch
      %156 = sbr.rel (0) target = $region21
    $region20: #{fedformer_forecast.40} parent=1 // pred_region
      %157 = dma.done [#allocation3], 512
    $region21: #{fedformer_forecast.40} parent=1 // pred_fallthru
      _
    %158 = vsyncpa [#allocation3], 1

// kernel: fedformer_forecast.42
$region0: #{fedformer_forecast.42}
  #allocation0 [shape = 'u32[]', space=smem, size = 0x4, offset = 0x4, fixed_abs, tag = 'smem constant byte address 0x4 - core index']
  #allocation1 [shape = 'u32[144,128]{1,0:T(1,128)}', space=vmem, size = 0x12000, scoped, tag = 'internal scratch']
  %s0 = inlined_call_operand.vmem [shape: f32[32,128], index: 0, kind: input, shape index: {}]
  %s1 = inlined_call_operand.vmem [shape: f32[128,64], index: 1, kind: input, shape index: {}]
  %s2 = inlined_call_operand.vmem [shape: f32[32,64], index: 2, kind: input, shape index: {}]
  %s3 = inlined_call_operand.vmem [shape: f32[32,64], index: 3, kind: output, shape index: {}]
  %s4 = sld [smem:[#allocation0]]
  $region22: #{fedformer_forecast.42} parent=0
    _
  %s6 = ssub.s32 1, %s4
  %s7 = scalar_select 0, %s6, %s4
  // Predicated region
  $region2: #{fedformer_forecast.42} parent=0 // pred_check
    _
  $region3: #{fedformer_forecast.42} parent=0 // pred_check_branch
    %9 = sbr.rel (0) target = $region5
  $region4: #{fedformer_forecast.42} parent=0 // pred_region
    _
  $region5: #{fedformer_forecast.42} parent=0 // pred_fallthru
    _
  // Predicated region
  $region6: #{fedformer_forecast.42} parent=0 // pred_check
    _
  $region7: #{fedformer_forecast.42} parent=0 // pred_check_branch
    %11 = sbr.rel (0) target = $region9
  $region8: #{fedformer_forecast.42} parent=0 // pred_region
    _
  $region9: #{fedformer_forecast.42} parent=0 // pred_fallthru
    _
  // Predicated region
  $region10: #{fedformer_forecast.42} parent=0 // pred_check
    _
  $region11: #{fedformer_forecast.42} parent=0 // pred_check_branch
    %13 = sbr.rel (0) target = $region13
  $region12: #{fedformer_forecast.42} parent=0 // pred_region
    _
  $region13: #{fedformer_forecast.42} parent=0 // pred_fallthru
    _
  %v14 = vld [vmem:[%s0] sm:$0xff]
  %v15 = vld [vmem:[%s0 + $0x8] sm:$0xff]
  %v16 = vld [vmem:[%s0 + $0x10] sm:$0xff]
  %v17 = vld [vmem:[%s0 + $0x18] sm:$0xff]
  %v18 = vld [vmem:[%s1] sm:$0xff]
  %v19 = vld [vmem:[%s1 + $0x8] sm:$0xff]
  %v20 = vld [vmem:[%s1 + $0x10] sm:$0xff]
  %v21 = vld [vmem:[%s1 + $0x18] sm:$0xff]
  %v22 = vld [vmem:[%s1 + $0x20] sm:$0xff]
  %v23 = vld [vmem:[%s1 + $0x28] sm:$0xff]
  %v24 = vld [vmem:[%s1 + $0x30] sm:$0xff]
  %v25 = vld [vmem:[%s1 + $0x38] sm:$0xff]
  %v26 = vld [vmem:[%s1 + $0x40] sm:$0xff]
  %v27 = vld [vmem:[%s1 + $0x48] sm:$0xff]
  %v28 = vld [vmem:[%s1 + $0x50] sm:$0xff]
  %v29 = vld [vmem:[%s1 + $0x58] sm:$0xff]
  %v30 = vld [vmem:[%s1 + $0x60] sm:$0xff]
  %v31 = vld [vmem:[%s1 + $0x68] sm:$0xff]
  %v32 = vld [vmem:[%s1 + $0x70] sm:$0xff]
  %v33 = vld [vmem:[%s1 + $0x78] sm:$0xff]
  %v34 = vld [vmem:[%s2] sm:$0xff]
  %v35 = vld [vmem:[%s2 + $0x8] sm:$0xff]
  %v36 = vld [vmem:[%s2 + $0x10] sm:$0xff]
  %v37 = vld [vmem:[%s2 + $0x18] sm:$0xff]
  %38 = vmatprep.subr.mxu0 0.0
  %39 = vmatpush1.msra.mxu0 %v33
  %40 = vmatprep.subr.mxu0 0.0
  %41 = vmatpush1.msra.mxu0 %v32
  %42 = vmatprep.subr.mxu0 0.0
  %43 = vmatpush1.msra.mxu0 %v31
  %44 = vmatprep.subr.mxu0 0.0
  %45 = vmatpush1.msra.mxu0 %v30
  %46 = vmatprep.subr.mxu0 0.0
  %47 = vmatpush1.msra.mxu0 %v29
  %48 = vmatprep.subr.mxu0 0.0
  %49 = vmatpush1.msra.mxu0 %v28
  %50 = vmatprep.subr.mxu0 0.0
  %51 = vmatpush1.msra.mxu0 %v27
  %52 = vmatprep.subr.mxu0 0.0
  %53 = vmatpush1.msra.mxu0 %v26
  %54 = vmatprep.subr.mxu0 0.0
  %55 = vmatpush1.msra.mxu0 %v25
  %56 = vmatprep.subr.mxu0 0.0
  %57 = vmatpush1.msra.mxu0 %v24
  %58 = vmatprep.subr.mxu0 0.0
  %59 = vmatpush1.msra.mxu0 %v23
  %60 = vmatprep.subr.mxu0 0.0
  %61 = vmatpush1.msra.mxu0 %v22
  %62 = vmatprep.subr.mxu0 0.0
  %63 = vmatpush1.msra.mxu0 %v21
  %64 = vmatprep.subr.mxu0 0.0
  %65 = vmatpush1.msra.mxu0 %v20
  %66 = vmatprep.subr.mxu0 0.0
  %67 = vmatpush1.msra.mxu0 %v19
  %68 = vmatprep.subr.mxu0 0.0
  %69 = vmatpush1.msra.mxu0 %v18
  %70 = vmatprep.subr.mxu0 0.0
  %71 = vmatpush2.msra.mxu0 0.0
  %72 = vmatprep.subr.mxu0 0.0
  %73 = vmatpush2.msra.mxu0 0.0
  %74 = vmatprep.subr.mxu0 0.0
  %75 = vmatpush2.msra.mxu0 0.0
  %76 = vmatprep.subr.mxu0 0.0
  %77 = vmatpush2.msra.mxu0 0.0
  %78 = vmatprep.subr.mxu0 0.0
  %79 = vmatpush2.msra.mxu0 0.0
  %80 = vmatprep.subr.mxu0 0.0
  %81 = vmatpush2.msra.mxu0 0.0
  %82 = vmatprep.subr.mxu0 0.0
  %83 = vmatpush2.msra.mxu0 0.0
  %84 = vmatprep.subr.mxu0 0.0
  %85 = vmatpush2.msra.mxu0 0.0
  %86 = vmatprep.subr.mxu0 0.0
  %87 = vmatpush2.msra.mxu0 0.0
  %88 = vmatprep.subr.mxu0 0.0
  %89 = vmatpush2.msra.mxu0 0.0
  %90 = vmatprep.subr.mxu0 0.0
  %91 = vmatpush2.msra.mxu0 0.0
  %92 = vmatprep.subr.mxu0 0.0
  %93 = vmatpush2.msra.mxu0 0.0
  %94 = vmatprep.subr.mxu0 0.0
  %95 = vmatpush2.msra.mxu0 0.0
  %96 = vmatprep.subr.mxu0 0.0
  %97 = vmatpush2.msra.mxu0 0.0
  %98 = vmatprep.subr.mxu0 0.0
  %99 = vmatpush2.msra.mxu0 0.0
  %100 = vmatprep.subr.mxu0 0.0
  %101 = vmatpush2.msra.mxu0 0.0
  %102 = vmatprep.mubr.f32.mxu0 0.0
  %103 = vmatmul.mubr.f32.gmra.mxu0 %v14
  %v104 = vpop.f32.mrf.mxu0
  %v105 = vadd.f32 %v34, %v104
  %v106 = vpop.f32.mrf.mxu0
  %107 = vmatprep.mubr.f32.mxu0 0.0
  %108 = vmatmul.mubr.f32.gmra.mxu0 %v15
  %v109 = vpop.f32.mrf.mxu0
  %v110 = vadd.f32 %v35, %v109
  %v111 = vpop.f32.mrf.mxu0
  %112 = vmatprep.mubr.f32.mxu0 0.0
  %113 = vmatmul.mubr.f32.gmra.mxu0 %v16
  %v114 = vpop.f32.mrf.mxu0
  %v115 = vadd.f32 %v36, %v114
  %v116 = vpop.f32.mrf.mxu0
  %117 = vmatprep.mubr.f32.mxu0 0.0
  %118 = vmatmul.mubr.f32.gmra.mxu0 %v17
  %v119 = vpop.f32.mrf.mxu0
  %v120 = vadd.f32 %v37, %v119
  %v121 = vpop.f32.mrf.mxu0
  %122 = vdwg.mxu0
  %vm123 = vcmask 523264
  %124 = vst.msk [vmem:[%s3] sm:$0xff] %vm123, %v105
  %125 = vst.msk [vmem:[%s3 + $0x8] sm:$0xff] %vm123, %v110
  %126 = vst.msk [vmem:[%s3 + $0x10] sm:$0xff] %vm123, %v115
  %127 = vst.msk [vmem:[%s3 + $0x18] sm:$0xff] %vm123, %v120
  // Predicated region
  $region14: #{fedformer_forecast.42} parent=0 // pred_check
    _
  $region15: #{fedformer_forecast.42} parent=0 // pred_check_branch
    %129 = sbr.rel (0) target = $region17
  $region16: #{fedformer_forecast.42} parent=0 // pred_region
    _
  $region17: #{fedformer_forecast.42} parent=0 // pred_fallthru
    _
  // Predicated region
  $region18: #{fedformer_forecast.42} parent=0 // pred_check
    _
  $region19: #{fedformer_forecast.42} parent=0 // pred_check_branch
    %131 = sbr.rel (0) target = $region21
  $region20: #{fedformer_forecast.42} parent=0 // pred_region
    _
  $region21: #{fedformer_forecast.42} parent=0 // pred_fallthru
    _

// kernel: fedformer_forecast.51
$region0: #{fedformer_forecast.51}
  #allocation0 [shape = 'u32[]', space=smem, size = 0x4, offset = 0x4, fixed_abs, tag = 'smem constant byte address 0x4 - core index']
  #allocation1 [shape = 'u32[144,128]{1,0:T(1,128)}', space=vmem, size = 0x12000, scoped, tag = 'internal scratch']
  %s0 = inlined_call_operand.vmem [shape: f32[2,16,64], index: 0, kind: input, shape index: {}]
  %s1 = inlined_call_operand.vmem [shape: f32[1,1,64], index: 1, kind: input, shape index: {}]
  %s2 = inlined_call_operand.vmem [shape: f32[1,1,64], index: 2, kind: input, shape index: {}]
  %s3 = inlined_call_operand.vmem [shape: f32[2,16,64], index: 3, kind: output, shape index: {}]
  %s4 = sld [smem:[#allocation0]]
  $region22: #{fedformer_forecast.51} parent=0
    _
  %s6 = ssub.s32 1, %s4
  %s7 = scalar_select 0, %s6, %s4
  // Predicated region
  $region2: #{fedformer_forecast.51} parent=0 // pred_check
    _
  $region3: #{fedformer_forecast.51} parent=0 // pred_check_branch
    %9 = sbr.rel (0) target = $region5
  $region4: #{fedformer_forecast.51} parent=0 // pred_region
    _
  $region5: #{fedformer_forecast.51} parent=0 // pred_fallthru
    _
  // Predicated region
  $region6: #{fedformer_forecast.51} parent=0 // pred_check
    _
  $region7: #{fedformer_forecast.51} parent=0 // pred_check_branch
    %11 = sbr.rel (0) target = $region9
  $region8: #{fedformer_forecast.51} parent=0 // pred_region
    _
  $region9: #{fedformer_forecast.51} parent=0 // pred_fallthru
    _
  // Predicated region
  $region10: #{fedformer_forecast.51} parent=0 // pred_check
    _
  $region11: #{fedformer_forecast.51} parent=0 // pred_check_branch
    %13 = sbr.rel (0) target = $region13
  $region12: #{fedformer_forecast.51} parent=0 // pred_region
    _
  $region13: #{fedformer_forecast.51} parent=0 // pred_fallthru
    _
  %v14 = vld [vmem:[%s0] sm:$0xff]
  %v15 = vld [vmem:[%s0 + $0x8] sm:$0xff]
  %v16 = vld [vmem:[%s0 + $0x10] sm:$0xff]
  %v17 = vld [vmem:[%s0 + $0x18] sm:$0xff]
  %vm18 = vcmask 523264
  %v19 = vsel %vm18, %v14, 0.0
  %20 = vadd.xlane.f32.xlu0 %v19
  %v21 = vpop.xlane.xlu0 %20
  %v22 = vsel %vm18, %v15, 0.0
  %23 = vadd.xlane.f32.xlu0 %v22
  %v24 = vpop.xlane.xlu0 %23
  %v25 = vsel %vm18, %v16, 0.0
  %26 = vadd.xlane.f32.xlu0 %v25
  %v27 = vpop.xlane.xlu0 %26
  %v28 = vsel %vm18, %v17, 0.0
  %29 = vadd.xlane.f32.xlu0 %v28
  %v30 = vpop.xlane.xlu0 %29
  %v31 = vrcp.pop 64.0
  %v32 = vmul.f32 %v21, %v31
  %v33 = vmul.f32 %v24, %v31
  %v34 = vmul.f32 %v27, %v31
  %v35 = vmul.f32 %v30, %v31
  %v36 = vsub.f32 %v14, %v32
  %v37 = vsub.f32 %v15, %v33
  %v38 = vsub.f32 %v16, %v34
  %v39 = vsub.f32 %v17, %v35
  %v40 = vmul.f32 %v36, %v36
  %v41 = vmul.f32 %v37, %v37
  %v42 = vmul.f32 %v38, %v38
  %v43 = vmul.f32 %v39, %v39
  %v44 = vsel %vm18, %v40, 0.0
  %45 = vadd.xlane.f32.xlu0 %v44
  %v46 = vpop.xlane.xlu0 %45
  %v47 = vsel %vm18, %v41, 0.0
  %48 = vadd.xlane.f32.xlu0 %v47
  %v49 = vpop.xlane.xlu0 %48
  %v50 = vsel %vm18, %v42, 0.0
  %51 = vadd.xlane.f32.xlu0 %v50
  %v52 = vpop.xlane.xlu0 %51
  %v53 = vsel %vm18, %v43, 0.0
  %54 = vadd.xlane.f32.xlu0 %v53
  %v55 = vpop.xlane.xlu0 %54
  %v56 = vmul.f32 %v46, %v31
  %v57 = vmul.f32 %v49, %v31
  %v58 = vmul.f32 %v52, %v31
  %v59 = vmul.f32 %v55, %v31
  %v60 = vadd.f32 %v56, 1e-05
  %v61 = vadd.f32 %v57, 1e-05
  %v62 = vadd.f32 %v58, 1e-05
  %v63 = vadd.f32 %v59, 1e-05
  %v64 = vrsqrt.pop %v60
  %v65 = vrsqrt.pop %v61
  %v66 = vrsqrt.pop %v62
  %v67 = vrsqrt.pop %v63
  %v68 = vmul.f32 %v36, %v64
  %v69 = vmul.f32 %v37, %v65
  %v70 = vmul.f32 %v38, %v66
  %v71 = vmul.f32 %v39, %v67
  %v72 = vld [vmem:[%s1] sm:$0x1]
  %v74 = vlaneseq
  %v75 = vshrl.u32 %v74, 7
  %v76 = vsub.s32 0, %v75
  %v77 = vrot.slane %v72, %v76
  %v79 = vmul.f32 %v68, %v77
  %v80 = vmul.f32 %v69, %v77
  %v81 = vmul.f32 %v70, %v77
  %v82 = vmul.f32 %v71, %v77
  %v83 = vld [vmem:[%s2] sm:$0x1]
  %v85 = vlaneseq
  %v86 = vshrl.u32 %v85, 7
  %v87 = vsub.s32 0, %v86
  %v88 = vrot.slane %v83, %v87
  %v90 = vadd.f32 %v79, %v88
  %v91 = vadd.f32 %v80, %v88
  %v92 = vadd.f32 %v81, %v88
  %v93 = vadd.f32 %v82, %v88
  %v94 = vsel %vm18, %v90, 0.0
  %v95 = vsel %vm18, %v91, 0.0
  %v96 = vadd.f32 %v94, %v95
  %v97 = vrot.slane %v96, 4
  %v98 = vadd.f32 %v96, %v97
  %v99 = vrot.slane %v98, 2
  %v100 = vadd.f32 %v98, %v99
  %v101 = vrot.slane %v100, 1
  %v102 = vadd.f32 %v100, %v101
  %v103 = vsel %vm18, %v92, 0.0
  %v104 = vsel %vm18, %v93, 0.0
  %v105 = vadd.f32 %v103, %v104
  %v106 = vrot.slane %v105, 4
  %v107 = vadd.f32 %v105, %v106
  %v108 = vrot.slane %v107, 2
  %v109 = vadd.f32 %v107, %v108
  %v110 = vrot.slane %v109, 1
  %v111 = vadd.f32 %v109, %v110
  %v112 = vrcp.pop 16.0
  %v113 = vmul.f32 %v102, %v112
  %v114 = vmul.f32 %v111, %v112
  %v115 = vsub.f32 %v90, %v113
  %v116 = vsub.f32 %v91, %v113
  %v117 = vsub.f32 %v92, %v114
  %v118 = vsub.f32 %v93, %v114
  %119 = vst.msk [vmem:[%s3] sm:$0xff] %vm18, %v115
  %120 = vst.msk [vmem:[%s3 + $0x8] sm:$0xff] %vm18, %v116
  %121 = vst.msk [vmem:[%s3 + $0x10] sm:$0xff] %vm18, %v117
  %122 = vst.msk [vmem:[%s3 + $0x18] sm:$0xff] %vm18, %v118
  // Predicated region
  $region14: #{fedformer_forecast.51} parent=0 // pred_check
    _
  $region15: #{fedformer_forecast.51} parent=0 // pred_check_branch
    %124 = sbr.rel (0) target = $region17
  $region16: #{fedformer_forecast.51} parent=0 // pred_region
    _
  $region17: #{fedformer_forecast.51} parent=0 // pred_fallthru
    _
  // Predicated region
  $region18: #{fedformer_forecast.51} parent=0 // pred_check
    _
  $region19: #{fedformer_forecast.51} parent=0 // pred_check_branch
    %126 = sbr.rel (0) target = $region21
  $region20: #{fedformer_forecast.51} parent=0 // pred_region
    _
  $region21: #{fedformer_forecast.51} parent=0 // pred_fallthru
    _

// kernel: fedformer_forecast.34
$region0: #{fedformer_forecast.34}
  #allocation0 [shape = 'u32[]', space=smem, size = 0x4, offset = 0x4, fixed_abs, tag = 'smem constant byte address 0x4 - core index']
  #allocation1 [shape = 'u32[144,128]{1,0:T(1,128)}', space=vmem, size = 0x12000, scoped, tag = 'internal scratch']
  %s0 = inlined_call_operand.vmem [shape: f32[2,20,4], index: 0, kind: input, shape index: {}]
  %s1 = inlined_call_operand.vmem [shape: f32[2,16,4], index: 1, kind: output, shape index: {0}]
  %s2 = inlined_call_operand.vmem [shape: f32[2,16,4], index: 2, kind: output, shape index: {1}]
  %3 = xla_tuple %s1, %s2
  %s4 = sld [smem:[#allocation0]]
  $region22: #{fedformer_forecast.34} parent=0
    _
  %s6 = ssub.s32 1, %s4
  %s7 = scalar_select 0, %s6, %s4
  // Predicated region
  $region2: #{fedformer_forecast.34} parent=0 // pred_check
    _
  $region3: #{fedformer_forecast.34} parent=0 // pred_check_branch
    %9 = sbr.rel (0) target = $region5
  $region4: #{fedformer_forecast.34} parent=0 // pred_region
    _
  $region5: #{fedformer_forecast.34} parent=0 // pred_fallthru
    _
  %v10 = vld [vmem:[%s0] sm:$0xff]
  %v11 = vld [vmem:[%s0 + $0x8] sm:$0xff]
  %v12 = vld [vmem:[%s0 + $0x10] sm:$0xf]
  %v13 = vld [vmem:[%s0 + $0x18] sm:$0xff]
  %v14 = vld [vmem:[%s0 + $0x20] sm:$0xff]
  %v15 = vld [vmem:[%s0 + $0x28] sm:$0xf]
  %vm22 = vcmask 1046528
  %v23 = vrot.slane %v10, 1
  %v24 = vrot.slane %v11, 1
  %v25 = vsel %vm22, %v23, %v24
  %v26 = vrot.slane %v12, 1
  %v27 = vsel %vm22, %v24, %v26
  %v28 = vrot.slane %v13, 1
  %v29 = vrot.slane %v14, 1
  %v30 = vsel %vm22, %v28, %v29
  %v31 = vrot.slane %v15, 1
  %v32 = vsel %vm22, %v29, %v31
  %v37 = vadd.f32 %v10, %v25
  %v38 = vadd.f32 %v11, %v27
  %v39 = vadd.f32 %v13, %v30
  %v40 = vadd.f32 %v14, %v32
  %vm41 = vcmask 1045504
  %v42 = vrot.slane %v10, 2
  %v43 = vrot.slane %v11, 2
  %v44 = vsel %vm41, %v42, %v43
  %v45 = vrot.slane %v12, 2
  %v46 = vsel %vm41, %v43, %v45
  %v47 = vrot.slane %v13, 2
  %v48 = vrot.slane %v14, 2
  %v49 = vsel %vm41, %v47, %v48
  %v50 = vrot.slane %v15, 2
  %v51 = vsel %vm41, %v48, %v50
  %v56 = vadd.f32 %v37, %v44
  %v57 = vadd.f32 %v38, %v46
  %v58 = vadd.f32 %v39, %v49
  %v59 = vadd.f32 %v40, %v51
  %vm60 = vcmask 1044480
  %v61 = vrot.slane %v10, 3
  %v62 = vrot.slane %v11, 3
  %v63 = vsel %vm60, %v61, %v62
  %v64 = vrot.slane %v12, 3
  %v65 = vsel %vm60, %v62, %v64
  %v66 = vrot.slane %v13, 3
  %v67 = vrot.slane %v14, 3
  %v68 = vsel %vm60, %v66, %v67
  %v69 = vrot.slane %v15, 3
  %v70 = vsel %vm60, %v67, %v69
  %v75 = vadd.f32 %v56, %v63
  %v76 = vadd.f32 %v57, %v65
  %v77 = vadd.f32 %v58, %v68
  %v78 = vadd.f32 %v59, %v70
  %vm79 = vcmask 1043456
  %v80 = vrot.slane %v10, 4
  %v81 = vrot.slane %v11, 4
  %v82 = vsel %vm79, %v80, %v81
  %v83 = vrot.slane %v12, 4
  %v84 = vsel %vm79, %v81, %v83
  %v85 = vrot.slane %v13, 4
  %v86 = vrot.slane %v14, 4
  %v87 = vsel %vm79, %v85, %v86
  %v88 = vrot.slane %v15, 4
  %v89 = vsel %vm79, %v86, %v88
  %v94 = vadd.f32 %v75, %v82
  %v95 = vadd.f32 %v76, %v84
  %v96 = vadd.f32 %v77, %v87
  %v97 = vadd.f32 %v78, %v89
  %v98 = vmul.f32 %v94, 0.2
  %v99 = vmul.f32 %v95, 0.2
  %v100 = vmul.f32 %v96, 0.2
  %v101 = vmul.f32 %v97, 0.2
  %vm102 = vcmask 31744
  %103 = vst.msk [vmem:[%s2] sm:$0xff] %vm102, %v98
  %104 = vst.msk [vmem:[%s2 + $0x8] sm:$0xff] %vm102, %v99
  %105 = vst.msk [vmem:[%s2 + $0x10] sm:$0xff] %vm102, %v100
  %106 = vst.msk [vmem:[%s2 + $0x18] sm:$0xff] %vm102, %v101
  %vm111 = vcmask 1041408
  %v112 = vrot.slane %v98, 6
  %v113 = vrot.slane %v99, 6
  %v114 = vsel %vm111, %v112, %v113
  %v115 = vrot.slane %v100, 6
  %v116 = vrot.slane %v101, 6
  %v117 = vsel %vm111, %v115, %v116
  %v124 = vsub.f32 %v10, %v112
  %v125 = vsub.f32 %v11, %v114
  %v126 = vsub.f32 %v12, %v113
  %v127 = vsub.f32 %v13, %v115
  %v128 = vsub.f32 %v14, %v117
  %v129 = vsub.f32 %v15, %v116
  %vm130 = vcmask 31746
  %131 = vst.msk [vmem:[%s1 - $0x2] sm:$0xfc] %vm130, %v124
  %132 = vst.msk [vmem:[%s1 + $0x6] sm:$0xff] %vm102, %v125
  %vm133 = vcmask 25600
  %134 = vst.msk [vmem:[%s1 + $0xe] sm:$0x3] %vm133, %v126
  %135 = vst.msk [vmem:[%s1 + $0xe] sm:$0xfc] %vm130, %v127
  %136 = vst.msk [vmem:[%s1 + $0x16] sm:$0xff] %vm102, %v128
  %137 = vst.msk [vmem:[%s1 + $0x1e] sm:$0x3] %vm133, %v129
  // Predicated region
  $region6: #{fedformer_forecast.34} parent=0 // pred_check
    _
  $region7: #{fedformer_forecast.34} parent=0 // pred_check_branch
    %139 = sbr.rel (0) target = $region9
  $region8: #{fedformer_forecast.34} parent=0 // pred_region
    _
  $region9: #{fedformer_forecast.34} parent=0 // pred_fallthru
    _
  // Predicated region
  $region10: #{fedformer_forecast.34} parent=0 // pred_check
    _
  $region11: #{fedformer_forecast.34} parent=0 // pred_check_branch
    %141 = sbr.rel (0) target = $region13
  $region12: #{fedformer_forecast.34} parent=0 // pred_region
    _
  $region13: #{fedformer_forecast.34} parent=0 // pred_fallthru
    _
  // Predicated region
  $region14: #{fedformer_forecast.34} parent=0 // pred_check
    _
  $region15: #{fedformer_forecast.34} parent=0 // pred_check_branch
    %143 = sbr.rel (0) target = $region17
  $region16: #{fedformer_forecast.34} parent=0 // pred_region
    _
  $region17: #{fedformer_forecast.34} parent=0 // pred_fallthru
    _
  // Predicated region
  $region18: #{fedformer_forecast.34} parent=0 // pred_check
    _
  $region19: #{fedformer_forecast.34} parent=0 // pred_check_branch
    %145 = sbr.rel (0) target = $region21
  $region20: #{fedformer_forecast.34} parent=0 // pred_region
    _
  $region21: #{fedformer_forecast.34} parent=0 // pred_fallthru
    _

// kernel: fedformer_forecast.55
$region0: #{fedformer_forecast.55}
  #allocation0 [shape = 'u32[]', space=smem, size = 0x4, offset = 0x4, fixed_abs, tag = 'smem constant byte address 0x4 - core index']
  #allocation1 [shape = 'u32[144,128]{1,0:T(1,128)}', space=vmem, size = 0x12000, scoped, tag = 'internal scratch']
  %s0 = inlined_call_operand.vmem [shape: f32[2,20,64], index: 0, kind: input, shape index: {}]
  %s1 = inlined_call_operand.vmem [shape: f32[2,16,64], index: 1, kind: output, shape index: {0}]
  %s2 = inlined_call_operand.vmem [shape: f32[2,16,64], index: 2, kind: output, shape index: {1}]
  %3 = xla_tuple %s1, %s2
  %s4 = sld [smem:[#allocation0]]
  $region22: #{fedformer_forecast.55} parent=0
    _
  %s6 = ssub.s32 1, %s4
  %s7 = scalar_select 0, %s6, %s4
  // Predicated region
  $region2: #{fedformer_forecast.55} parent=0 // pred_check
    _
  $region3: #{fedformer_forecast.55} parent=0 // pred_check_branch
    %9 = sbr.rel (0) target = $region5
  $region4: #{fedformer_forecast.55} parent=0 // pred_region
    _
  $region5: #{fedformer_forecast.55} parent=0 // pred_fallthru
    _
  %v10 = vld [vmem:[%s0] sm:$0xff]
  %v11 = vld [vmem:[%s0 + $0x8] sm:$0xff]
  %v12 = vld [vmem:[%s0 + $0x10] sm:$0xf]
  %v13 = vld [vmem:[%s0 + $0x18] sm:$0xff]
  %v14 = vld [vmem:[%s0 + $0x20] sm:$0xff]
  %v15 = vld [vmem:[%s0 + $0x28] sm:$0xf]
  %vm22 = vcmask 1046528
  %v23 = vrot.slane %v10, 1
  %v24 = vrot.slane %v11, 1
  %v25 = vsel %vm22, %v23, %v24
  %v26 = vrot.slane %v12, 1
  %v27 = vsel %vm22, %v24, %v26
  %v28 = vrot.slane %v13, 1
  %v29 = vrot.slane %v14, 1
  %v30 = vsel %vm22, %v28, %v29
  %v31 = vrot.slane %v15, 1
  %v32 = vsel %vm22, %v29, %v31
  %v37 = vadd.f32 %v10, %v25
  %v38 = vadd.f32 %v11, %v27
  %v39 = vadd.f32 %v13, %v30
  %v40 = vadd.f32 %v14, %v32
  %vm41 = vcmask 1045504
  %v42 = vrot.slane %v10, 2
  %v43 = vrot.slane %v11, 2
  %v44 = vsel %vm41, %v42, %v43
  %v45 = vrot.slane %v12, 2
  %v46 = vsel %vm41, %v43, %v45
  %v47 = vrot.slane %v13, 2
  %v48 = vrot.slane %v14, 2
  %v49 = vsel %vm41, %v47, %v48
  %v50 = vrot.slane %v15, 2
  %v51 = vsel %vm41, %v48, %v50
  %v56 = vadd.f32 %v37, %v44
  %v57 = vadd.f32 %v38, %v46
  %v58 = vadd.f32 %v39, %v49
  %v59 = vadd.f32 %v40, %v51
  %vm60 = vcmask 1044480
  %v61 = vrot.slane %v10, 3
  %v62 = vrot.slane %v11, 3
  %v63 = vsel %vm60, %v61, %v62
  %v64 = vrot.slane %v12, 3
  %v65 = vsel %vm60, %v62, %v64
  %v66 = vrot.slane %v13, 3
  %v67 = vrot.slane %v14, 3
  %v68 = vsel %vm60, %v66, %v67
  %v69 = vrot.slane %v15, 3
  %v70 = vsel %vm60, %v67, %v69
  %v75 = vadd.f32 %v56, %v63
  %v76 = vadd.f32 %v57, %v65
  %v77 = vadd.f32 %v58, %v68
  %v78 = vadd.f32 %v59, %v70
  %vm79 = vcmask 1043456
  %v80 = vrot.slane %v10, 4
  %v81 = vrot.slane %v11, 4
  %v82 = vsel %vm79, %v80, %v81
  %v83 = vrot.slane %v12, 4
  %v84 = vsel %vm79, %v81, %v83
  %v85 = vrot.slane %v13, 4
  %v86 = vrot.slane %v14, 4
  %v87 = vsel %vm79, %v85, %v86
  %v88 = vrot.slane %v15, 4
  %v89 = vsel %vm79, %v86, %v88
  %v94 = vadd.f32 %v75, %v82
  %v95 = vadd.f32 %v76, %v84
  %v96 = vadd.f32 %v77, %v87
  %v97 = vadd.f32 %v78, %v89
  %v98 = vmul.f32 %v94, 0.2
  %v99 = vmul.f32 %v95, 0.2
  %v100 = vmul.f32 %v96, 0.2
  %v101 = vmul.f32 %v97, 0.2
  %vm102 = vcmask 523264
  %103 = vst.msk [vmem:[%s2] sm:$0xff] %vm102, %v98
  %104 = vst.msk [vmem:[%s2 + $0x8] sm:$0xff] %vm102, %v99
  %105 = vst.msk [vmem:[%s2 + $0x10] sm:$0xff] %vm102, %v100
  %106 = vst.msk [vmem:[%s2 + $0x18] sm:$0xff] %vm102, %v101
  %vm111 = vcmask 1041408
  %v112 = vrot.slane %v98, 6
  %v113 = vrot.slane %v99, 6
  %v114 = vsel %vm111, %v112, %v113
  %v115 = vrot.slane %v100, 6
  %v116 = vrot.slane %v101, 6
  %v117 = vsel %vm111, %v115, %v116
  %v124 = vsub.f32 %v10, %v112
  %v125 = vsub.f32 %v11, %v114
  %v126 = vsub.f32 %v12, %v113
  %v127 = vsub.f32 %v13, %v115
  %v128 = vsub.f32 %v14, %v117
  %v129 = vsub.f32 %v15, %v116
  %vm130 = vcmask 523266
  %131 = vst.msk [vmem:[%s1 - $0x2] sm:$0xfc] %vm130, %v124
  %132 = vst.msk [vmem:[%s1 + $0x6] sm:$0xff] %vm102, %v125
  %vm133 = vcmask 517120
  %134 = vst.msk [vmem:[%s1 + $0xe] sm:$0x3] %vm133, %v126
  %135 = vst.msk [vmem:[%s1 + $0xe] sm:$0xfc] %vm130, %v127
  %136 = vst.msk [vmem:[%s1 + $0x16] sm:$0xff] %vm102, %v128
  %137 = vst.msk [vmem:[%s1 + $0x1e] sm:$0x3] %vm133, %v129
  // Predicated region
  $region6: #{fedformer_forecast.55} parent=0 // pred_check
    _
  $region7: #{fedformer_forecast.55} parent=0 // pred_check_branch
    %139 = sbr.rel (0) target = $region9
  $region8: #{fedformer_forecast.55} parent=0 // pred_region
    _
  $region9: #{fedformer_forecast.55} parent=0 // pred_fallthru
    _
  // Predicated region
  $region10: #{fedformer_forecast.55} parent=0 // pred_check
    _
  $region11: #{fedformer_forecast.55} parent=0 // pred_check_branch
    %141 = sbr.rel (0) target = $region13
  $region12: #{fedformer_forecast.55} parent=0 // pred_region
    _
  $region13: #{fedformer_forecast.55} parent=0 // pred_fallthru
    _
  // Predicated region
  $region14: #{fedformer_forecast.55} parent=0 // pred_check
    _
  $region15: #{fedformer_forecast.55} parent=0 // pred_check_branch
    %143 = sbr.rel (0) target = $region17
  $region16: #{fedformer_forecast.55} parent=0 // pred_region
    _
  $region17: #{fedformer_forecast.55} parent=0 // pred_fallthru
    _
  // Predicated region
  $region18: #{fedformer_forecast.55} parent=0 // pred_check
    _
  $region19: #{fedformer_forecast.55} parent=0 // pred_check_branch
    %145 = sbr.rel (0) target = $region21
  $region20: #{fedformer_forecast.55} parent=0 // pred_region
    _
  $region21: #{fedformer_forecast.55} parent=0 // pred_fallthru
    _

// kernel: fedformer_forecast.58
$region0: #{fedformer_forecast.58}
  #allocation0 [shape = 'u32[]', space=smem, size = 0x4, offset = 0x4, fixed_abs, tag = 'smem constant byte address 0x4 - core index']
  #allocation1 [shape = 'u32[144,128]{1,0:T(1,128)}', space=vmem, size = 0x12000, scoped, tag = 'internal scratch']
  %s0 = inlined_call_operand.vmem [shape: f32[256,16], index: 0, kind: input, shape index: {}]
  %s1 = inlined_call_operand.vmem [shape: f32[16,16], index: 1, kind: input, shape index: {}]
  %s2 = inlined_call_operand.vmem [shape: f32[256,16], index: 2, kind: output, shape index: {}]
  %s3 = sld [smem:[#allocation0]]
  $region18: #{fedformer_forecast.58} parent=0
    _
  %s5 = ssub.s32 1, %s3
  %s6 = scalar_select 0, %s5, %s3
  // Predicated region
  $region2: #{fedformer_forecast.58} parent=0 // pred_check
    _
  $region3: #{fedformer_forecast.58} parent=0 // pred_check_branch
    %8 = sbr.rel (0) target = $region5
  $region4: #{fedformer_forecast.58} parent=0 // pred_region
    _
  $region5: #{fedformer_forecast.58} parent=0 // pred_fallthru
    _
  // Predicated region
  $region6: #{fedformer_forecast.58} parent=0 // pred_check
    _
  $region7: #{fedformer_forecast.58} parent=0 // pred_check_branch
    %10 = sbr.rel (0) target = $region9
  $region8: #{fedformer_forecast.58} parent=0 // pred_region
    _
  $region9: #{fedformer_forecast.58} parent=0 // pred_fallthru
    _
  %v11 = vld [vmem:[%s0] sm:$0xff]
  %v12 = vld [vmem:[%s0 + $0x8] sm:$0xff]
  %v13 = vld [vmem:[%s0 + $0x10] sm:$0xff]
  %v14 = vld [vmem:[%s0 + $0x18] sm:$0xff]
  %v15 = vld [vmem:[%s0 + $0x20] sm:$0xff]
  %v16 = vld [vmem:[%s0 + $0x28] sm:$0xff]
  %v17 = vld [vmem:[%s0 + $0x30] sm:$0xff]
  %v18 = vld [vmem:[%s0 + $0x38] sm:$0xff]
  %v19 = vld [vmem:[%s0 + $0x40] sm:$0xff]
  %v20 = vld [vmem:[%s0 + $0x48] sm:$0xff]
  %v21 = vld [vmem:[%s0 + $0x50] sm:$0xff]
  %v22 = vld [vmem:[%s0 + $0x58] sm:$0xff]
  %v23 = vld [vmem:[%s0 + $0x60] sm:$0xff]
  %v24 = vld [vmem:[%s0 + $0x68] sm:$0xff]
  %v25 = vld [vmem:[%s0 + $0x70] sm:$0xff]
  %v26 = vld [vmem:[%s0 + $0x78] sm:$0xff]
  %v27 = vld [vmem:[%s0 + $0x80] sm:$0xff]
  %v28 = vld [vmem:[%s0 + $0x88] sm:$0xff]
  %v29 = vld [vmem:[%s0 + $0x90] sm:$0xff]
  %v30 = vld [vmem:[%s0 + $0x98] sm:$0xff]
  %v31 = vld [vmem:[%s0 + $0xa0] sm:$0xff]
  %v32 = vld [vmem:[%s0 + $0xa8] sm:$0xff]
  %v33 = vld [vmem:[%s0 + $0xb0] sm:$0xff]
  %v34 = vld [vmem:[%s0 + $0xb8] sm:$0xff]
  %v35 = vld [vmem:[%s0 + $0xc0] sm:$0xff]
  %v36 = vld [vmem:[%s0 + $0xc8] sm:$0xff]
  %v37 = vld [vmem:[%s0 + $0xd0] sm:$0xff]
  %v38 = vld [vmem:[%s0 + $0xd8] sm:$0xff]
  %v39 = vld [vmem:[%s0 + $0xe0] sm:$0xff]
  %v40 = vld [vmem:[%s0 + $0xe8] sm:$0xff]
  %v41 = vld [vmem:[%s0 + $0xf0] sm:$0xff]
  %v42 = vld [vmem:[%s0 + $0xf8] sm:$0xff]
  %v43 = vld [vmem:[%s1] sm:$0xff]
  %v44 = vld [vmem:[%s1 + $0x8] sm:$0xff]
  %vm45 = vcmask 130048
  %v47 = vsel %vm45, %v11, 0
  %v50 = vsel %vm45, %v12, 0
  %v53 = vsel %vm45, %v13, 0
  %v56 = vsel %vm45, %v14, 0
  %v59 = vsel %vm45, %v15, 0
  %v62 = vsel %vm45, %v16, 0
  %v65 = vsel %vm45, %v17, 0
  %v68 = vsel %vm45, %v18, 0
  %v71 = vsel %vm45, %v19, 0
  %v74 = vsel %vm45, %v20, 0
  %v77 = vsel %vm45, %v21, 0
  %v80 = vsel %vm45, %v22, 0
  %v83 = vsel %vm45, %v23, 0
  %v86 = vsel %vm45, %v24, 0
  %v89 = vsel %vm45, %v25, 0
  %v92 = vsel %vm45, %v26, 0
  %v95 = vsel %vm45, %v27, 0
  %v98 = vsel %vm45, %v28, 0
  %v101 = vsel %vm45, %v29, 0
  %v104 = vsel %vm45, %v30, 0
  %v107 = vsel %vm45, %v31, 0
  %v110 = vsel %vm45, %v32, 0
  %v113 = vsel %vm45, %v33, 0
  %v116 = vsel %vm45, %v34, 0
  %v119 = vsel %vm45, %v35, 0
  %v122 = vsel %vm45, %v36, 0
  %v125 = vsel %vm45, %v37, 0
  %v128 = vsel %vm45, %v38, 0
  %v131 = vsel %vm45, %v39, 0
  %v134 = vsel %vm45, %v40, 0
  %v137 = vsel %vm45, %v41, 0
  %v140 = vsel %vm45, %v42, 0
  %142 = vmatprep.subr.mxu0 0.0
  %143 = vmatpush1.msra.mxu0 0.0
  %144 = vmatprep.subr.mxu0 0.0
  %145 = vmatpush1.msra.mxu0 0.0
  %146 = vmatprep.subr.mxu0 0.0
  %147 = vmatpush1.msra.mxu0 0.0
  %148 = vmatprep.subr.mxu0 0.0
  %149 = vmatpush1.msra.mxu0 0.0
  %150 = vmatprep.subr.mxu0 0.0
  %151 = vmatpush1.msra.mxu0 0.0
  %152 = vmatprep.subr.mxu0 0.0
  %153 = vmatpush1.msra.mxu0 0.0
  %154 = vmatprep.subr.mxu0 0.0
  %155 = vmatpush1.msra.mxu0 0.0
  %156 = vmatprep.subr.mxu0 0.0
  %157 = vmatpush1.msra.mxu0 0.0
  %158 = vmatprep.subr.mxu0 0.0
  %159 = vmatpush1.msra.mxu0 0.0
  %160 = vmatprep.subr.mxu0 0.0
  %161 = vmatpush1.msra.mxu0 0.0
  %162 = vmatprep.subr.mxu0 0.0
  %163 = vmatpush1.msra.mxu0 0.0
  %164 = vmatprep.subr.mxu0 0.0
  %165 = vmatpush1.msra.mxu0 0.0
  %166 = vmatprep.subr.mxu0 0.0
  %167 = vmatpush1.msra.mxu0 0.0
  %168 = vmatprep.subr.mxu0 0.0
  %169 = vmatpush1.msra.mxu0 0.0
  %170 = vmatprep.subr.mxu0 0.0
  %171 = vmatpush1.msra.mxu0 %v44
  %172 = vmatprep.subr.mxu0 0.0
  %173 = vmatpush1.msra.mxu0 %v43
  %174 = vmatprep.subr.mxu0 0.0
  %175 = vmatpush2.msra.mxu0 0.0
  %176 = vmatprep.subr.mxu0 0.0
  %177 = vmatpush2.msra.mxu0 0.0
  %178 = vmatprep.subr.mxu0 0.0
  %179 = vmatpush2.msra.mxu0 0.0
  %180 = vmatprep.subr.mxu0 0.0
  %181 = vmatpush2.msra.mxu0 0.0
  %182 = vmatprep.subr.mxu0 0.0
  %183 = vmatpush2.msra.mxu0 0.0
  %184 = vmatprep.subr.mxu0 0.0
  %185 = vmatpush2.msra.mxu0 0.0
  %186 = vmatprep.subr.mxu0 0.0
  %187 = vmatpush2.msra.mxu0 0.0
  %188 = vmatprep.subr.mxu0 0.0
  %189 = vmatpush2.msra.mxu0 0.0
  %190 = vmatprep.subr.mxu0 0.0
  %191 = vmatpush2.msra.mxu0 0.0
  %192 = vmatprep.subr.mxu0 0.0
  %193 = vmatpush2.msra.mxu0 0.0
  %194 = vmatprep.subr.mxu0 0.0
  %195 = vmatpush2.msra.mxu0 0.0
  %196 = vmatprep.subr.mxu0 0.0
  %197 = vmatpush2.msra.mxu0 0.0
  %198 = vmatprep.subr.mxu0 0.0
  %199 = vmatpush2.msra.mxu0 0.0
  %200 = vmatprep.subr.mxu0 0.0
  %201 = vmatpush2.msra.mxu0 0.0
  %202 = vmatprep.subr.mxu0 0.0
  %203 = vmatpush2.msra.mxu0 0.0
  %204 = vmatprep.subr.mxu0 0.0
  %205 = vmatpush2.msra.mxu0 0.0
  %206 = vmatprep.mubr.f32.mxu0 0.0
  %207 = vmatmul.mubr.f32.gmra.mxu0 %v47
  %v208 = vpop.f32.mrf.mxu0
  %v209 = vadd.f32 0.0, %v208
  %v210 = vpop.f32.mrf.mxu0
  %211 = vmatprep.mubr.f32.mxu0 0.0
  %212 = vmatmul.mubr.f32.gmra.mxu0 %v50
  %v213 = vpop.f32.mrf.mxu0
  %v214 = vadd.f32 0.0, %v213
  %v215 = vpop.f32.mrf.mxu0
  %216 = vmatprep.mubr.f32.mxu0 0.0
  %217 = vmatmul.mubr.f32.gmra.mxu0 %v53
  %v218 = vpop.f32.mrf.mxu0
  %v219 = vadd.f32 0.0, %v218
  %v220 = vpop.f32.mrf.mxu0
  %221 = vmatprep.mubr.f32.mxu0 0.0
  %222 = vmatmul.mubr.f32.gmra.mxu0 %v56
  %v223 = vpop.f32.mrf.mxu0
  %v224 = vadd.f32 0.0, %v223
  %v225 = vpop.f32.mrf.mxu0
  %226 = vmatprep.mubr.f32.mxu0 0.0
  %227 = vmatmul.mubr.f32.gmra.mxu0 %v59
  %v228 = vpop.f32.mrf.mxu0
  %v229 = vadd.f32 0.0, %v228
  %v230 = vpop.f32.mrf.mxu0
  %231 = vmatprep.mubr.f32.mxu0 0.0
  %232 = vmatmul.mubr.f32.gmra.mxu0 %v62
  %v233 = vpop.f32.mrf.mxu0
  %v234 = vadd.f32 0.0, %v233
  %v235 = vpop.f32.mrf.mxu0
  %236 = vmatprep.mubr.f32.mxu0 0.0
  %237 = vmatmul.mubr.f32.gmra.mxu0 %v65
  %v238 = vpop.f32.mrf.mxu0
  %v239 = vadd.f32 0.0, %v238
  %v240 = vpop.f32.mrf.mxu0
  %241 = vmatprep.mubr.f32.mxu0 0.0
  %242 = vmatmul.mubr.f32.gmra.mxu0 %v68
  %v243 = vpop.f32.mrf.mxu0
  %v244 = vadd.f32 0.0, %v243
  %v245 = vpop.f32.mrf.mxu0
  %246 = vmatprep.mubr.f32.mxu0 0.0
  %247 = vmatmul.mubr.f32.gmra.mxu0 %v71
  %v248 = vpop.f32.mrf.mxu0
  %v249 = vadd.f32 0.0, %v248
  %v250 = vpop.f32.mrf.mxu0
  %251 = vmatprep.mubr.f32.mxu0 0.0
  %252 = vmatmul.mubr.f32.gmra.mxu0 %v74
  %v253 = vpop.f32.mrf.mxu0
  %v254 = vadd.f32 0.0, %v253
  %v255 = vpop.f32.mrf.mxu0
  %256 = vmatprep.mubr.f32.mxu0 0.0
  %257 = vmatmul.mubr.f32.gmra.mxu0 %v77
  %v258 = vpop.f32.mrf.mxu0
  %v259 = vadd.f32 0.0, %v258
  %v260 = vpop.f32.mrf.mxu0
  %261 = vmatprep.mubr.f32.mxu0 0.0
  %262 = vmatmul.mubr.f32.gmra.mxu0 %v80
  %v263 = vpop.f32.mrf.mxu0
  %v264 = vadd.f32 0.0, %v263
  %v265 = vpop.f32.mrf.mxu0
  %266 = vmatprep.mubr.f32.mxu0 0.0
  %267 = vmatmul.mubr.f32.gmra.mxu0 %v83
  %v268 = vpop.f32.mrf.mxu0
  %v269 = vadd.f32 0.0, %v268
  %v270 = vpop.f32.mrf.mxu0
  %271 = vmatprep.mubr.f32.mxu0 0.0
  %272 = vmatmul.mubr.f32.gmra.mxu0 %v86
  %v273 = vpop.f32.mrf.mxu0
  %v274 = vadd.f32 0.0, %v273
  %v275 = vpop.f32.mrf.mxu0
  %276 = vmatprep.mubr.f32.mxu0 0.0
  %277 = vmatmul.mubr.f32.gmra.mxu0 %v89
  %v278 = vpop.f32.mrf.mxu0
  %v279 = vadd.f32 0.0, %v278
  %v280 = vpop.f32.mrf.mxu0
  %281 = vmatprep.mubr.f32.mxu0 0.0
  %282 = vmatmul.mubr.f32.gmra.mxu0 %v92
  %v283 = vpop.f32.mrf.mxu0
  %v284 = vadd.f32 0.0, %v283
  %v285 = vpop.f32.mrf.mxu0
  %286 = vmatprep.mubr.f32.mxu0 0.0
  %287 = vmatmul.mubr.f32.gmra.mxu0 %v95
  %v288 = vpop.f32.mrf.mxu0
  %v289 = vadd.f32 0.0, %v288
  %v290 = vpop.f32.mrf.mxu0
  %291 = vmatprep.mubr.f32.mxu0 0.0
  %292 = vmatmul.mubr.f32.gmra.mxu0 %v98
  %v293 = vpop.f32.mrf.mxu0
  %v294 = vadd.f32 0.0, %v293
  %v295 = vpop.f32.mrf.mxu0
  %296 = vmatprep.mubr.f32.mxu0 0.0
  %297 = vmatmul.mubr.f32.gmra.mxu0 %v101
  %v298 = vpop.f32.mrf.mxu0
  %v299 = vadd.f32 0.0, %v298
  %v300 = vpop.f32.mrf.mxu0
  %301 = vmatprep.mubr.f32.mxu0 0.0
  %302 = vmatmul.mubr.f32.gmra.mxu0 %v104
  %v303 = vpop.f32.mrf.mxu0
  %v304 = vadd.f32 0.0, %v303
  %v305 = vpop.f32.mrf.mxu0
  %306 = vmatprep.mubr.f32.mxu0 0.0
  %307 = vmatmul.mubr.f32.gmra.mxu0 %v107
  %v308 = vpop.f32.mrf.mxu0
  %v309 = vadd.f32 0.0, %v308
  %v310 = vpop.f32.mrf.mxu0
  %311 = vmatprep.mubr.f32.mxu0 0.0
  %312 = vmatmul.mubr.f32.gmra.mxu0 %v110
  %v313 = vpop.f32.mrf.mxu0
  %v314 = vadd.f32 0.0, %v313
  %v315 = vpop.f32.mrf.mxu0
  %316 = vmatprep.mubr.f32.mxu0 0.0
  %317 = vmatmul.mubr.f32.gmra.mxu0 %v113
  %v318 = vpop.f32.mrf.mxu0
  %v319 = vadd.f32 0.0, %v318
  %v320 = vpop.f32.mrf.mxu0
  %321 = vmatprep.mubr.f32.mxu0 0.0
  %322 = vmatmul.mubr.f32.gmra.mxu0 %v116
  %v323 = vpop.f32.mrf.mxu0
  %v324 = vadd.f32 0.0, %v323
  %v325 = vpop.f32.mrf.mxu0
  %326 = vmatprep.mubr.f32.mxu0 0.0
  %327 = vmatmul.mubr.f32.gmra.mxu0 %v119
  %v328 = vpop.f32.mrf.mxu0
  %v329 = vadd.f32 0.0, %v328
  %v330 = vpop.f32.mrf.mxu0
  %331 = vmatprep.mubr.f32.mxu0 0.0
  %332 = vmatmul.mubr.f32.gmra.mxu0 %v122
  %v333 = vpop.f32.mrf.mxu0
  %v334 = vadd.f32 0.0, %v333
  %v335 = vpop.f32.mrf.mxu0
  %336 = vmatprep.mubr.f32.mxu0 0.0
  %337 = vmatmul.mubr.f32.gmra.mxu0 %v125
  %v338 = vpop.f32.mrf.mxu0
  %v339 = vadd.f32 0.0, %v338
  %v340 = vpop.f32.mrf.mxu0
  %341 = vmatprep.mubr.f32.mxu0 0.0
  %342 = vmatmul.mubr.f32.gmra.mxu0 %v128
  %v343 = vpop.f32.mrf.mxu0
  %v344 = vadd.f32 0.0, %v343
  %v345 = vpop.f32.mrf.mxu0
  %346 = vmatprep.mubr.f32.mxu0 0.0
  %347 = vmatmul.mubr.f32.gmra.mxu0 %v131
  %v348 = vpop.f32.mrf.mxu0
  %v349 = vadd.f32 0.0, %v348
  %v350 = vpop.f32.mrf.mxu0
  %351 = vmatprep.mubr.f32.mxu0 0.0
  %352 = vmatmul.mubr.f32.gmra.mxu0 %v134
  %v353 = vpop.f32.mrf.mxu0
  %v354 = vadd.f32 0.0, %v353
  %v355 = vpop.f32.mrf.mxu0
  %356 = vmatprep.mubr.f32.mxu0 0.0
  %357 = vmatmul.mubr.f32.gmra.mxu0 %v137
  %v358 = vpop.f32.mrf.mxu0
  %v359 = vadd.f32 0.0, %v358
  %v360 = vpop.f32.mrf.mxu0
  %361 = vmatprep.mubr.f32.mxu0 0.0
  %362 = vmatmul.mubr.f32.gmra.mxu0 %v140
  %v363 = vpop.f32.mrf.mxu0
  %v364 = vadd.f32 0.0, %v363
  %v365 = vpop.f32.mrf.mxu0
  %366 = vdwg.mxu0
  %367 = vst.msk [vmem:[%s2] sm:$0xff] %vm45, %v209
  %368 = vst.msk [vmem:[%s2 + $0x8] sm:$0xff] %vm45, %v214
  %369 = vst.msk [vmem:[%s2 + $0x10] sm:$0xff] %vm45, %v219
  %370 = vst.msk [vmem:[%s2 + $0x18] sm:$0xff] %vm45, %v224
  %371 = vst.msk [vmem:[%s2 + $0x20] sm:$0xff] %vm45, %v229
  %372 = vst.msk [vmem:[%s2 + $0x28] sm:$0xff] %vm45, %v234
  %373 = vst.msk [vmem:[%s2 + $0x30] sm:$0xff] %vm45, %v239
  %374 = vst.msk [vmem:[%s2 + $0x38] sm:$0xff] %vm45, %v244
  %375 = vst.msk [vmem:[%s2 + $0x40] sm:$0xff] %vm45, %v249
  %376 = vst.msk [vmem:[%s2 + $0x48] sm:$0xff] %vm45, %v254
  %377 = vst.msk [vmem:[%s2 + $0x50] sm:$0xff] %vm45, %v259
  %378 = vst.msk [vmem:[%s2 + $0x58] sm:$0xff] %vm45, %v264
  %379 = vst.msk [vmem:[%s2 + $0x60] sm:$0xff] %vm45, %v269
  %380 = vst.msk [vmem:[%s2 + $0x68] sm:$0xff] %vm45, %v274
  %381 = vst.msk [vmem:[%s2 + $0x70] sm:$0xff] %vm45, %v279
  %382 = vst.msk [vmem:[%s2 + $0x78] sm:$0xff] %vm45, %v284
  %383 = vst.msk [vmem:[%s2 + $0x80] sm:$0xff] %vm45, %v289
  %384 = vst.msk [vmem:[%s2 + $0x88] sm:$0xff] %vm45, %v294
  %385 = vst.msk [vmem:[%s2 + $0x90] sm:$0xff] %vm45, %v299
  %386 = vst.msk [vmem:[%s2 + $0x98] sm:$0xff] %vm45, %v304
  %387 = vst.msk [vmem:[%s2 + $0xa0] sm:$0xff] %vm45, %v309
  %388 = vst.msk [vmem:[%s2 + $0xa8] sm:$0xff] %vm45, %v314
  %389 = vst.msk [vmem:[%s2 + $0xb0] sm:$0xff] %vm45, %v319
  %390 = vst.msk [vmem:[%s2 + $0xb8] sm:$0xff] %vm45, %v324
  %391 = vst.msk [vmem:[%s2 + $0xc0] sm:$0xff] %vm45, %v329
  %392 = vst.msk [vmem:[%s2 + $0xc8] sm:$0xff] %vm45, %v334
  %393 = vst.msk [vmem:[%s2 + $0xd0] sm:$0xff] %vm45, %v339
  %394 = vst.msk [vmem:[%s2 + $0xd8] sm:$0xff] %vm45, %v344
  %395 = vst.msk [vmem:[%s2 + $0xe0] sm:$0xff] %vm45, %v349
  %396 = vst.msk [vmem:[%s2 + $0xe8] sm:$0xff] %vm45, %v354
  %397 = vst.msk [vmem:[%s2 + $0xf0] sm:$0xff] %vm45, %v359
  %398 = vst.msk [vmem:[%s2 + $0xf8] sm:$0xff] %vm45, %v364
  // Predicated region
  $region10: #{fedformer_forecast.58} parent=0 // pred_check
    _
  $region11: #{fedformer_forecast.58} parent=0 // pred_check_branch
    %400 = sbr.rel (0) target = $region13
  $region12: #{fedformer_forecast.58} parent=0 // pred_region
    _
  $region13: #{fedformer_forecast.58} parent=0 // pred_fallthru
    _
  // Predicated region
  $region14: #{fedformer_forecast.58} parent=0 // pred_check
    _
  $region15: #{fedformer_forecast.58} parent=0 // pred_check_branch
    %402 = sbr.rel (0) target = $region17
  $region16: #{fedformer_forecast.58} parent=0 // pred_region
    _
  $region17: #{fedformer_forecast.58} parent=0 // pred_fallthru
    _

// kernel: fedformer_forecast.59
$region0: #{fedformer_forecast.59}
  #allocation0 [shape = 'u32[]', space=smem, size = 0x4, offset = 0x4, fixed_abs, tag = 'smem constant byte address 0x4 - core index']
  #allocation1 [shape = 'u32[144,128]{1,0:T(1,128)}', space=vmem, size = 0x12000, scoped, tag = 'internal scratch']
  %s0 = inlined_call_operand.vmem [shape: f32[128,16], index: 0, kind: input, shape index: {}]
  %s1 = inlined_call_operand.vmem [shape: f32[16,16], index: 1, kind: input, shape index: {}]
  %s2 = inlined_call_operand.vmem [shape: f32[128,16], index: 2, kind: output, shape index: {}]
  %s3 = sld [smem:[#allocation0]]
  $region18: #{fedformer_forecast.59} parent=0
    _
  %s5 = ssub.s32 1, %s3
  %s6 = scalar_select 0, %s5, %s3
  // Predicated region
  $region2: #{fedformer_forecast.59} parent=0 // pred_check
    _
  $region3: #{fedformer_forecast.59} parent=0 // pred_check_branch
    %8 = sbr.rel (0) target = $region5
  $region4: #{fedformer_forecast.59} parent=0 // pred_region
    _
  $region5: #{fedformer_forecast.59} parent=0 // pred_fallthru
    _
  // Predicated region
  $region6: #{fedformer_forecast.59} parent=0 // pred_check
    _
  $region7: #{fedformer_forecast.59} parent=0 // pred_check_branch
    %10 = sbr.rel (0) target = $region9
  $region8: #{fedformer_forecast.59} parent=0 // pred_region
    _
  $region9: #{fedformer_forecast.59} parent=0 // pred_fallthru
    _
  %v11 = vld [vmem:[%s0] sm:$0xff]
  %v12 = vld [vmem:[%s0 + $0x8] sm:$0xff]
  %v13 = vld [vmem:[%s0 + $0x10] sm:$0xff]
  %v14 = vld [vmem:[%s0 + $0x18] sm:$0xff]
  %v15 = vld [vmem:[%s0 + $0x20] sm:$0xff]
  %v16 = vld [vmem:[%s0 + $0x28] sm:$0xff]
  %v17 = vld [vmem:[%s0 + $0x30] sm:$0xff]
  %v18 = vld [vmem:[%s0 + $0x38] sm:$0xff]
  %v19 = vld [vmem:[%s0 + $0x40] sm:$0xff]
  %v20 = vld [vmem:[%s0 + $0x48] sm:$0xff]
  %v21 = vld [vmem:[%s0 + $0x50] sm:$0xff]
  %v22 = vld [vmem:[%s0 + $0x58] sm:$0xff]
  %v23 = vld [vmem:[%s0 + $0x60] sm:$0xff]
  %v24 = vld [vmem:[%s0 + $0x68] sm:$0xff]
  %v25 = vld [vmem:[%s0 + $0x70] sm:$0xff]
  %v26 = vld [vmem:[%s0 + $0x78] sm:$0xff]
  %v27 = vld [vmem:[%s1] sm:$0xff]
  %v28 = vld [vmem:[%s1 + $0x8] sm:$0xff]
  %vm29 = vcmask 130048
  %v31 = vsel %vm29, %v11, 0
  %v34 = vsel %vm29, %v12, 0
  %v37 = vsel %vm29, %v13, 0
  %v40 = vsel %vm29, %v14, 0
  %v43 = vsel %vm29, %v15, 0
  %v46 = vsel %vm29, %v16, 0
  %v49 = vsel %vm29, %v17, 0
  %v52 = vsel %vm29, %v18, 0
  %v55 = vsel %vm29, %v19, 0
  %v58 = vsel %vm29, %v20, 0
  %v61 = vsel %vm29, %v21, 0
  %v64 = vsel %vm29, %v22, 0
  %v67 = vsel %vm29, %v23, 0
  %v70 = vsel %vm29, %v24, 0
  %v73 = vsel %vm29, %v25, 0
  %v76 = vsel %vm29, %v26, 0
  %78 = vmatprep.subr.mxu0 0.0
  %79 = vmatpush1.msra.mxu0 0.0
  %80 = vmatprep.subr.mxu0 0.0
  %81 = vmatpush1.msra.mxu0 0.0
  %82 = vmatprep.subr.mxu0 0.0
  %83 = vmatpush1.msra.mxu0 0.0
  %84 = vmatprep.subr.mxu0 0.0
  %85 = vmatpush1.msra.mxu0 0.0
  %86 = vmatprep.subr.mxu0 0.0
  %87 = vmatpush1.msra.mxu0 0.0
  %88 = vmatprep.subr.mxu0 0.0
  %89 = vmatpush1.msra.mxu0 0.0
  %90 = vmatprep.subr.mxu0 0.0
  %91 = vmatpush1.msra.mxu0 0.0
  %92 = vmatprep.subr.mxu0 0.0
  %93 = vmatpush1.msra.mxu0 0.0
  %94 = vmatprep.subr.mxu0 0.0
  %95 = vmatpush1.msra.mxu0 0.0
  %96 = vmatprep.subr.mxu0 0.0
  %97 = vmatpush1.msra.mxu0 0.0
  %98 = vmatprep.subr.mxu0 0.0
  %99 = vmatpush1.msra.mxu0 0.0
  %100 = vmatprep.subr.mxu0 0.0
  %101 = vmatpush1.msra.mxu0 0.0
  %102 = vmatprep.subr.mxu0 0.0
  %103 = vmatpush1.msra.mxu0 0.0
  %104 = vmatprep.subr.mxu0 0.0
  %105 = vmatpush1.msra.mxu0 0.0
  %106 = vmatprep.subr.mxu0 0.0
  %107 = vmatpush1.msra.mxu0 %v28
  %108 = vmatprep.subr.mxu0 0.0
  %109 = vmatpush1.msra.mxu0 %v27
  %110 = vmatprep.subr.mxu0 0.0
  %111 = vmatpush2.msra.mxu0 0.0
  %112 = vmatprep.subr.mxu0 0.0
  %113 = vmatpush2.msra.mxu0 0.0
  %114 = vmatprep.subr.mxu0 0.0
  %115 = vmatpush2.msra.mxu0 0.0
  %116 = vmatprep.subr.mxu0 0.0
  %117 = vmatpush2.msra.mxu0 0.0
  %118 = vmatprep.subr.mxu0 0.0
  %119 = vmatpush2.msra.mxu0 0.0
  %120 = vmatprep.subr.mxu0 0.0
  %121 = vmatpush2.msra.mxu0 0.0
  %122 = vmatprep.subr.mxu0 0.0
  %123 = vmatpush2.msra.mxu0 0.0
  %124 = vmatprep.subr.mxu0 0.0
  %125 = vmatpush2.msra.mxu0 0.0
  %126 = vmatprep.subr.mxu0 0.0
  %127 = vmatpush2.msra.mxu0 0.0
  %128 = vmatprep.subr.mxu0 0.0
  %129 = vmatpush2.msra.mxu0 0.0
  %130 = vmatprep.subr.mxu0 0.0
  %131 = vmatpush2.msra.mxu0 0.0
  %132 = vmatprep.subr.mxu0 0.0
  %133 = vmatpush2.msra.mxu0 0.0
  %134 = vmatprep.subr.mxu0 0.0
  %135 = vmatpush2.msra.mxu0 0.0
  %136 = vmatprep.subr.mxu0 0.0
  %137 = vmatpush2.msra.mxu0 0.0
  %138 = vmatprep.subr.mxu0 0.0
  %139 = vmatpush2.msra.mxu0 0.0
  %140 = vmatprep.subr.mxu0 0.0
  %141 = vmatpush2.msra.mxu0 0.0
  %142 = vmatprep.mubr.f32.mxu0 0.0
  %143 = vmatmul.mubr.f32.gmra.mxu0 %v31
  %v144 = vpop.f32.mrf.mxu0
  %v145 = vadd.f32 0.0, %v144
  %v146 = vpop.f32.mrf.mxu0
  %147 = vmatprep.mubr.f32.mxu0 0.0
  %148 = vmatmul.mubr.f32.gmra.mxu0 %v34
  %v149 = vpop.f32.mrf.mxu0
  %v150 = vadd.f32 0.0, %v149
  %v151 = vpop.f32.mrf.mxu0
  %152 = vmatprep.mubr.f32.mxu0 0.0
  %153 = vmatmul.mubr.f32.gmra.mxu0 %v37
  %v154 = vpop.f32.mrf.mxu0
  %v155 = vadd.f32 0.0, %v154
  %v156 = vpop.f32.mrf.mxu0
  %157 = vmatprep.mubr.f32.mxu0 0.0
  %158 = vmatmul.mubr.f32.gmra.mxu0 %v40
  %v159 = vpop.f32.mrf.mxu0
  %v160 = vadd.f32 0.0, %v159
  %v161 = vpop.f32.mrf.mxu0
  %162 = vmatprep.mubr.f32.mxu0 0.0
  %163 = vmatmul.mubr.f32.gmra.mxu0 %v43
  %v164 = vpop.f32.mrf.mxu0
  %v165 = vadd.f32 0.0, %v164
  %v166 = vpop.f32.mrf.mxu0
  %167 = vmatprep.mubr.f32.mxu0 0.0
  %168 = vmatmul.mubr.f32.gmra.mxu0 %v46
  %v169 = vpop.f32.mrf.mxu0
  %v170 = vadd.f32 0.0, %v169
  %v171 = vpop.f32.mrf.mxu0
  %172 = vmatprep.mubr.f32.mxu0 0.0
  %173 = vmatmul.mubr.f32.gmra.mxu0 %v49
  %v174 = vpop.f32.mrf.mxu0
  %v175 = vadd.f32 0.0, %v174
  %v176 = vpop.f32.mrf.mxu0
  %177 = vmatprep.mubr.f32.mxu0 0.0
  %178 = vmatmul.mubr.f32.gmra.mxu0 %v52
  %v179 = vpop.f32.mrf.mxu0
  %v180 = vadd.f32 0.0, %v179
  %v181 = vpop.f32.mrf.mxu0
  %182 = vmatprep.mubr.f32.mxu0 0.0
  %183 = vmatmul.mubr.f32.gmra.mxu0 %v55
  %v184 = vpop.f32.mrf.mxu0
  %v185 = vadd.f32 0.0, %v184
  %v186 = vpop.f32.mrf.mxu0
  %187 = vmatprep.mubr.f32.mxu0 0.0
  %188 = vmatmul.mubr.f32.gmra.mxu0 %v58
  %v189 = vpop.f32.mrf.mxu0
  %v190 = vadd.f32 0.0, %v189
  %v191 = vpop.f32.mrf.mxu0
  %192 = vmatprep.mubr.f32.mxu0 0.0
  %193 = vmatmul.mubr.f32.gmra.mxu0 %v61
  %v194 = vpop.f32.mrf.mxu0
  %v195 = vadd.f32 0.0, %v194
  %v196 = vpop.f32.mrf.mxu0
  %197 = vmatprep.mubr.f32.mxu0 0.0
  %198 = vmatmul.mubr.f32.gmra.mxu0 %v64
  %v199 = vpop.f32.mrf.mxu0
  %v200 = vadd.f32 0.0, %v199
  %v201 = vpop.f32.mrf.mxu0
  %202 = vmatprep.mubr.f32.mxu0 0.0
  %203 = vmatmul.mubr.f32.gmra.mxu0 %v67
  %v204 = vpop.f32.mrf.mxu0
  %v205 = vadd.f32 0.0, %v204
  %v206 = vpop.f32.mrf.mxu0
  %207 = vmatprep.mubr.f32.mxu0 0.0
  %208 = vmatmul.mubr.f32.gmra.mxu0 %v70
  %v209 = vpop.f32.mrf.mxu0
  %v210 = vadd.f32 0.0, %v209
  %v211 = vpop.f32.mrf.mxu0
  %212 = vmatprep.mubr.f32.mxu0 0.0
  %213 = vmatmul.mubr.f32.gmra.mxu0 %v73
  %v214 = vpop.f32.mrf.mxu0
  %v215 = vadd.f32 0.0, %v214
  %v216 = vpop.f32.mrf.mxu0
  %217 = vmatprep.mubr.f32.mxu0 0.0
  %218 = vmatmul.mubr.f32.gmra.mxu0 %v76
  %v219 = vpop.f32.mrf.mxu0
  %v220 = vadd.f32 0.0, %v219
  %v221 = vpop.f32.mrf.mxu0
  %222 = vdwg.mxu0
  %223 = vst.msk [vmem:[%s2] sm:$0xff] %vm29, %v145
  %224 = vst.msk [vmem:[%s2 + $0x8] sm:$0xff] %vm29, %v150
  %225 = vst.msk [vmem:[%s2 + $0x10] sm:$0xff] %vm29, %v155
  %226 = vst.msk [vmem:[%s2 + $0x18] sm:$0xff] %vm29, %v160
  %227 = vst.msk [vmem:[%s2 + $0x20] sm:$0xff] %vm29, %v165
  %228 = vst.msk [vmem:[%s2 + $0x28] sm:$0xff] %vm29, %v170
  %229 = vst.msk [vmem:[%s2 + $0x30] sm:$0xff] %vm29, %v175
  %230 = vst.msk [vmem:[%s2 + $0x38] sm:$0xff] %vm29, %v180
  %231 = vst.msk [vmem:[%s2 + $0x40] sm:$0xff] %vm29, %v185
  %232 = vst.msk [vmem:[%s2 + $0x48] sm:$0xff] %vm29, %v190
  %233 = vst.msk [vmem:[%s2 + $0x50] sm:$0xff] %vm29, %v195
  %234 = vst.msk [vmem:[%s2 + $0x58] sm:$0xff] %vm29, %v200
  %235 = vst.msk [vmem:[%s2 + $0x60] sm:$0xff] %vm29, %v205
  %236 = vst.msk [vmem:[%s2 + $0x68] sm:$0xff] %vm29, %v210
  %237 = vst.msk [vmem:[%s2 + $0x70] sm:$0xff] %vm29, %v215
  %238 = vst.msk [vmem:[%s2 + $0x78] sm:$0xff] %vm29, %v220
  // Predicated region
  $region10: #{fedformer_forecast.59} parent=0 // pred_check
    _
  $region11: #{fedformer_forecast.59} parent=0 // pred_check_branch
    %240 = sbr.rel (0) target = $region13
  $region12: #{fedformer_forecast.59} parent=0 // pred_region
    _
  $region13: #{fedformer_forecast.59} parent=0 // pred_fallthru
    _
  // Predicated region
  $region14: #{fedformer_forecast.59} parent=0 // pred_check
    _
  $region15: #{fedformer_forecast.59} parent=0 // pred_check_branch
    %242 = sbr.rel (0) target = $region17
  $region16: #{fedformer_forecast.59} parent=0 // pred_region
    _
  $region17: #{fedformer_forecast.59} parent=0 // pred_fallthru
    _

// kernel: fedformer_forecast.65
$region0: #{fedformer_forecast.65}
  #allocation0 [shape = 'u32[]', space=smem, size = 0x4, offset = 0x4, fixed_abs, tag = 'smem constant byte address 0x4 - core index']
  #allocation1 [shape = 'u32[144,128]{1,0:T(1,128)}', space=vmem, size = 0x12000, scoped, tag = 'internal scratch']
  %s0 = inlined_call_operand.vmem [shape: f32[32,192], index: 0, kind: input, shape index: {}]
  %s1 = inlined_call_operand.vmem [shape: f32[192,4], index: 1, kind: input, shape index: {}]
  %s2 = inlined_call_operand.vmem [shape: f32[32,4], index: 2, kind: output, shape index: {}]
  %s3 = sld [smem:[#allocation0]]
  $region18: #{fedformer_forecast.65} parent=0
    _
  %s5 = ssub.s32 1, %s3
  %s6 = scalar_select 0, %s5, %s3
  // Predicated region
  $region2: #{fedformer_forecast.65} parent=0 // pred_check
    _
  $region3: #{fedformer_forecast.65} parent=0 // pred_check_branch
    %8 = sbr.rel (0) target = $region5
  $region4: #{fedformer_forecast.65} parent=0 // pred_region
    _
  $region5: #{fedformer_forecast.65} parent=0 // pred_fallthru
    _
  // Predicated region
  $region6: #{fedformer_forecast.65} parent=0 // pred_check
    _
  $region7: #{fedformer_forecast.65} parent=0 // pred_check_branch
    %10 = sbr.rel (0) target = $region9
  $region8: #{fedformer_forecast.65} parent=0 // pred_region
    _
  $region9: #{fedformer_forecast.65} parent=0 // pred_fallthru
    _
  %v11 = vld [vmem:[%s0] sm:$0xff]
  %v12 = vld [vmem:[%s0 + $0x8] sm:$0xff]
  %v13 = vld [vmem:[%s0 + $0x10] sm:$0xff]
  %v14 = vld [vmem:[%s0 + $0x18] sm:$0xff]
  %v15 = vld [vmem:[%s0 + $0x20] sm:$0xff]
  %v16 = vld [vmem:[%s0 + $0x28] sm:$0xff]
  %v17 = vld [vmem:[%s0 + $0x30] sm:$0xff]
  %v18 = vld [vmem:[%s0 + $0x38] sm:$0xff]
  %v19 = vld [vmem:[%s1] sm:$0xff]
  %v20 = vld [vmem:[%s1 + $0x8] sm:$0xff]
  %v21 = vld [vmem:[%s1 + $0x10] sm:$0xff]
  %v22 = vld [vmem:[%s1 + $0x18] sm:$0xff]
  %v23 = vld [vmem:[%s1 + $0x20] sm:$0xff]
  %v24 = vld [vmem:[%s1 + $0x28] sm:$0xff]
  %v25 = vld [vmem:[%s1 + $0x30] sm:$0xff]
  %v26 = vld [vmem:[%s1 + $0x38] sm:$0xff]
  %v27 = vld [vmem:[%s1 + $0x40] sm:$0xff]
  %v28 = vld [vmem:[%s1 + $0x48] sm:$0xff]
  %v29 = vld [vmem:[%s1 + $0x50] sm:$0xff]
  %v30 = vld [vmem:[%s1 + $0x58] sm:$0xff]
  %v31 = vld [vmem:[%s1 + $0x60] sm:$0xff]
  %v32 = vld [vmem:[%s1 + $0x68] sm:$0xff]
  %v33 = vld [vmem:[%s1 + $0x70] sm:$0xff]
  %v34 = vld [vmem:[%s1 + $0x78] sm:$0xff]
  %v35 = vld [vmem:[%s1 + $0x80] sm:$0xff]
  %v36 = vld [vmem:[%s1 + $0x88] sm:$0xff]
  %v37 = vld [vmem:[%s1 + $0x90] sm:$0xff]
  %v38 = vld [vmem:[%s1 + $0x98] sm:$0xff]
  %v39 = vld [vmem:[%s1 + $0xa0] sm:$0xff]
  %v40 = vld [vmem:[%s1 + $0xa8] sm:$0xff]
  %v41 = vld [vmem:[%s1 + $0xb0] sm:$0xff]
  %v42 = vld [vmem:[%s1 + $0xb8] sm:$0xff]
  %vm43 = vcmask 523264
  %v45 = vsel %vm43, %v12, 0
  %v48 = vsel %vm43, %v14, 0
  %v51 = vsel %vm43, %v16, 0
  %v54 = vsel %vm43, %v18, 0
  %56 = vmatprep.subr.mxu0 0.0
  %57 = vmatpush1.msra.mxu0 %v34
  %58 = vmatprep.subr.mxu0 0.0
  %59 = vmatpush1.msra.mxu0 %v33
  %60 = vmatprep.subr.mxu0 0.0
  %61 = vmatpush1.msra.mxu0 %v32
  %62 = vmatprep.subr.mxu0 0.0
  %63 = vmatpush1.msra.mxu0 %v31
  %64 = vmatprep.subr.mxu0 0.0
  %65 = vmatpush1.msra.mxu0 %v30
  %66 = vmatprep.subr.mxu0 0.0
  %67 = vmatpush1.msra.mxu0 %v29
  %68 = vmatprep.subr.mxu0 0.0
  %69 = vmatpush1.msra.mxu0 %v28
  %70 = vmatprep.subr.mxu0 0.0
  %71 = vmatpush1.msra.mxu0 %v27
  %72 = vmatprep.subr.mxu0 0.0
  %73 = vmatpush1.msra.mxu0 %v26
  %74 = vmatprep.subr.mxu0 0.0
  %75 = vmatpush1.msra.mxu0 %v25
  %76 = vmatprep.subr.mxu0 0.0
  %77 = vmatpush1.msra.mxu0 %v24
  %78 = vmatprep.subr.mxu0 0.0
  %79 = vmatpush1.msra.mxu0 %v23
  %80 = vmatprep.subr.mxu0 0.0
  %81 = vmatpush1.msra.mxu0 %v22
  %82 = vmatprep.subr.mxu0 0.0
  %83 = vmatpush1.msra.mxu0 %v21
  %84 = vmatprep.subr.mxu0 0.0
  %85 = vmatpush1.msra.mxu0 %v20
  %86 = vmatprep.subr.mxu0 0.0
  %87 = vmatpush1.msra.mxu0 %v19
  %88 = vmatprep.subr.mxu0 0.0
  %89 = vmatpush2.msra.mxu0 0.0
  %90 = vmatprep.subr.mxu0 0.0
  %91 = vmatpush2.msra.mxu0 0.0
  %92 = vmatprep.subr.mxu0 0.0
  %93 = vmatpush2.msra.mxu0 0.0
  %94 = vmatprep.subr.mxu0 0.0
  %95 = vmatpush2.msra.mxu0 0.0
  %96 = vmatprep.subr.mxu0 0.0
  %97 = vmatpush2.msra.mxu0 0.0
  %98 = vmatprep.subr.mxu0 0.0
  %99 = vmatpush2.msra.mxu0 0.0
  %100 = vmatprep.subr.mxu0 0.0
  %101 = vmatpush2.msra.mxu0 0.0
  %102 = vmatprep.subr.mxu0 0.0
  %103 = vmatpush2.msra.mxu0 0.0
  %104 = vmatprep.subr.mxu0 0.0
  %105 = vmatpush2.msra.mxu0 %v42
  %106 = vmatprep.subr.mxu0 0.0
  %107 = vmatpush2.msra.mxu0 %v41
  %108 = vmatprep.subr.mxu0 0.0
  %109 = vmatpush2.msra.mxu0 %v40
  %110 = vmatprep.subr.mxu0 0.0
  %111 = vmatpush2.msra.mxu0 %v39
  %112 = vmatprep.subr.mxu0 0.0
  %113 = vmatpush2.msra.mxu0 %v38
  %114 = vmatprep.subr.mxu0 0.0
  %115 = vmatpush2.msra.mxu0 %v37
  %116 = vmatprep.subr.mxu0 0.0
  %117 = vmatpush2.msra.mxu0 %v36
  %118 = vmatprep.subr.mxu0 0.0
  %119 = vmatpush2.msra.mxu0 %v35
  %120 = vmatprep.mubr.f32.mxu0 %v45
  %121 = vmatmul.mubr.f32.gmra.mxu0 %v11
  %v122 = vpop.f32.mrf.mxu0
  %v123 = vadd.f32 0.0, %v122
  %v124 = vpop.f32.mrf.mxu0
  %125 = vmatprep.mubr.f32.mxu0 %v48
  %126 = vmatmul.mubr.f32.gmra.mxu0 %v13
  %v127 = vpop.f32.mrf.mxu0
  %v128 = vadd.f32 0.0, %v127
  %v129 = vpop.f32.mrf.mxu0
  %130 = vmatprep.mubr.f32.mxu0 %v51
  %131 = vmatmul.mubr.f32.gmra.mxu0 %v15
  %v132 = vpop.f32.mrf.mxu0
  %v133 = vadd.f32 0.0, %v132
  %v134 = vpop.f32.mrf.mxu0
  %135 = vmatprep.mubr.f32.mxu0 %v54
  %136 = vmatmul.mubr.f32.gmra.mxu0 %v17
  %v137 = vpop.f32.mrf.mxu0
  %v138 = vadd.f32 0.0, %v137
  %v139 = vpop.f32.mrf.mxu0
  %140 = vdwg.mxu0
  %vm141 = vcmask 31744
  %142 = vst.msk [vmem:[%s2] sm:$0xff] %vm141, %v123
  %143 = vst.msk [vmem:[%s2 + $0x8] sm:$0xff] %vm141, %v128
  %144 = vst.msk [vmem:[%s2 + $0x10] sm:$0xff] %vm141, %v133
  %145 = vst.msk [vmem:[%s2 + $0x18] sm:$0xff] %vm141, %v138
  // Predicated region
  $region10: #{fedformer_forecast.65} parent=0 // pred_check
    _
  $region11: #{fedformer_forecast.65} parent=0 // pred_check_branch
    %147 = sbr.rel (0) target = $region13
  $region12: #{fedformer_forecast.65} parent=0 // pred_region
    _
  $region13: #{fedformer_forecast.65} parent=0 // pred_fallthru
    _
  // Predicated region
  $region14: #{fedformer_forecast.65} parent=0 // pred_check
    _
  $region15: #{fedformer_forecast.65} parent=0 // pred_check_branch
    %149 = sbr.rel (0) target = $region17
  $region16: #{fedformer_forecast.65} parent=0 // pred_region
    _
  $region17: #{fedformer_forecast.65} parent=0 // pred_fallthru
    _

// kernel: fedformer_forecast.67
$region0: #{fedformer_forecast.67}
  #allocation0 [shape = 'u32[]', space=smem, size = 0x4, offset = 0x4, fixed_abs, tag = 'smem constant byte address 0x4 - core index']
  #allocation1 [shape = 'u32[144,128]{1,0:T(1,128)}', space=vmem, size = 0x12000, scoped, tag = 'internal scratch']
  %s0 = inlined_call_operand.vmem [shape: f32[32,64], index: 0, kind: input, shape index: {}]
  %s1 = inlined_call_operand.vmem [shape: f32[64,4], index: 1, kind: input, shape index: {}]
  %s2 = inlined_call_operand.vmem [shape: f32[1,4], index: 2, kind: input, shape index: {}]
  %s3 = inlined_call_operand.vmem [shape: f32[32,4], index: 3, kind: output, shape index: {}]
  %s4 = sld [smem:[#allocation0]]
  $region22: #{fedformer_forecast.67} parent=0
    _
  %s6 = ssub.s32 1, %s4
  %s7 = scalar_select 0, %s6, %s4
  // Predicated region
  $region2: #{fedformer_forecast.67} parent=0 // pred_check
    _
  $region3: #{fedformer_forecast.67} parent=0 // pred_check_branch
    %9 = sbr.rel (0) target = $region5
  $region4: #{fedformer_forecast.67} parent=0 // pred_region
    _
  $region5: #{fedformer_forecast.67} parent=0 // pred_fallthru
    _
  // Predicated region
  $region6: #{fedformer_forecast.67} parent=0 // pred_check
    _
  $region7: #{fedformer_forecast.67} parent=0 // pred_check_branch
    %11 = sbr.rel (0) target = $region9
  $region8: #{fedformer_forecast.67} parent=0 // pred_region
    _
  $region9: #{fedformer_forecast.67} parent=0 // pred_fallthru
    _
  // Predicated region
  $region10: #{fedformer_forecast.67} parent=0 // pred_check
    _
  $region11: #{fedformer_forecast.67} parent=0 // pred_check_branch
    %13 = sbr.rel (0) target = $region13
  $region12: #{fedformer_forecast.67} parent=0 // pred_region
    _
  $region13: #{fedformer_forecast.67} parent=0 // pred_fallthru
    _
  %v14 = vld [vmem:[%s0] sm:$0xff]
  %v15 = vld [vmem:[%s0 + $0x8] sm:$0xff]
  %v16 = vld [vmem:[%s0 + $0x10] sm:$0xff]
  %v17 = vld [vmem:[%s0 + $0x18] sm:$0xff]
  %v18 = vld [vmem:[%s1] sm:$0xff]
  %v19 = vld [vmem:[%s1 + $0x8] sm:$0xff]
  %v20 = vld [vmem:[%s1 + $0x10] sm:$0xff]
  %v21 = vld [vmem:[%s1 + $0x18] sm:$0xff]
  %v22 = vld [vmem:[%s1 + $0x20] sm:$0xff]
  %v23 = vld [vmem:[%s1 + $0x28] sm:$0xff]
  %v24 = vld [vmem:[%s1 + $0x30] sm:$0xff]
  %v25 = vld [vmem:[%s1 + $0x38] sm:$0xff]
  %v26 = vld [vmem:[%s2] sm:$0x1]
  %v28 = vlaneseq
  %v29 = vshrl.u32 %v28, 7
  %v30 = vsub.s32 0, %v29
  %v31 = vrot.slane %v26, %v30
  %vm33 = vcmask 523264
  %v35 = vsel %vm33, %v14, 0
  %v38 = vsel %vm33, %v15, 0
  %v41 = vsel %vm33, %v16, 0
  %v44 = vsel %vm33, %v17, 0
  %46 = vmatprep.subr.mxu0 0.0
  %47 = vmatpush1.msra.mxu0 0.0
  %48 = vmatprep.subr.mxu0 0.0
  %49 = vmatpush1.msra.mxu0 0.0
  %50 = vmatprep.subr.mxu0 0.0
  %51 = vmatpush1.msra.mxu0 0.0
  %52 = vmatprep.subr.mxu0 0.0
  %53 = vmatpush1.msra.mxu0 0.0
  %54 = vmatprep.subr.mxu0 0.0
  %55 = vmatpush1.msra.mxu0 0.0
  %56 = vmatprep.subr.mxu0 0.0
  %57 = vmatpush1.msra.mxu0 0.0
  %58 = vmatprep.subr.mxu0 0.0
  %59 = vmatpush1.msra.mxu0 0.0
  %60 = vmatprep.subr.mxu0 0.0
  %61 = vmatpush1.msra.mxu0 0.0
  %62 = vmatprep.subr.mxu0 0.0
  %63 = vmatpush1.msra.mxu0 %v25
  %64 = vmatprep.subr.mxu0 0.0
  %65 = vmatpush1.msra.mxu0 %v24
  %66 = vmatprep.subr.mxu0 0.0
  %67 = vmatpush1.msra.mxu0 %v23
  %68 = vmatprep.subr.mxu0 0.0
  %69 = vmatpush1.msra.mxu0 %v22
  %70 = vmatprep.subr.mxu0 0.0
  %71 = vmatpush1.msra.mxu0 %v21
  %72 = vmatprep.subr.mxu0 0.0
  %73 = vmatpush1.msra.mxu0 %v20
  %74 = vmatprep.subr.mxu0 0.0
  %75 = vmatpush1.msra.mxu0 %v19
  %76 = vmatprep.subr.mxu0 0.0
  %77 = vmatpush1.msra.mxu0 %v18
  %78 = vmatprep.subr.mxu0 0.0
  %79 = vmatpush2.msra.mxu0 0.0
  %80 = vmatprep.subr.mxu0 0.0
  %81 = vmatpush2.msra.mxu0 0.0
  %82 = vmatprep.subr.mxu0 0.0
  %83 = vmatpush2.msra.mxu0 0.0
  %84 = vmatprep.subr.mxu0 0.0
  %85 = vmatpush2.msra.mxu0 0.0
  %86 = vmatprep.subr.mxu0 0.0
  %87 = vmatpush2.msra.mxu0 0.0
  %88 = vmatprep.subr.mxu0 0.0
  %89 = vmatpush2.msra.mxu0 0.0
  %90 = vmatprep.subr.mxu0 0.0
  %91 = vmatpush2.msra.mxu0 0.0
  %92 = vmatprep.subr.mxu0 0.0
  %93 = vmatpush2.msra.mxu0 0.0
  %94 = vmatprep.subr.mxu0 0.0
  %95 = vmatpush2.msra.mxu0 0.0
  %96 = vmatprep.subr.mxu0 0.0
  %97 = vmatpush2.msra.mxu0 0.0
  %98 = vmatprep.subr.mxu0 0.0
  %99 = vmatpush2.msra.mxu0 0.0
  %100 = vmatprep.subr.mxu0 0.0
  %101 = vmatpush2.msra.mxu0 0.0
  %102 = vmatprep.subr.mxu0 0.0
  %103 = vmatpush2.msra.mxu0 0.0
  %104 = vmatprep.subr.mxu0 0.0
  %105 = vmatpush2.msra.mxu0 0.0
  %106 = vmatprep.subr.mxu0 0.0
  %107 = vmatpush2.msra.mxu0 0.0
  %108 = vmatprep.subr.mxu0 0.0
  %109 = vmatpush2.msra.mxu0 0.0
  %110 = vmatprep.mubr.f32.mxu0 0.0
  %111 = vmatmul.mubr.f32.gmra.mxu0 %v35
  %v112 = vpop.f32.mrf.mxu0
  %v113 = vadd.f32 %v31, %v112
  %v114 = vpop.f32.mrf.mxu0
  %115 = vmatprep.mubr.f32.mxu0 0.0
  %116 = vmatmul.mubr.f32.gmra.mxu0 %v38
  %v117 = vpop.f32.mrf.mxu0
  %v118 = vadd.f32 %v31, %v117
  %v119 = vpop.f32.mrf.mxu0
  %120 = vmatprep.mubr.f32.mxu0 0.0
  %121 = vmatmul.mubr.f32.gmra.mxu0 %v41
  %v122 = vpop.f32.mrf.mxu0
  %v123 = vadd.f32 %v31, %v122
  %v124 = vpop.f32.mrf.mxu0
  %125 = vmatprep.mubr.f32.mxu0 0.0
  %126 = vmatmul.mubr.f32.gmra.mxu0 %v44
  %v127 = vpop.f32.mrf.mxu0
  %v128 = vadd.f32 %v31, %v127
  %v129 = vpop.f32.mrf.mxu0
  %130 = vdwg.mxu0
  %vm131 = vcmask 31744
  %132 = vst.msk [vmem:[%s3] sm:$0xff] %vm131, %v113
  %133 = vst.msk [vmem:[%s3 + $0x8] sm:$0xff] %vm131, %v118
  %134 = vst.msk [vmem:[%s3 + $0x10] sm:$0xff] %vm131, %v123
  %135 = vst.msk [vmem:[%s3 + $0x18] sm:$0xff] %vm131, %v128
  // Predicated region
  $region14: #{fedformer_forecast.67} parent=0 // pred_check
    _
  $region15: #{fedformer_forecast.67} parent=0 // pred_check_branch
    %137 = sbr.rel (0) target = $region17
  $region16: #{fedformer_forecast.67} parent=0 // pred_region
    _
  $region17: #{fedformer_forecast.67} parent=0 // pred_fallthru
    _
  // Predicated region
  $region18: #{fedformer_forecast.67} parent=0 // pred_check
    _
  $region19: #{fedformer_forecast.67} parent=0 // pred_check_branch
    %139 = sbr.rel (0) target = $region21
  $region20: #{fedformer_forecast.67} parent=0 // pred_region
    _
  $region21: #{fedformer_forecast.67} parent=0 // pred_fallthru
    _

</llo_original>
